<compile_context>
chip_gen: v6e
topology: v6e:2x2x1
jax: 0.10.0
libtpu: 0.0.40
codegen_flags: <defaults>
</compile_context>

<pallas_src>
import functools

import jax
import jax.numpy as jnp
from jax import lax
from jax.experimental import pallas as pl
from jax.experimental.pallas import tpu as pltpu

_VMEM_LIMIT = 48 * 1024 * 1024   # fits v7x's 64 MiB/TC with headroom; > defaults on v5e/v6e
_MASK_VALUE = -1e9               # additive mask for non-edges
_LEAKY_SLOPE = 0.2               # GATConv default negative_slope
_LN_EPS = 1e-5                   # torch.nn.LayerNorm default eps


def _choose_tiling(n):
    """Return (padded_n, dst_tile).

    Pads N to a 128-multiple whenever tiling is needed, caps the destination
    tile at 512 rows (VMEM budget re-derived for v7x's 64 MiB/TC) and ensures
    at least 2 grid steps for N > 128 so the single 'parallel' grid axis can
    feed both v7x TensorCores (harmless on single-core v5e/v6e)."""
    if n <= 128:
        return n, n                       # one small block; block dims == array dims
    n_pad = ((n + 127) // 128) * 128
    tile = min(512, max(128, (n_pad // 2) // 128 * 128))
    while n_pad % tile:
        tile -= 128
    return n_pad, tile


# ----------------------------------------------------------------------------
# Kernel 1: projection + per-node attention coefficients (single MXU matmul)
# ----------------------------------------------------------------------------
def _project_kernel(x_ref, w_ref, h_ref, ed_ref, es_ref, *, out_dim, heads):
    x = x_ref[...].astype(jnp.bfloat16)                       # [T, Fin]
    w = w_ref[...].astype(jnp.bfloat16)                       # [Fin, out_dim + 2H]
    r = jnp.dot(x, w, preferred_element_type=jnp.float32)     # [T, out_dim + 2H] f32
    h_ref[...] = r[:, :out_dim].astype(jnp.bfloat16)          # projected features
    ed_ref[...] = r[:, out_dim:out_dim + heads]               # dst coefficients [T, H]
    es_ref[...] = r[:, out_dim + heads:out_dim + 2 * heads]   # src coefficients [T, H]


# ----------------------------------------------------------------------------
# Kernel 2: masked multi-head attention + residual + LayerNorm + ELU
# (grid over destination-row tiles; scores live in the [N_src, T_dst] domain)
# ----------------------------------------------------------------------------
def _attention_kernel(*refs, heads, head_dim, use_residual, use_res_linear,
                      apply_norm, apply_elu, neg_slope, eps):
    maskT_ref, hh_ref, edt_ref, es_ref, bias_ref = refs[:5]
    pos = 5
    x_ref = rw_ref = rb_ref = gamma_ref = beta_ref = None
    if use_residual:
        x_ref = refs[pos]; pos += 1
        if use_res_linear:
            rw_ref, rb_ref = refs[pos], refs[pos + 1]; pos += 2
    if apply_norm:
        gamma_ref, beta_ref = refs[pos], refs[pos + 1]; pos += 2
    out_ref = refs[pos]

    # Additive mask (0 valid / -1e9 masked), computed once and shared by heads.
    negT = maskT_ref[...].astype(jnp.float32) * jnp.float32(_MASK_VALUE)   # [N, T]
    edt = edt_ref[...]                                                     # [H, T]
    es = es_ref[...]                                                       # [N, H]

    agg_rows = []
    for hd in range(heads):                       # unrolled; one [N, T] tile live at a time
        e = es[:, hd:hd + 1] + edt[hd:hd + 1, :]              # [N, T]
        e = jnp.maximum(e, neg_slope * e)                     # LeakyReLU(0.2)
        s = e + negT                                          # masked logits
        m = jnp.max(s, axis=0, keepdims=True)                 # [1, T]
        p = jnp.exp(s - m)                                    # [N, T]; masked -> exactly 0
        d = jnp.sum(p, axis=0, keepdims=True)                 # [1, T]; >= 1 (self loops)
        # Lane-dense aggregation: hh[hd] is [F, N] bf16 (lane axis = N),
        # output [F, T] has a full dense lane axis (T rows of this tile).
        a = lax.dot_general(hh_ref[hd], p.astype(jnp.bfloat16),
                            dimension_numbers=(((1,), (0,)), ((), ())),
                            preferred_element_type=jnp.float32)            # [F, T]
        # Deferred softmax normalization via EUP reciprocal (O(F*T), not O(N*T)).
        agg_rows.append(a * pl.reciprocal(d, approx=True))

    out_t = agg_rows[0] if heads == 1 else jnp.concatenate(agg_rows, axis=0)  # [H*F, T]
    out = jnp.transpose(out_t)                     # single [H*F, T] -> [T, H*F] transpose

    out = out + bias_ref[...]                      # GATConv bias

    if use_residual:
        if use_res_linear:
            res = jnp.dot(x_ref[...].astype(jnp.bfloat16),
                          rw_ref[...].astype(jnp.bfloat16),
                          preferred_element_type=jnp.float32) + rb_ref[...]
        else:
            res = x_ref[...].astype(jnp.float32)
        out = out + res

    if apply_norm:                                 # LayerNorm (biased var, torch-like)
        mu = jnp.mean(out, axis=-1, keepdims=True)
        var = jnp.mean(jnp.square(out - mu), axis=-1, keepdims=True)
        out = (out - mu) * lax.rsqrt(var + eps)
        out = out * gamma_ref[...] + beta_ref[...]

    if apply_elu:
        out = jnp.where(out > 0, out, jnp.exp(jnp.minimum(out, 0.0)) - 1.0)

    # TODO(synk): dropout (p=0.6) is identity in inference mode.
    out_ref[...] = out.astype(out_ref.dtype)


# ----------------------------------------------------------------------------
# Wrapper: one GAT layer = projection pallas_call + tiled attention pallas_call
# ----------------------------------------------------------------------------
def gat_layer(x, maskT, params, *, heads, head_dim, tile, use_residual,
              use_res_linear, apply_norm, apply_elu, out_dtype):
    w, att_src, att_dst, bias, rw, rb, gamma, beta = params
    n, fin = x.shape
    out_dim = heads * head_dim
    assert n % tile == 0
    n_tiles = n // tile

    # Fold the attention-coefficient selectors into the projection weight:
    #   ed = x @ (W · diag(att_dst) · S),  es = x @ (W · diag(att_src) · S)
    onehot = (jnp.arange(out_dim)[:, None] // head_dim
              == jnp.arange(heads)[None, :]).astype(jnp.float32)       # [out_dim, H]
    wd = w @ (att_dst.reshape(out_dim, 1) * onehot)                    # [Fin, H]
    ws = w @ (att_src.reshape(out_dim, 1) * onehot)                    # [Fin, H]
    w_aug = jnp.concatenate([w, wd, ws], axis=1)                       # [Fin, out_dim+2H]
    aug_dim = out_dim + 2 * heads

    cparams = pltpu.CompilerParams(dimension_semantics=("parallel",),
                                   vmem_limit_bytes=_VMEM_LIMIT)

    # ---- projection kernel (row-tiled, one matmul) ----
    h, ed, es = pl.pallas_call(
        functools.partial(_project_kernel, out_dim=out_dim, heads=heads),
        out_shape=(jax.ShapeDtypeStruct((n, out_dim), jnp.bfloat16),
                   jax.ShapeDtypeStruct((n, heads), jnp.float32),
                   jax.ShapeDtypeStruct((n, heads), jnp.float32)),
        grid=(n_tiles,),
        in_specs=[pl.BlockSpec((tile, fin), lambda i: (i, 0)),
                  pl.BlockSpec((fin, aug_dim), lambda i: (0, 0))],
        out_specs=(pl.BlockSpec((tile, out_dim), lambda i: (i, 0)),
                   pl.BlockSpec((tile, heads), lambda i: (i, 0)),
                   pl.BlockSpec((tile, heads), lambda i: (i, 0))),
        compiler_params=cparams,
    )(x, w_aug)

    # Layout plumbing on the XLA side (once per layer, cheap):
    #   hh  : [H, F, N] bf16  -> lane axis = N for the lane-dense aggregation
    #   edt : [H, N]          -> destination coefficients, tiled over columns
    hh = h.reshape(n, heads, head_dim).transpose(1, 2, 0)              # [H, F, N]
    edt = ed.T                                                         # [H, N]

    kernel = functools.partial(
        _attention_kernel, heads=heads, head_dim=head_dim,
        use_residual=use_residual, use_res_linear=use_res_linear,
        apply_norm=apply_norm, apply_elu=apply_elu,
        neg_slope=_LEAKY_SLOPE, eps=_LN_EPS)

    inputs = [maskT, hh, edt, es, bias]
    in_specs = [pl.BlockSpec((n, tile), lambda i: (0, i)),             # int8 additive mask
                pl.BlockSpec((heads, head_dim, n), lambda i: (0, 0, 0)),
                pl.BlockSpec((heads, tile), lambda i: (0, i)),
                pl.BlockSpec((n, heads), lambda i: (0, 0)),
                pl.BlockSpec((1, out_dim), lambda i: (0, 0))]
    if use_residual:
        inputs.append(x)
        in_specs.append(pl.BlockSpec((tile, fin), lambda i: (i, 0)))
        if use_res_linear:
            inputs += [rw, rb]
            in_specs += [pl.BlockSpec((fin, out_dim), lambda i: (0, 0)),
                         pl.BlockSpec((1, out_dim), lambda i: (0, 0))]
    if apply_norm:
        inputs += [gamma, beta]
        in_specs += [pl.BlockSpec((1, out_dim), lambda i: (0, 0)),
                     pl.BlockSpec((1, out_dim), lambda i: (0, 0))]

    return pl.pallas_call(
        kernel,
        out_shape=jax.ShapeDtypeStruct((n, out_dim), out_dtype),
        grid=(n_tiles,),
        in_specs=in_specs,
        out_specs=pl.BlockSpec((tile, out_dim), lambda i: (i, 0)),
        compiler_params=cparams,
    )(*inputs)


# ----------------------------------------------------------------------------
# Deterministic parameter construction (synthetic; matches module's shapes)
# ----------------------------------------------------------------------------
def _init_gat_params(key, fin, heads, head_dim, *, res_linear=False):
    out_dim = heads * head_dim
    k_w, k_as, k_ad, k_rw = jax.random.split(key, 4)
    w = jax.random.normal(k_w, (fin, out_dim), jnp.float32) / jnp.sqrt(float(fin))
    asrc = jax.random.normal(k_as, (1, out_dim), jnp.float32) * 0.1
    adst = jax.random.normal(k_ad, (1, out_dim), jnp.float32) * 0.1
    bias = jnp.zeros((1, out_dim), jnp.float32)
    if res_linear:
        rw = jax.random.normal(k_rw, (fin, out_dim), jnp.float32) / jnp.sqrt(float(fin))
        rb = jnp.zeros((1, out_dim), jnp.float32)
    else:                                     # unused (static flags skip them)
        rw = jnp.zeros((fin, out_dim), jnp.float32)
        rb = jnp.zeros((1, out_dim), jnp.float32)
    gamma = jnp.ones((1, out_dim), jnp.float32)
    beta = jnp.zeros((1, out_dim), jnp.float32)
    return (w, asrc, adst, bias, rw, rb, gamma, beta)


def build_resgat_params(key, num_features, hidden, num_classes, num_layers, heads):
    keys = jax.random.split(key, num_layers)
    head_dim = hidden // heads
    p_in = _init_gat_params(keys[0], num_features, heads, head_dim, res_linear=True)
    p_mid = [_init_gat_params(keys[i + 1], hidden, heads, head_dim)
             for i in range(num_layers - 2)]
    p_out = _init_gat_params(keys[-1], hidden, 1, num_classes)
    return p_in, p_mid, p_out


def resgat_forward(x, maskT, params, *, hidden, num_classes, heads, tile):
    p_in, p_mid, p_out = params
    head_dim = hidden // heads
    # input ResGATLayer (+ ELU; dropout identity in eval) -> bf16 activation
    x = gat_layer(x, maskT, p_in, heads=heads, head_dim=head_dim, tile=tile,
                  use_residual=True, use_res_linear=True,
                  apply_norm=True, apply_elu=True, out_dtype=jnp.bfloat16)
    # hidden ResGATLayers
    for p in p_mid:
        x = gat_layer(x, maskT, p, heads=heads, head_dim=head_dim, tile=tile,
                      use_residual=True, use_res_linear=False,
                      apply_norm=True, apply_elu=True, out_dtype=jnp.bfloat16)
    # output GATConv: heads=1, concat=False (mean over a single head == concat)
    x = gat_layer(x, maskT, p_out, heads=1, head_dim=num_classes, tile=tile,
                  use_residual=False, use_res_linear=False,
                  apply_norm=False, apply_elu=False, out_dtype=jnp.float32)
    return x


def edge_index_to_maskT(edge_index, num_nodes, num_padded):
    """int8 additive-mask indicator maskT[src, dst] = 0 iff edge src->dst exists
    or src == dst (self loops), else 1.  Padded rows/cols stay 1 (non-edges).

    # TODO(synk): PyG's edge-list softmax weights duplicate edges individually;
    # the dense form assumes a simple graph (no multi-edges).
    """
    src, dst = edge_index[0], edge_index[1]
    m = jnp.ones((num_padded, num_padded), jnp.int8)
    m = m.at[src, dst].set(0)
    idx = jnp.arange(num_nodes)
    m = m.at[idx, idx].set(0)
    return m


if __name__ == "__main__":
    # Small shapes consistent with the module.
    N = 8                 # nodes
    NUM_FEATURES = 16
    HIDDEN = 32
    NUM_CLASSES = 8
    NUM_LAYERS = 3
    HEADS = 8

    key = jax.random.PRNGKey(0)
    k_x, k_p = jax.random.split(key)

    x = jax.random.normal(k_x, (N, NUM_FEATURES), jnp.float32)

    # Deterministic edge_index: bidirectional ring + a few chords. [2, E]
    ring_src = list(range(N)) + [(i + 1) % N for i in range(N)]
    ring_dst = [(i + 1) % N for i in range(N)] + list(range(N))
    extra_src = [0, 2, 4, 6]
    extra_dst = [4, 6, 0, 2]
    edge_index = jnp.array([ring_src + extra_src, ring_dst + extra_dst],
                           dtype=jnp.int32)          # shape [2, 20]

    n_pad, tile = _choose_tiling(N)
    maskT = edge_index_to_maskT(edge_index, N, n_pad)
    x_pad = jnp.pad(x, ((0, n_pad - N), (0, 0)))

    params = build_resgat_params(k_p, NUM_FEATURES, HIDDEN, NUM_CLASSES,
                                 NUM_LAYERS, HEADS)

    fwd = jax.jit(functools.partial(resgat_forward, hidden=HIDDEN,
                                    num_classes=NUM_CLASSES, heads=HEADS,
                                    tile=tile))
    out = fwd(x_pad, maskT, params)[:N]
    out = jax.block_until_ready(out)
    assert out.shape == (N, NUM_CLASSES), out.shape
    assert bool(jnp.all(jnp.isfinite(out)))
    print("KERNEL_OK")
</pallas_src>

<mosaic_0001>
module attributes {stable_mosaic.version = 11 : i64} {
  func.func @_project_kernel(%arg0: i32, %arg1: memref<8x16xf32, #tpu.memory_space<vmem>>, %arg2: memref<16x48xf32, #tpu.memory_space<vmem>>, %arg3: memref<8x32xbf16, #tpu.memory_space<vmem>>, %arg4: memref<8x8xf32, #tpu.memory_space<vmem>>, %arg5: memref<8x8xf32, #tpu.memory_space<vmem>>) attributes {dimension_semantics = [#tpu.dimension_semantics<parallel>], iteration_bounds = array<i64: 1>, scalar_prefetch = 0 : i64, scratch_operands = 0 : i64, tpu.core_type = #tpu.core_type<tc>, window_params = [{transform_indices = @transform_0, window_bounds = array<i64: 8, 16>}, {pipeline_mode = #tpu.pipeline_mode<synchronous>, transform_indices = @transform_1, window_bounds = array<i64: 16, 48>}, {transform_indices = @transform_2, window_bounds = array<i64: 8, 32>}, {transform_indices = @transform_3, window_bounds = array<i64: 8, 8>}, {transform_indices = @transform_4, window_bounds = array<i64: 8, 8>}]} {
    %c0 = arith.constant 0 : index
    %c0_0 = arith.constant 0 : index
    %0 = vector.load %arg1[%c0, %c0_0] : memref<8x16xf32, #tpu.memory_space<vmem>>, vector<8x16xf32>
    %1 = arith.truncf %0 : vector<8x16xf32> to vector<8x16xbf16>
    %c0_1 = arith.constant 0 : index
    %c0_2 = arith.constant 0 : index
    %2 = vector.load %arg2[%c0_1, %c0_2] : memref<16x48xf32, #tpu.memory_space<vmem>>, vector<16x48xf32>
    %3 = arith.truncf %2 : vector<16x48xf32> to vector<16x48xbf16>
    %cst = arith.constant dense<0.000000e+00> : vector<8x48xf32>
    %4 = tpu.matmul %1, %3, %cst {dimension_numbers = #tpu.dot_dimension_numbers<[1], [0], [0], [1], [0, 0, 1, 1], [], []>} : vector<8x16xbf16>, vector<16x48xbf16>, vector<8x48xf32> -> vector<8x48xf32>
    %5 = vector.extract_strided_slice %4 {offsets = [0, 0], sizes = [8, 32], strides = [1, 1]} : vector<8x48xf32> to vector<8x32xf32>
    %6 = arith.truncf %5 : vector<8x32xf32> to vector<8x32xbf16>
    %c0_3 = arith.constant 0 : index
    %c0_4 = arith.constant 0 : index
    %7 = vector.load %arg3[%c0_3, %c0_4] : memref<8x32xbf16, #tpu.memory_space<vmem>>, vector<8x32xbf16>
    tpu.vector_store %arg3[%c0_3, %c0_4], %6 {strides = array<i32>} : memref<8x32xbf16, #tpu.memory_space<vmem>>, vector<8x32xbf16>,
    %8 = vector.extract_strided_slice %4 {offsets = [0, 32], sizes = [8, 8], strides = [1, 1]} : vector<8x48xf32> to vector<8x8xf32>
    %c0_5 = arith.constant 0 : index
    %c0_6 = arith.constant 0 : index
    %9 = vector.load %arg4[%c0_5, %c0_6] : memref<8x8xf32, #tpu.memory_space<vmem>>, vector<8x8xf32>
    tpu.vector_store %arg4[%c0_5, %c0_6], %8 {strides = array<i32>} : memref<8x8xf32, #tpu.memory_space<vmem>>, vector<8x8xf32>,
    %10 = vector.extract_strided_slice %4 {offsets = [0, 40], sizes = [8, 8], strides = [1, 1]} : vector<8x48xf32> to vector<8x8xf32>
    %c0_7 = arith.constant 0 : index
    %c0_8 = arith.constant 0 : index
    %11 = vector.load %arg5[%c0_7, %c0_8] : memref<8x8xf32, #tpu.memory_space<vmem>>, vector<8x8xf32>
    tpu.vector_store %arg5[%c0_7, %c0_8], %10 {strides = array<i32>} : memref<8x8xf32, #tpu.memory_space<vmem>>, vector<8x8xf32>,
    return
  }
  func.func @transform_0(%arg0: i32) -> (i32, i32) {
    %c0_i32 = arith.constant 0 : i32
    %c0_i32_0 = arith.constant 0 : i32
    return %arg0, %c0_i32 : i32, i32
  }
  func.func @transform_1(%arg0: i32) -> (i32, i32) {
    %c0_i32 = arith.constant 0 : i32
    %c0_i32_0 = arith.constant 0 : i32
    %c0_i32_1 = arith.constant 0 : i32
    return %c0_i32, %c0_i32_0 : i32, i32
  }
  func.func @transform_2(%arg0: i32) -> (i32, i32) {
    %c0_i32 = arith.constant 0 : i32
    %c0_i32_0 = arith.constant 0 : i32
    return %arg0, %c0_i32 : i32, i32
  }
  func.func @transform_3(%arg0: i32) -> (i32, i32) {
    %c0_i32 = arith.constant 0 : i32
    %c0_i32_0 = arith.constant 0 : i32
    return %arg0, %c0_i32 : i32, i32
  }
  func.func @transform_4(%arg0: i32) -> (i32, i32) {
    %c0_i32 = arith.constant 0 : i32
    %c0_i32_0 = arith.constant 0 : i32
    return %arg0, %c0_i32 : i32, i32
  }
}

module attributes {stable_mosaic.version = 11 : i64} {
  func.func @_attention_kernel(%arg0: i32, %arg1: memref<8x8xi8, #tpu.memory_space<vmem>>, %arg2: memref<8x4x8xbf16, #tpu.memory_space<vmem>>, %arg3: memref<8x8xf32, #tpu.memory_space<vmem>>, %arg4: memref<8x8xf32, #tpu.memory_space<vmem>>, %arg5: memref<1x32xf32, #tpu.memory_space<vmem>>, %arg6: memref<8x16xf32, #tpu.memory_space<vmem>>, %arg7: memref<16x32xf32, #tpu.memory_space<vmem>>, %arg8: memref<1x32xf32, #tpu.memory_space<vmem>>, %arg9: memref<1x32xf32, #tpu.memory_space<vmem>>, %arg10: memref<1x32xf32, #tpu.memory_space<vmem>>, %arg11: memref<8x32xbf16, #tpu.memory_space<vmem>>) attributes {dimension_semantics = [#tpu.dimension_semantics<parallel>], iteration_bounds = array<i64: 1>, scalar_prefetch = 0 : i64, scratch_operands = 0 : i64, tpu.core_type = #tpu.core_type<tc>, window_params = [{transform_indices = @transform_0, window_bounds = array<i64: 8, 8>}, {pipeline_mode = #tpu.pipeline_mode<synchronous>, transform_indices = @transform_1, window_bounds = array<i64: 8, 4, 8>}, {transform_indices = @transform_2, window_bounds = array<i64: 8, 8>}, {pipeline_mode = #tpu.pipeline_mode<synchronous>, transform_indices = @transform_3, window_bounds = array<i64: 8, 8>}, {pipeline_mode = #tpu.pipeline_mode<synchronous>, transform_indices = @transform_4, window_bounds = array<i64: 1, 32>}, {transform_indices = @transform_5, window_bounds = array<i64: 8, 16>}, {pipeline_mode = #tpu.pipeline_mode<synchronous>, transform_indices = @transform_6, window_bounds = array<i64: 16, 32>}, {pipeline_mode = #tpu.pipeline_mode<synchronous>, transform_indices = @transform_7, window_bounds = array<i64: 1, 32>}, {pipeline_mode = #tpu.pipeline_mode<synchronous>, transform_indices = @transform_8, window_bounds = array<i64: 1, 32>}, {pipeline_mode = #tpu.pipeline_mode<synchronous>, transform_indices = @transform_9, window_bounds = array<i64: 1, 32>}, {transform_indices = @transform_10, window_bounds = array<i64: 8, 32>}]} {
    %c0 = arith.constant 0 : index
    %c0_0 = arith.constant 0 : index
    %0 = vector.load %arg1[%c0, %c0_0] : memref<8x8xi8, #tpu.memory_space<vmem>>, vector<8x8xi8>
    %1 = arith.sitofp %0 : vector<8x8xi8> to vector<8x8xf32>
    %cst = arith.constant -1.000000e+09 : f32
    %2 = vector.broadcast %cst : f32 to vector<8x8xf32>
    %3 = arith.mulf %1, %2 : vector<8x8xf32>
    %c0_1 = arith.constant 0 : index
    %c0_2 = arith.constant 0 : index
    %4 = vector.load %arg3[%c0_1, %c0_2] : memref<8x8xf32, #tpu.memory_space<vmem>>, vector<8x8xf32>
    %c0_3 = arith.constant 0 : index
    %c0_4 = arith.constant 0 : index
    %5 = vector.load %arg4[%c0_3, %c0_4] : memref<8x8xf32, #tpu.memory_space<vmem>>, vector<8x8xf32>
    %6 = vector.extract_strided_slice %5 {offsets = [0, 0], sizes = [8, 1], strides = [1, 1]} : vector<8x8xf32> to vector<8x1xf32>
    %7 = vector.extract_strided_slice %4 {offsets = [0, 0], sizes = [1, 8], strides = [1, 1]} : vector<8x8xf32> to vector<1x8xf32>
    %8 = vector.broadcast %6 : vector<8x1xf32> to vector<8x8xf32>
    %9 = vector.broadcast %7 : vector<1x8xf32> to vector<8x8xf32>
    %10 = arith.addf %8, %9 : vector<8x8xf32>
    %cst_5 = arith.constant 2.000000e-01 : f32
    %11 = vector.broadcast %cst_5 : f32 to vector<8x8xf32>
    %12 = arith.mulf %11, %10 : vector<8x8xf32>
    %13 = arith.maximumf %10, %12 : vector<8x8xf32>
    %14 = arith.addf %13, %3 : vector<8x8xf32>
    %cst_6 = arith.constant dense<0xFF800000> : vector<8xf32>
    %15 = vector.multi_reduction <maximumf>, %14, %cst_6 [0] : vector<8x8xf32> to vector<8xf32>
    %16 = vector.shape_cast %15 : vector<8xf32> to vector<1x8xf32>
    %17 = vector.broadcast %16 : vector<1x8xf32> to vector<8x8xf32>
    %18 = arith.subf %14, %17 : vector<8x8xf32>
    %19 = math.exp %18 : vector<8x8xf32>
    %cst_7 = arith.constant dense<0.000000e+00> : vector<8xf32>
    %20 = vector.multi_reduction <add>, %19, %cst_7 [0] : vector<8x8xf32> to vector<8xf32>
    %21 = vector.shape_cast %20 : vector<8xf32> to vector<1x8xf32>
    %c0_8 = arith.constant 0 : index
    %c0_9 = arith.constant 0 : index
    %c0_10 = arith.constant 0 : index
    %22 = vector.load %arg2[%c0_8, %c0_9, %c0_10] : memref<8x4x8xbf16, #tpu.memory_space<vmem>>, vector<1x4x8xbf16>
    %23 = vector.shape_cast %22 : vector<1x4x8xbf16> to vector<4x8xbf16>
    %24 = arith.truncf %19 : vector<8x8xf32> to vector<8x8xbf16>
    %cst_11 = arith.constant dense<0.000000e+00> : vector<4x8xf32>
    %25 = tpu.matmul %23, %24, %cst_11 {dimension_numbers = #tpu.dot_dimension_numbers<[1], [0], [0], [1], [0, 0, 1, 1], [], []>} : vector<4x8xbf16>, vector<8x8xbf16>, vector<4x8xf32> -> vector<4x8xf32>
    %26 = tpu.reciprocal %21 {approx = true} : vector<1x8xf32> -> vector<1x8xf32>
    %27 = vector.broadcast %26 : vector<1x8xf32> to vector<4x8xf32>
    %28 = arith.mulf %25, %27 : vector<4x8xf32>
    %29 = vector.extract_strided_slice %5 {offsets = [0, 1], sizes = [8, 1], strides = [1, 1]} : vector<8x8xf32> to vector<8x1xf32>
    %30 = vector.extract_strided_slice %4 {offsets = [1, 0], sizes = [1, 8], strides = [1, 1]} : vector<8x8xf32> to vector<1x8xf32>
    %31 = vector.broadcast %29 : vector<8x1xf32> to vector<8x8xf32>
    %32 = vector.broadcast %30 : vector<1x8xf32> to vector<8x8xf32>
    %33 = arith.addf %31, %32 : vector<8x8xf32>
    %cst_12 = arith.constant 2.000000e-01 : f32
    %34 = vector.broadcast %cst_12 : f32 to vector<8x8xf32>
    %35 = arith.mulf %34, %33 : vector<8x8xf32>
    %36 = arith.maximumf %33, %35 : vector<8x8xf32>
    %37 = arith.addf %36, %3 : vector<8x8xf32>
    %cst_13 = arith.constant dense<0xFF800000> : vector<8xf32>
    %38 = vector.multi_reduction <maximumf>, %37, %cst_13 [0] : vector<8x8xf32> to vector<8xf32>
    %39 = vector.shape_cast %38 : vector<8xf32> to vector<1x8xf32>
    %40 = vector.broadcast %39 : vector<1x8xf32> to vector<8x8xf32>
    %41 = arith.subf %37, %40 : vector<8x8xf32>
    %42 = math.exp %41 : vector<8x8xf32>
    %cst_14 = arith.constant dense<0.000000e+00> : vector<8xf32>
    %43 = vector.multi_reduction <add>, %42, %cst_14 [0] : vector<8x8xf32> to vector<8xf32>
    %44 = vector.shape_cast %43 : vector<8xf32> to vector<1x8xf32>
    %c1 = arith.constant 1 : index
    %c0_15 = arith.constant 0 : index
    %c0_16 = arith.constant 0 : index
    %45 = vector.load %arg2[%c1, %c0_15, %c0_16] : memref<8x4x8xbf16, #tpu.memory_space<vmem>>, vector<1x4x8xbf16>
    %46 = vector.shape_cast %45 : vector<1x4x8xbf16> to vector<4x8xbf16>
    %47 = arith.truncf %42 : vector<8x8xf32> to vector<8x8xbf16>
    %cst_17 = arith.constant dense<0.000000e+00> : vector<4x8xf32>
    %48 = tpu.matmul %46, %47, %cst_17 {dimension_numbers = #tpu.dot_dimension_numbers<[1], [0], [0], [1], [0, 0, 1, 1], [], []>} : vector<4x8xbf16>, vector<8x8xbf16>, vector<4x8xf32> -> vector<4x8xf32>
    %49 = tpu.reciprocal %44 {approx = true} : vector<1x8xf32> -> vector<1x8xf32>
    %50 = vector.broadcast %49 : vector<1x8xf32> to vector<4x8xf32>
    %51 = arith.mulf %48, %50 : vector<4x8xf32>
    %52 = vector.extract_strided_slice %5 {offsets = [0, 2], sizes = [8, 1], strides = [1, 1]} : vector<8x8xf32> to vector<8x1xf32>
    %53 = vector.extract_strided_slice %4 {offsets = [2, 0], sizes = [1, 8], strides = [1, 1]} : vector<8x8xf32> to vector<1x8xf32>
    %54 = vector.broadcast %52 : vector<8x1xf32> to vector<8x8xf32>
    %55 = vector.broadcast %53 : vector<1x8xf32> to vector<8x8xf32>
    %56 = arith.addf %54, %55 : vector<8x8xf32>
    %cst_18 = arith.constant 2.000000e-01 : f32
    %57 = vector.broadcast %cst_18 : f32 to vector<8x8xf32>
    %58 = arith.mulf %57, %56 : vector<8x8xf32>
    %59 = arith.maximumf %56, %58 : vector<8x8xf32>
    %60 = arith.addf %59, %3 : vector<8x8xf32>
    %cst_19 = arith.constant dense<0xFF800000> : vector<8xf32>
    %61 = vector.multi_reduction <maximumf>, %60, %cst_19 [0] : vector<8x8xf32> to vector<8xf32>
    %62 = vector.shape_cast %61 : vector<8xf32> to vector<1x8xf32>
    %63 = vector.broadcast %62 : vector<1x8xf32> to vector<8x8xf32>
    %64 = arith.subf %60, %63 : vector<8x8xf32>
    %65 = math.exp %64 : vector<8x8xf32>
    %cst_20 = arith.constant dense<0.000000e+00> : vector<8xf32>
    %66 = vector.multi_reduction <add>, %65, %cst_20 [0] : vector<8x8xf32> to vector<8xf32>
    %67 = vector.shape_cast %66 : vector<8xf32> to vector<1x8xf32>
    %c2 = arith.constant 2 : index
    %c0_21 = arith.constant 0 : index
    %c0_22 = arith.constant 0 : index
    %68 = vector.load %arg2[%c2, %c0_21, %c0_22] : memref<8x4x8xbf16, #tpu.memory_space<vmem>>, vector<1x4x8xbf16>
    %69 = vector.shape_cast %68 : vector<1x4x8xbf16> to vector<4x8xbf16>
    %70 = arith.truncf %65 : vector<8x8xf32> to vector<8x8xbf16>
    %cst_23 = arith.constant dense<0.000000e+00> : vector<4x8xf32>
    %71 = tpu.matmul %69, %70, %cst_23 {dimension_numbers = #tpu.dot_dimension_numbers<[1], [0], [0], [1], [0, 0, 1, 1], [], []>} : vector<4x8xbf16>, vector<8x8xbf16>, vector<4x8xf32> -> vector<4x8xf32>
    %72 = tpu.reciprocal %67 {approx = true} : vector<1x8xf32> -> vector<1x8xf32>
    %73 = vector.broadcast %72 : vector<1x8xf32> to vector<4x8xf32>
    %74 = arith.mulf %71, %73 : vector<4x8xf32>
    %75 = vector.extract_strided_slice %5 {offsets = [0, 3], sizes = [8, 1], strides = [1, 1]} : vector<8x8xf32> to vector<8x1xf32>
    %76 = vector.extract_strided_slice %4 {offsets = [3, 0], sizes = [1, 8], strides = [1, 1]} : vector<8x8xf32> to vector<1x8xf32>
    %77 = vector.broadcast %75 : vector<8x1xf32> to vector<8x8xf32>
    %78 = vector.broadcast %76 : vector<1x8xf32> to vector<8x8xf32>
    %79 = arith.addf %77, %78 : vector<8x8xf32>
    %cst_24 = arith.constant 2.000000e-01 : f32
    %80 = vector.broadcast %cst_24 : f32 to vector<8x8xf32>
    %81 = arith.mulf %80, %79 : vector<8x8xf32>
    %82 = arith.maximumf %79, %81 : vector<8x8xf32>
    %83 = arith.addf %82, %3 : vector<8x8xf32>
    %cst_25 = arith.constant dense<0xFF800000> : vector<8xf32>
    %84 = vector.multi_reduction <maximumf>, %83, %cst_25 [0] : vector<8x8xf32> to vector<8xf32>
    %85 = vector.shape_cast %84 : vector<8xf32> to vector<1x8xf32>
    %86 = vector.broadcast %85 : vector<1x8xf32> to vector<8x8xf32>
    %87 = arith.subf %83, %86 : vector<8x8xf32>
    %88 = math.exp %87 : vector<8x8xf32>
    %cst_26 = arith.constant dense<0.000000e+00> : vector<8xf32>
    %89 = vector.multi_reduction <add>, %88, %cst_26 [0] : vector<8x8xf32> to vector<8xf32>
    %90 = vector.shape_cast %89 : vector<8xf32> to vector<1x8xf32>
    %c3 = arith.constant 3 : index
    %c0_27 = arith.constant 0 : index
    %c0_28 = arith.constant 0 : index
    %91 = vector.load %arg2[%c3, %c0_27, %c0_28] : memref<8x4x8xbf16, #tpu.memory_space<vmem>>, vector<1x4x8xbf16>
    %92 = vector.shape_cast %91 : vector<1x4x8xbf16> to vector<4x8xbf16>
    %93 = arith.truncf %88 : vector<8x8xf32> to vector<8x8xbf16>
    %cst_29 = arith.constant dense<0.000000e+00> : vector<4x8xf32>
    %94 = tpu.matmul %92, %93, %cst_29 {dimension_numbers = #tpu.dot_dimension_numbers<[1], [0], [0], [1], [0, 0, 1, 1], [], []>} : vector<4x8xbf16>, vector<8x8xbf16>, vector<4x8xf32> -> vector<4x8xf32>
    %95 = tpu.reciprocal %90 {approx = true} : vector<1x8xf32> -> vector<1x8xf32>
    %96 = vector.broadcast %95 : vector<1x8xf32> to vector<4x8xf32>
    %97 = arith.mulf %94, %96 : vector<4x8xf32>
    %98 = vector.extract_strided_slice %5 {offsets = [0, 4], sizes = [8, 1], strides = [1, 1]} : vector<8x8xf32> to vector<8x1xf32>
    %99 = vector.extract_strided_slice %4 {offsets = [4, 0], sizes = [1, 8], strides = [1, 1]} : vector<8x8xf32> to vector<1x8xf32>
    %100 = vector.broadcast %98 : vector<8x1xf32> to vector<8x8xf32>
    %101 = vector.broadcast %99 : vector<1x8xf32> to vector<8x8xf32>
    %102 = arith.addf %100, %101 : vector<8x8xf32>
    %cst_30 = arith.constant 2.000000e-01 : f32
    %103 = vector.broadcast %cst_30 : f32 to vector<8x8xf32>
    %104 = arith.mulf %103, %102 : vector<8x8xf32>
    %105 = arith.maximumf %102, %104 : vector<8x8xf32>
    %106 = arith.addf %105, %3 : vector<8x8xf32>
    %cst_31 = arith.constant dense<0xFF800000> : vector<8xf32>
    %107 = vector.multi_reduction <maximumf>, %106, %cst_31 [0] : vector<8x8xf32> to vector<8xf32>
    %108 = vector.shape_cast %107 : vector<8xf32> to vector<1x8xf32>
    %109 = vector.broadcast %108 : vector<1x8xf32> to vector<8x8xf32>
    %110 = arith.subf %106, %109 : vector<8x8xf32>
    %111 = math.exp %110 : vector<8x8xf32>
    %cst_32 = arith.constant dense<0.000000e+00> : vector<8xf32>
    %112 = vector.multi_reduction <add>, %111, %cst_32 [0] : vector<8x8xf32> to vector<8xf32>
    %113 = vector.shape_cast %112 : vector<8xf32> to vector<1x8xf32>
    %c4 = arith.constant 4 : index
    %c0_33 = arith.constant 0 : index
    %c0_34 = arith.constant 0 : index
    %114 = vector.load %arg2[%c4, %c0_33, %c0_34] : memref<8x4x8xbf16, #tpu.memory_space<vmem>>, vector<1x4x8xbf16>
    %115 = vector.shape_cast %114 : vector<1x4x8xbf16> to vector<4x8xbf16>
    %116 = arith.truncf %111 : vector<8x8xf32> to vector<8x8xbf16>
    %cst_35 = arith.constant dense<0.000000e+00> : vector<4x8xf32>
    %117 = tpu.matmul %115, %116, %cst_35 {dimension_numbers = #tpu.dot_dimension_numbers<[1], [0], [0], [1], [0, 0, 1, 1], [], []>} : vector<4x8xbf16>, vector<8x8xbf16>, vector<4x8xf32> -> vector<4x8xf32>
    %118 = tpu.reciprocal %113 {approx = true} : vector<1x8xf32> -> vector<1x8xf32>
    %119 = vector.broadcast %118 : vector<1x8xf32> to vector<4x8xf32>
    %120 = arith.mulf %117, %119 : vector<4x8xf32>
    %121 = vector.extract_strided_slice %5 {offsets = [0, 5], sizes = [8, 1], strides = [1, 1]} : vector<8x8xf32> to vector<8x1xf32>
    %122 = vector.extract_strided_slice %4 {offsets = [5, 0], sizes = [1, 8], strides = [1, 1]} : vector<8x8xf32> to vector<1x8xf32>
    %123 = vector.broadcast %121 : vector<8x1xf32> to vector<8x8xf32>
    %124 = vector.broadcast %122 : vector<1x8xf32> to vector<8x8xf32>
    %125 = arith.addf %123, %124 : vector<8x8xf32>
    %cst_36 = arith.constant 2.000000e-01 : f32
    %126 = vector.broadcast %cst_36 : f32 to vector<8x8xf32>
    %127 = arith.mulf %126, %125 : vector<8x8xf32>
    %128 = arith.maximumf %125, %127 : vector<8x8xf32>
    %129 = arith.addf %128, %3 : vector<8x8xf32>
    %cst_37 = arith.constant dense<0xFF800000> : vector<8xf32>
    %130 = vector.multi_reduction <maximumf>, %129, %cst_37 [0] : vector<8x8xf32> to vector<8xf32>
    %131 = vector.shape_cast %130 : vector<8xf32> to vector<1x8xf32>
    %132 = vector.broadcast %131 : vector<1x8xf32> to vector<8x8xf32>
    %133 = arith.subf %129, %132 : vector<8x8xf32>
    %134 = math.exp %133 : vector<8x8xf32>
    %cst_38 = arith.constant dense<0.000000e+00> : vector<8xf32>
    %135 = vector.multi_reduction <add>, %134, %cst_38 [0] : vector<8x8xf32> to vector<8xf32>
    %136 = vector.shape_cast %135 : vector<8xf32> to vector<1x8xf32>
    %c5 = arith.constant 5 : index
    %c0_39 = arith.constant 0 : index
    %c0_40 = arith.constant 0 : index
    %137 = vector.load %arg2[%c5, %c0_39, %c0_40] : memref<8x4x8xbf16, #tpu.memory_space<vmem>>, vector<1x4x8xbf16>
    %138 = vector.shape_cast %137 : vector<1x4x8xbf16> to vector<4x8xbf16>
    %139 = arith.truncf %134 : vector<8x8xf32> to vector<8x8xbf16>
    %cst_41 = arith.constant dense<0.000000e+00> : vector<4x8xf32>
    %140 = tpu.matmul %138, %139, %cst_41 {dimension_numbers = #tpu.dot_dimension_numbers<[1], [0], [0], [1], [0, 0, 1, 1], [], []>} : vector<4x8xbf16>, vector<8x8xbf16>, vector<4x8xf32> -> vector<4x8xf32>
    %141 = tpu.reciprocal %136 {approx = true} : vector<1x8xf32> -> vector<1x8xf32>
    %142 = vector.broadcast %141 : vector<1x8xf32> to vector<4x8xf32>
    %143 = arith.mulf %140, %142 : vector<4x8xf32>
    %144 = vector.extract_strided_slice %5 {offsets = [0, 6], sizes = [8, 1], strides = [1, 1]} : vector<8x8xf32> to vector<8x1xf32>
    %145 = vector.extract_strided_slice %4 {offsets = [6, 0], sizes = [1, 8], strides = [1, 1]} : vector<8x8xf32> to vector<1x8xf32>
    %146 = vector.broadcast %144 : vector<8x1xf32> to vector<8x8xf32>
    %147 = vector.broadcast %145 : vector<1x8xf32> to vector<8x8xf32>
    %148 = arith.addf %146, %147 : vector<8x8xf32>
    %cst_42 = arith.constant 2.000000e-01 : f32
    %149 = vector.broadcast %cst_42 : f32 to vector<8x8xf32>
    %150 = arith.mulf %149, %148 : vector<8x8xf32>
    %151 = arith.maximumf %148, %150 : vector<8x8xf32>
    %152 = arith.addf %151, %3 : vector<8x8xf32>
    %cst_43 = arith.constant dense<0xFF800000> : vector<8xf32>
    %153 = vector.multi_reduction <maximumf>, %152, %cst_43 [0] : vector<8x8xf32> to vector<8xf32>
    %154 = vector.shape_cast %153 : vector<8xf32> to vector<1x8xf32>
    %155 = vector.broadcast %154 : vector<1x8xf32> to vector<8x8xf32>
    %156 = arith.subf %152, %155 : vector<8x8xf32>
    %157 = math.exp %156 : vector<8x8xf32>
    %cst_44 = arith.constant dense<0.000000e+00> : vector<8xf32>
    %158 = vector.multi_reduction <add>, %157, %cst_44 [0] : vector<8x8xf32> to vector<8xf32>
    %159 = vector.shape_cast %158 : vector<8xf32> to vector<1x8xf32>
    %c6 = arith.constant 6 : index
    %c0_45 = arith.constant 0 : index
    %c0_46 = arith.constant 0 : index
    %160 = vector.load %arg2[%c6, %c0_45, %c0_46] : memref<8x4x8xbf16, #tpu.memory_space<vmem>>, vector<1x4x8xbf16>
    %161 = vector.shape_cast %160 : vector<1x4x8xbf16> to vector<4x8xbf16>
    %162 = arith.truncf %157 : vector<8x8xf32> to vector<8x8xbf16>
    %cst_47 = arith.constant dense<0.000000e+00> : vector<4x8xf32>
    %163 = tpu.matmul %161, %162, %cst_47 {dimension_numbers = #tpu.dot_dimension_numbers<[1], [0], [0], [1], [0, 0, 1, 1], [], []>} : vector<4x8xbf16>, vector<8x8xbf16>, vector<4x8xf32> -> vector<4x8xf32>
    %164 = tpu.reciprocal %159 {approx = true} : vector<1x8xf32> -> vector<1x8xf32>
    %165 = vector.broadcast %164 : vector<1x8xf32> to vector<4x8xf32>
    %166 = arith.mulf %163, %165 : vector<4x8xf32>
    %167 = vector.extract_strided_slice %5 {offsets = [0, 7], sizes = [8, 1], strides = [1, 1]} : vector<8x8xf32> to vector<8x1xf32>
    %168 = vector.extract_strided_slice %4 {offsets = [7, 0], sizes = [1, 8], strides = [1, 1]} : vector<8x8xf32> to vector<1x8xf32>
    %169 = vector.broadcast %167 : vector<8x1xf32> to vector<8x8xf32>
    %170 = vector.broadcast %168 : vector<1x8xf32> to vector<8x8xf32>
    %171 = arith.addf %169, %170 : vector<8x8xf32>
    %cst_48 = arith.constant 2.000000e-01 : f32
    %172 = vector.broadcast %cst_48 : f32 to vector<8x8xf32>
    %173 = arith.mulf %172, %171 : vector<8x8xf32>
    %174 = arith.maximumf %171, %173 : vector<8x8xf32>
    %175 = arith.addf %174, %3 : vector<8x8xf32>
    %cst_49 = arith.constant dense<0xFF800000> : vector<8xf32>
    %176 = vector.multi_reduction <maximumf>, %175, %cst_49 [0] : vector<8x8xf32> to vector<8xf32>
    %177 = vector.shape_cast %176 : vector<8xf32> to vector<1x8xf32>
    %178 = vector.broadcast %177 : vector<1x8xf32> to vector<8x8xf32>
    %179 = arith.subf %175, %178 : vector<8x8xf32>
    %180 = math.exp %179 : vector<8x8xf32>
    %cst_50 = arith.constant dense<0.000000e+00> : vector<8xf32>
    %181 = vector.multi_reduction <add>, %180, %cst_50 [0] : vector<8x8xf32> to vector<8xf32>
    %182 = vector.shape_cast %181 : vector<8xf32> to vector<1x8xf32>
    %c7 = arith.constant 7 : index
    %c0_51 = arith.constant 0 : index
    %c0_52 = arith.constant 0 : index
    %183 = vector.load %arg2[%c7, %c0_51, %c0_52] : memref<8x4x8xbf16, #tpu.memory_space<vmem>>, vector<1x4x8xbf16>
    %184 = vector.shape_cast %183 : vector<1x4x8xbf16> to vector<4x8xbf16>
    %185 = arith.truncf %180 : vector<8x8xf32> to vector<8x8xbf16>
    %cst_53 = arith.constant dense<0.000000e+00> : vector<4x8xf32>
    %186 = tpu.matmul %184, %185, %cst_53 {dimension_numbers = #tpu.dot_dimension_numbers<[1], [0], [0], [1], [0, 0, 1, 1], [], []>} : vector<4x8xbf16>, vector<8x8xbf16>, vector<4x8xf32> -> vector<4x8xf32>
    %187 = tpu.reciprocal %182 {approx = true} : vector<1x8xf32> -> vector<1x8xf32>
    %188 = vector.broadcast %187 : vector<1x8xf32> to vector<4x8xf32>
    %189 = arith.mulf %186, %188 : vector<4x8xf32>
    %190 = tpu.concatenate %28, %51, %74, %97, %120, %143, %166, %189 in 0 : vector<4x8xf32>, vector<4x8xf32>, vector<4x8xf32>, vector<4x8xf32>, vector<4x8xf32>, vector<4x8xf32>, vector<4x8xf32>, vector<4x8xf32> -> vector<32x8xf32>
    %191 = tpu.transpose %190, [1, 0] : vector<32x8xf32> -> vector<8x32xf32>
    %c0_54 = arith.constant 0 : index
    %c0_55 = arith.constant 0 : index
    %192 = vector.load %arg5[%c0_54, %c0_55] : memref<1x32xf32, #tpu.memory_space<vmem>>, vector<1x32xf32>
    %193 = vector.broadcast %192 : vector<1x32xf32> to vector<8x32xf32>
    %194 = arith.addf %191, %193 : vector<8x32xf32>
    %c0_56 = arith.constant 0 : index
    %c0_57 = arith.constant 0 : index
    %195 = vector.load %arg6[%c0_56, %c0_57] : memref<8x16xf32, #tpu.memory_space<vmem>>, vector<8x16xf32>
    %196 = arith.truncf %195 : vector<8x16xf32> to vector<8x16xbf16>
    %c0_58 = arith.constant 0 : index
    %c0_59 = arith.constant 0 : index
    %197 = vector.load %arg7[%c0_58, %c0_59] : memref<16x32xf32, #tpu.memory_space<vmem>>, vector<16x32xf32>
    %198 = arith.truncf %197 : vector<16x32xf32> to vector<16x32xbf16>
    %cst_60 = arith.constant dense<0.000000e+00> : vector<8x32xf32>
    %199 = tpu.matmul %196, %198, %cst_60 {dimension_numbers = #tpu.dot_dimension_numbers<[1], [0], [0], [1], [0, 0, 1, 1], [], []>} : vector<8x16xbf16>, vector<16x32xbf16>, vector<8x32xf32> -> vector<8x32xf32>
    %c0_61 = arith.constant 0 : index
    %c0_62 = arith.constant 0 : index
    %200 = vector.load %arg8[%c0_61, %c0_62] : memref<1x32xf32, #tpu.memory_space<vmem>>, vector<1x32xf32>
    %201 = vector.broadcast %200 : vector<1x32xf32> to vector<8x32xf32>
    %202 = arith.addf %199, %201 : vector<8x32xf32>
    %203 = arith.addf %194, %202 : vector<8x32xf32>
    %cst_63 = arith.constant dense<0.000000e+00> : vector<8xf32>
    %204 = vector.multi_reduction <add>, %203, %cst_63 [1] : vector<8x32xf32> to vector<8xf32>
    %205 = vector.shape_cast %204 : vector<8xf32> to vector<8x1xf32>
    %cst_64 = arith.constant 3.200000e+01 : f32
    %206 = vector.broadcast %cst_64 : f32 to vector<8x1xf32>
    %207 = arith.divf %205, %206 : vector<8x1xf32>
    %208 = vector.broadcast %207 : vector<8x1xf32> to vector<8x32xf32>
    %209 = arith.subf %203, %208 : vector<8x32xf32>
    %210 = arith.mulf %209, %209 : vector<8x32xf32>
    %cst_65 = arith.constant dense<0.000000e+00> : vector<8xf32>
    %211 = vector.multi_reduction <add>, %210, %cst_65 [1] : vector<8x32xf32> to vector<8xf32>
    %212 = vector.shape_cast %211 : vector<8xf32> to vector<8x1xf32>
    %cst_66 = arith.constant 3.200000e+01 : f32
    %213 = vector.broadcast %cst_66 : f32 to vector<8x1xf32>
    %214 = arith.divf %212, %213 : vector<8x1xf32>
    %215 = vector.broadcast %207 : vector<8x1xf32> to vector<8x32xf32>
    %216 = arith.subf %203, %215 : vector<8x32xf32>
    %cst_67 = arith.constant 9.99999974E-6 : f32
    %217 = vector.broadcast %cst_67 : f32 to vector<8x1xf32>
    %218 = arith.addf %214, %217 : vector<8x1xf32>
    %219 = math.rsqrt %218 : vector<8x1xf32>
    %220 = vector.broadcast %219 : vector<8x1xf32> to vector<8x32xf32>
    %221 = arith.mulf %216, %220 : vector<8x32xf32>
    %c0_68 = arith.constant 0 : index
    %c0_69 = arith.constant 0 : index
    %222 = vector.load %arg9[%c0_68, %c0_69] : memref<1x32xf32, #tpu.memory_space<vmem>>, vector<1x32xf32>
    %223 = vector.broadcast %222 : vector<1x32xf32> to vector<8x32xf32>
    %224 = arith.mulf %221, %223 : vector<8x32xf32>
    %c0_70 = arith.constant 0 : index
    %c0_71 = arith.constant 0 : index
    %225 = vector.load %arg10[%c0_70, %c0_71] : memref<1x32xf32, #tpu.memory_space<vmem>>, vector<1x32xf32>
    %226 = vector.broadcast %225 : vector<1x32xf32> to vector<8x32xf32>
    %227 = arith.addf %224, %226 : vector<8x32xf32>
    %cst_72 = arith.constant 0.000000e+00 : f32
    %228 = vector.broadcast %cst_72 : f32 to vector<8x32xf32>
    %229 = arith.cmpf ogt, %227, %228 : vector<8x32xf32>
    %cst_73 = arith.constant 0.000000e+00 : f32
    %230 = vector.broadcast %cst_73 : f32 to vector<8x32xf32>
    %231 = arith.minimumf %227, %230 : vector<8x32xf32>
    %232 = math.exp %231 : vector<8x32xf32>
    %cst_74 = arith.constant 1.000000e+00 : f32
    %233 = vector.broadcast %cst_74 : f32 to vector<8x32xf32>
    %234 = arith.subf %232, %233 : vector<8x32xf32>
    %235 = arith.select %229, %227, %234 : vector<8x32xi1>, vector<8x32xf32>
    %236 = arith.truncf %235 : vector<8x32xf32> to vector<8x32xbf16>
    %c0_75 = arith.constant 0 : index
    %c0_76 = arith.constant 0 : index
    %237 = vector.load %arg11[%c0_75, %c0_76] : memref<8x32xbf16, #tpu.memory_space<vmem>>, vector<8x32xbf16>
    tpu.vector_store %arg11[%c0_75, %c0_76], %236 {strides = array<i32>} : memref<8x32xbf16, #tpu.memory_space<vmem>>, vector<8x32xbf16>,
    return
  }
  func.func @transform_0(%arg0: i32) -> (i32, i32) {
    %c0_i32 = arith.constant 0 : i32
    %c0_i32_0 = arith.constant 0 : i32
    return %c0_i32, %arg0 : i32, i32
  }
  func.func @transform_1(%arg0: i32) -> (i32, i32, i32) {
    %c0_i32 = arith.constant 0 : i32
    %c0_i32_0 = arith.constant 0 : i32
    %c0_i32_1 = arith.constant 0 : i32
    %c0_i32_2 = arith.constant 0 : i32
    return %c0_i32, %c0_i32_0, %c0_i32_1 : i32, i32, i32
  }
  func.func @transform_2(%arg0: i32) -> (i32, i32) {
    %c0_i32 = arith.constant 0 : i32
    %c0_i32_0 = arith.constant 0 : i32
    return %c0_i32, %arg0 : i32, i32
  }
  func.func @transform_3(%arg0: i32) -> (i32, i32) {
    %c0_i32 = arith.constant 0 : i32
    %c0_i32_0 = arith.constant 0 : i32
    %c0_i32_1 = arith.constant 0 : i32
    return %c0_i32, %c0_i32_0 : i32, i32
  }
  func.func @transform_4(%arg0: i32) -> (i32, i32) {
    %c0_i32 = arith.constant 0 : i32
    %c0_i32_0 = arith.constant 0 : i32
    %c0_i32_1 = arith.constant 0 : i32
    return %c0_i32, %c0_i32_0 : i32, i32
  }
  func.func @transform_5(%arg0: i32) -> (i32, i32) {
    %c0_i32 = arith.constant 0 : i32
    %c0_i32_0 = arith.constant 0 : i32
    return %arg0, %c0_i32 : i32, i32
  }
  func.func @transform_6(%arg0: i32) -> (i32, i32) {
    %c0_i32 = arith.constant 0 : i32
    %c0_i32_0 = arith.constant 0 : i32
    %c0_i32_1 = arith.constant 0 : i32
    return %c0_i32, %c0_i32_0 : i32, i32
  }
  func.func @transform_7(%arg0: i32) -> (i32, i32) {
    %c0_i32 = arith.constant 0 : i32
    %c0_i32_0 = arith.constant 0 : i32
    %c0_i32_1 = arith.constant 0 : i32
    return %c0_i32, %c0_i32_0 : i32, i32
  }
  func.func @transform_8(%arg0: i32) -> (i32, i32) {
    %c0_i32 = arith.constant 0 : i32
    %c0_i32_0 = arith.constant 0 : i32
    %c0_i32_1 = arith.constant 0 : i32
    return %c0_i32, %c0_i32_0 : i32, i32
  }
  func.func @transform_9(%arg0: i32) -> (i32, i32) {
    %c0_i32 = arith.constant 0 : i32
    %c0_i32_0 = arith.constant 0 : i32
    %c0_i32_1 = arith.constant 0 : i32
    return %c0_i32, %c0_i32_0 : i32, i32
  }
  func.func @transform_10(%arg0: i32) -> (i32, i32) {
    %c0_i32 = arith.constant 0 : i32
    %c0_i32_0 = arith.constant 0 : i32
    return %arg0, %c0_i32 : i32, i32
  }
}

module attributes {stable_mosaic.version = 11 : i64} {
  func.func @_project_kernel(%arg0: i32, %arg1: memref<8x32xbf16, #tpu.memory_space<vmem>>, %arg2: memref<32x48xf32, #tpu.memory_space<vmem>>, %arg3: memref<8x32xbf16, #tpu.memory_space<vmem>>, %arg4: memref<8x8xf32, #tpu.memory_space<vmem>>, %arg5: memref<8x8xf32, #tpu.memory_space<vmem>>) attributes {dimension_semantics = [#tpu.dimension_semantics<parallel>], iteration_bounds = array<i64: 1>, scalar_prefetch = 0 : i64, scratch_operands = 0 : i64, tpu.core_type = #tpu.core_type<tc>, window_params = [{transform_indices = @transform_0, window_bounds = array<i64: 8, 32>}, {pipeline_mode = #tpu.pipeline_mode<synchronous>, transform_indices = @transform_1, window_bounds = array<i64: 32, 48>}, {transform_indices = @transform_2, window_bounds = array<i64: 8, 32>}, {transform_indices = @transform_3, window_bounds = array<i64: 8, 8>}, {transform_indices = @transform_4, window_bounds = array<i64: 8, 8>}]} {
    %c0 = arith.constant 0 : index
    %c0_0 = arith.constant 0 : index
    %0 = vector.load %arg1[%c0, %c0_0] : memref<8x32xbf16, #tpu.memory_space<vmem>>, vector<8x32xbf16>
    %c0_1 = arith.constant 0 : index
    %c0_2 = arith.constant 0 : index
    %1 = vector.load %arg2[%c0_1, %c0_2] : memref<32x48xf32, #tpu.memory_space<vmem>>, vector<32x48xf32>
    %2 = arith.truncf %1 : vector<32x48xf32> to vector<32x48xbf16>
    %cst = arith.constant dense<0.000000e+00> : vector<8x48xf32>
    %3 = tpu.matmul %0, %2, %cst {dimension_numbers = #tpu.dot_dimension_numbers<[1], [0], [0], [1], [0, 0, 1, 1], [], []>} : vector<8x32xbf16>, vector<32x48xbf16>, vector<8x48xf32> -> vector<8x48xf32>
    %4 = vector.extract_strided_slice %3 {offsets = [0, 0], sizes = [8, 32], strides = [1, 1]} : vector<8x48xf32> to vector<8x32xf32>
    %5 = arith.truncf %4 : vector<8x32xf32> to vector<8x32xbf16>
    %c0_3 = arith.constant 0 : index
    %c0_4 = arith.constant 0 : index
    %6 = vector.load %arg3[%c0_3, %c0_4] : memref<8x32xbf16, #tpu.memory_space<vmem>>, vector<8x32xbf16>
    tpu.vector_store %arg3[%c0_3, %c0_4], %5 {strides = array<i32>} : memref<8x32xbf16, #tpu.memory_space<vmem>>, vector<8x32xbf16>,
    %7 = vector.extract_strided_slice %3 {offsets = [0, 32], sizes = [8, 8], strides = [1, 1]} : vector<8x48xf32> to vector<8x8xf32>
    %c0_5 = arith.constant 0 : index
    %c0_6 = arith.constant 0 : index
    %8 = vector.load %arg4[%c0_5, %c0_6] : memref<8x8xf32, #tpu.memory_space<vmem>>, vector<8x8xf32>
    tpu.vector_store %arg4[%c0_5, %c0_6], %7 {strides = array<i32>} : memref<8x8xf32, #tpu.memory_space<vmem>>, vector<8x8xf32>,
    %9 = vector.extract_strided_slice %3 {offsets = [0, 40], sizes = [8, 8], strides = [1, 1]} : vector<8x48xf32> to vector<8x8xf32>
    %c0_7 = arith.constant 0 : index
    %c0_8 = arith.constant 0 : index
    %10 = vector.load %arg5[%c0_7, %c0_8] : memref<8x8xf32, #tpu.memory_space<vmem>>, vector<8x8xf32>
    tpu.vector_store %arg5[%c0_7, %c0_8], %9 {strides = array<i32>} : memref<8x8xf32, #tpu.memory_space<vmem>>, vector<8x8xf32>,
    return
  }
  func.func @transform_0(%arg0: i32) -> (i32, i32) {
    %c0_i32 = arith.constant 0 : i32
    %c0_i32_0 = arith.constant 0 : i32
    return %arg0, %c0_i32 : i32, i32
  }
  func.func @transform_1(%arg0: i32) -> (i32, i32) {
    %c0_i32 = arith.constant 0 : i32
    %c0_i32_0 = arith.constant 0 : i32
    %c0_i32_1 = arith.constant 0 : i32
    return %c0_i32, %c0_i32_0 : i32, i32
  }
  func.func @transform_2(%arg0: i32) -> (i32, i32) {
    %c0_i32 = arith.constant 0 : i32
    %c0_i32_0 = arith.constant 0 : i32
    return %arg0, %c0_i32 : i32, i32
  }
  func.func @transform_3(%arg0: i32) -> (i32, i32) {
    %c0_i32 = arith.constant 0 : i32
    %c0_i32_0 = arith.constant 0 : i32
    return %arg0, %c0_i32 : i32, i32
  }
  func.func @transform_4(%arg0: i32) -> (i32, i32) {
    %c0_i32 = arith.constant 0 : i32
    %c0_i32_0 = arith.constant 0 : i32
    return %arg0, %c0_i32 : i32, i32
  }
}

module attributes {stable_mosaic.version = 11 : i64} {
  func.func @_attention_kernel(%arg0: i32, %arg1: memref<8x8xi8, #tpu.memory_space<vmem>>, %arg2: memref<8x4x8xbf16, #tpu.memory_space<vmem>>, %arg3: memref<8x8xf32, #tpu.memory_space<vmem>>, %arg4: memref<8x8xf32, #tpu.memory_space<vmem>>, %arg5: memref<1x32xf32, #tpu.memory_space<vmem>>, %arg6: memref<8x32xbf16, #tpu.memory_space<vmem>>, %arg7: memref<1x32xf32, #tpu.memory_space<vmem>>, %arg8: memref<1x32xf32, #tpu.memory_space<vmem>>, %arg9: memref<8x32xbf16, #tpu.memory_space<vmem>>) attributes {dimension_semantics = [#tpu.dimension_semantics<parallel>], iteration_bounds = array<i64: 1>, scalar_prefetch = 0 : i64, scratch_operands = 0 : i64, tpu.core_type = #tpu.core_type<tc>, window_params = [{transform_indices = @transform_0, window_bounds = array<i64: 8, 8>}, {pipeline_mode = #tpu.pipeline_mode<synchronous>, transform_indices = @transform_1, window_bounds = array<i64: 8, 4, 8>}, {transform_indices = @transform_2, window_bounds = array<i64: 8, 8>}, {pipeline_mode = #tpu.pipeline_mode<synchronous>, transform_indices = @transform_3, window_bounds = array<i64: 8, 8>}, {pipeline_mode = #tpu.pipeline_mode<synchronous>, transform_indices = @transform_4, window_bounds = array<i64: 1, 32>}, {transform_indices = @transform_5, window_bounds = array<i64: 8, 32>}, {pipeline_mode = #tpu.pipeline_mode<synchronous>, transform_indices = @transform_6, window_bounds = array<i64: 1, 32>}, {pipeline_mode = #tpu.pipeline_mode<synchronous>, transform_indices = @transform_7, window_bounds = array<i64: 1, 32>}, {transform_indices = @transform_8, window_bounds = array<i64: 8, 32>}]} {
    %c0 = arith.constant 0 : index
    %c0_0 = arith.constant 0 : index
    %0 = vector.load %arg1[%c0, %c0_0] : memref<8x8xi8, #tpu.memory_space<vmem>>, vector<8x8xi8>
    %1 = arith.sitofp %0 : vector<8x8xi8> to vector<8x8xf32>
    %cst = arith.constant -1.000000e+09 : f32
    %2 = vector.broadcast %cst : f32 to vector<8x8xf32>
    %3 = arith.mulf %1, %2 : vector<8x8xf32>
    %c0_1 = arith.constant 0 : index
    %c0_2 = arith.constant 0 : index
    %4 = vector.load %arg3[%c0_1, %c0_2] : memref<8x8xf32, #tpu.memory_space<vmem>>, vector<8x8xf32>
    %c0_3 = arith.constant 0 : index
    %c0_4 = arith.constant 0 : index
    %5 = vector.load %arg4[%c0_3, %c0_4] : memref<8x8xf32, #tpu.memory_space<vmem>>, vector<8x8xf32>
    %6 = vector.extract_strided_slice %5 {offsets = [0, 0], sizes = [8, 1], strides = [1, 1]} : vector<8x8xf32> to vector<8x1xf32>
    %7 = vector.extract_strided_slice %4 {offsets = [0, 0], sizes = [1, 8], strides = [1, 1]} : vector<8x8xf32> to vector<1x8xf32>
    %8 = vector.broadcast %6 : vector<8x1xf32> to vector<8x8xf32>
    %9 = vector.broadcast %7 : vector<1x8xf32> to vector<8x8xf32>
    %10 = arith.addf %8, %9 : vector<8x8xf32>
    %cst_5 = arith.constant 2.000000e-01 : f32
    %11 = vector.broadcast %cst_5 : f32 to vector<8x8xf32>
    %12 = arith.mulf %11, %10 : vector<8x8xf32>
    %13 = arith.maximumf %10, %12 : vector<8x8xf32>
    %14 = arith.addf %13, %3 : vector<8x8xf32>
    %cst_6 = arith.constant dense<0xFF800000> : vector<8xf32>
    %15 = vector.multi_reduction <maximumf>, %14, %cst_6 [0] : vector<8x8xf32> to vector<8xf32>
    %16 = vector.shape_cast %15 : vector<8xf32> to vector<1x8xf32>
    %17 = vector.broadcast %16 : vector<1x8xf32> to vector<8x8xf32>
    %18 = arith.subf %14, %17 : vector<8x8xf32>
    %19 = math.exp %18 : vector<8x8xf32>
    %cst_7 = arith.constant dense<0.000000e+00> : vector<8xf32>
    %20 = vector.multi_reduction <add>, %19, %cst_7 [0] : vector<8x8xf32> to vector<8xf32>
    %21 = vector.shape_cast %20 : vector<8xf32> to vector<1x8xf32>
    %c0_8 = arith.constant 0 : index
    %c0_9 = arith.constant 0 : index
    %c0_10 = arith.constant 0 : index
    %22 = vector.load %arg2[%c0_8, %c0_9, %c0_10] : memref<8x4x8xbf16, #tpu.memory_space<vmem>>, vector<1x4x8xbf16>
    %23 = vector.shape_cast %22 : vector<1x4x8xbf16> to vector<4x8xbf16>
    %24 = arith.truncf %19 : vector<8x8xf32> to vector<8x8xbf16>
    %cst_11 = arith.constant dense<0.000000e+00> : vector<4x8xf32>
    %25 = tpu.matmul %23, %24, %cst_11 {dimension_numbers = #tpu.dot_dimension_numbers<[1], [0], [0], [1], [0, 0, 1, 1], [], []>} : vector<4x8xbf16>, vector<8x8xbf16>, vector<4x8xf32> -> vector<4x8xf32>
    %26 = tpu.reciprocal %21 {approx = true} : vector<1x8xf32> -> vector<1x8xf32>
    %27 = vector.broadcast %26 : vector<1x8xf32> to vector<4x8xf32>
    %28 = arith.mulf %25, %27 : vector<4x8xf32>
    %29 = vector.extract_strided_slice %5 {offsets = [0, 1], sizes = [8, 1], strides = [1, 1]} : vector<8x8xf32> to vector<8x1xf32>
    %30 = vector.extract_strided_slice %4 {offsets = [1, 0], sizes = [1, 8], strides = [1, 1]} : vector<8x8xf32> to vector<1x8xf32>
    %31 = vector.broadcast %29 : vector<8x1xf32> to vector<8x8xf32>
    %32 = vector.broadcast %30 : vector<1x8xf32> to vector<8x8xf32>
    %33 = arith.addf %31, %32 : vector<8x8xf32>
    %cst_12 = arith.constant 2.000000e-01 : f32
    %34 = vector.broadcast %cst_12 : f32 to vector<8x8xf32>
    %35 = arith.mulf %34, %33 : vector<8x8xf32>
    %36 = arith.maximumf %33, %35 : vector<8x8xf32>
    %37 = arith.addf %36, %3 : vector<8x8xf32>
    %cst_13 = arith.constant dense<0xFF800000> : vector<8xf32>
    %38 = vector.multi_reduction <maximumf>, %37, %cst_13 [0] : vector<8x8xf32> to vector<8xf32>
    %39 = vector.shape_cast %38 : vector<8xf32> to vector<1x8xf32>
    %40 = vector.broadcast %39 : vector<1x8xf32> to vector<8x8xf32>
    %41 = arith.subf %37, %40 : vector<8x8xf32>
    %42 = math.exp %41 : vector<8x8xf32>
    %cst_14 = arith.constant dense<0.000000e+00> : vector<8xf32>
    %43 = vector.multi_reduction <add>, %42, %cst_14 [0] : vector<8x8xf32> to vector<8xf32>
    %44 = vector.shape_cast %43 : vector<8xf32> to vector<1x8xf32>
    %c1 = arith.constant 1 : index
    %c0_15 = arith.constant 0 : index
    %c0_16 = arith.constant 0 : index
    %45 = vector.load %arg2[%c1, %c0_15, %c0_16] : memref<8x4x8xbf16, #tpu.memory_space<vmem>>, vector<1x4x8xbf16>
    %46 = vector.shape_cast %45 : vector<1x4x8xbf16> to vector<4x8xbf16>
    %47 = arith.truncf %42 : vector<8x8xf32> to vector<8x8xbf16>
    %cst_17 = arith.constant dense<0.000000e+00> : vector<4x8xf32>
    %48 = tpu.matmul %46, %47, %cst_17 {dimension_numbers = #tpu.dot_dimension_numbers<[1], [0], [0], [1], [0, 0, 1, 1], [], []>} : vector<4x8xbf16>, vector<8x8xbf16>, vector<4x8xf32> -> vector<4x8xf32>
    %49 = tpu.reciprocal %44 {approx = true} : vector<1x8xf32> -> vector<1x8xf32>
    %50 = vector.broadcast %49 : vector<1x8xf32> to vector<4x8xf32>
    %51 = arith.mulf %48, %50 : vector<4x8xf32>
    %52 = vector.extract_strided_slice %5 {offsets = [0, 2], sizes = [8, 1], strides = [1, 1]} : vector<8x8xf32> to vector<8x1xf32>
    %53 = vector.extract_strided_slice %4 {offsets = [2, 0], sizes = [1, 8], strides = [1, 1]} : vector<8x8xf32> to vector<1x8xf32>
    %54 = vector.broadcast %52 : vector<8x1xf32> to vector<8x8xf32>
    %55 = vector.broadcast %53 : vector<1x8xf32> to vector<8x8xf32>
    %56 = arith.addf %54, %55 : vector<8x8xf32>
    %cst_18 = arith.constant 2.000000e-01 : f32
    %57 = vector.broadcast %cst_18 : f32 to vector<8x8xf32>
    %58 = arith.mulf %57, %56 : vector<8x8xf32>
    %59 = arith.maximumf %56, %58 : vector<8x8xf32>
    %60 = arith.addf %59, %3 : vector<8x8xf32>
    %cst_19 = arith.constant dense<0xFF800000> : vector<8xf32>
    %61 = vector.multi_reduction <maximumf>, %60, %cst_19 [0] : vector<8x8xf32> to vector<8xf32>
    %62 = vector.shape_cast %61 : vector<8xf32> to vector<1x8xf32>
    %63 = vector.broadcast %62 : vector<1x8xf32> to vector<8x8xf32>
    %64 = arith.subf %60, %63 : vector<8x8xf32>
    %65 = math.exp %64 : vector<8x8xf32>
    %cst_20 = arith.constant dense<0.000000e+00> : vector<8xf32>
    %66 = vector.multi_reduction <add>, %65, %cst_20 [0] : vector<8x8xf32> to vector<8xf32>
    %67 = vector.shape_cast %66 : vector<8xf32> to vector<1x8xf32>
    %c2 = arith.constant 2 : index
    %c0_21 = arith.constant 0 : index
    %c0_22 = arith.constant 0 : index
    %68 = vector.load %arg2[%c2, %c0_21, %c0_22] : memref<8x4x8xbf16, #tpu.memory_space<vmem>>, vector<1x4x8xbf16>
    %69 = vector.shape_cast %68 : vector<1x4x8xbf16> to vector<4x8xbf16>
    %70 = arith.truncf %65 : vector<8x8xf32> to vector<8x8xbf16>
    %cst_23 = arith.constant dense<0.000000e+00> : vector<4x8xf32>
    %71 = tpu.matmul %69, %70, %cst_23 {dimension_numbers = #tpu.dot_dimension_numbers<[1], [0], [0], [1], [0, 0, 1, 1], [], []>} : vector<4x8xbf16>, vector<8x8xbf16>, vector<4x8xf32> -> vector<4x8xf32>
    %72 = tpu.reciprocal %67 {approx = true} : vector<1x8xf32> -> vector<1x8xf32>
    %73 = vector.broadcast %72 : vector<1x8xf32> to vector<4x8xf32>
    %74 = arith.mulf %71, %73 : vector<4x8xf32>
    %75 = vector.extract_strided_slice %5 {offsets = [0, 3], sizes = [8, 1], strides = [1, 1]} : vector<8x8xf32> to vector<8x1xf32>
    %76 = vector.extract_strided_slice %4 {offsets = [3, 0], sizes = [1, 8], strides = [1, 1]} : vector<8x8xf32> to vector<1x8xf32>
    %77 = vector.broadcast %75 : vector<8x1xf32> to vector<8x8xf32>
    %78 = vector.broadcast %76 : vector<1x8xf32> to vector<8x8xf32>
    %79 = arith.addf %77, %78 : vector<8x8xf32>
    %cst_24 = arith.constant 2.000000e-01 : f32
    %80 = vector.broadcast %cst_24 : f32 to vector<8x8xf32>
    %81 = arith.mulf %80, %79 : vector<8x8xf32>
    %82 = arith.maximumf %79, %81 : vector<8x8xf32>
    %83 = arith.addf %82, %3 : vector<8x8xf32>
    %cst_25 = arith.constant dense<0xFF800000> : vector<8xf32>
    %84 = vector.multi_reduction <maximumf>, %83, %cst_25 [0] : vector<8x8xf32> to vector<8xf32>
    %85 = vector.shape_cast %84 : vector<8xf32> to vector<1x8xf32>
    %86 = vector.broadcast %85 : vector<1x8xf32> to vector<8x8xf32>
    %87 = arith.subf %83, %86 : vector<8x8xf32>
    %88 = math.exp %87 : vector<8x8xf32>
    %cst_26 = arith.constant dense<0.000000e+00> : vector<8xf32>
    %89 = vector.multi_reduction <add>, %88, %cst_26 [0] : vector<8x8xf32> to vector<8xf32>
    %90 = vector.shape_cast %89 : vector<8xf32> to vector<1x8xf32>
    %c3 = arith.constant 3 : index
    %c0_27 = arith.constant 0 : index
    %c0_28 = arith.constant 0 : index
    %91 = vector.load %arg2[%c3, %c0_27, %c0_28] : memref<8x4x8xbf16, #tpu.memory_space<vmem>>, vector<1x4x8xbf16>
    %92 = vector.shape_cast %91 : vector<1x4x8xbf16> to vector<4x8xbf16>
    %93 = arith.truncf %88 : vector<8x8xf32> to vector<8x8xbf16>
    %cst_29 = arith.constant dense<0.000000e+00> : vector<4x8xf32>
    %94 = tpu.matmul %92, %93, %cst_29 {dimension_numbers = #tpu.dot_dimension_numbers<[1], [0], [0], [1], [0, 0, 1, 1], [], []>} : vector<4x8xbf16>, vector<8x8xbf16>, vector<4x8xf32> -> vector<4x8xf32>
    %95 = tpu.reciprocal %90 {approx = true} : vector<1x8xf32> -> vector<1x8xf32>
    %96 = vector.broadcast %95 : vector<1x8xf32> to vector<4x8xf32>
    %97 = arith.mulf %94, %96 : vector<4x8xf32>
    %98 = vector.extract_strided_slice %5 {offsets = [0, 4], sizes = [8, 1], strides = [1, 1]} : vector<8x8xf32> to vector<8x1xf32>
    %99 = vector.extract_strided_slice %4 {offsets = [4, 0], sizes = [1, 8], strides = [1, 1]} : vector<8x8xf32> to vector<1x8xf32>
    %100 = vector.broadcast %98 : vector<8x1xf32> to vector<8x8xf32>
    %101 = vector.broadcast %99 : vector<1x8xf32> to vector<8x8xf32>
    %102 = arith.addf %100, %101 : vector<8x8xf32>
    %cst_30 = arith.constant 2.000000e-01 : f32
    %103 = vector.broadcast %cst_30 : f32 to vector<8x8xf32>
    %104 = arith.mulf %103, %102 : vector<8x8xf32>
    %105 = arith.maximumf %102, %104 : vector<8x8xf32>
    %106 = arith.addf %105, %3 : vector<8x8xf32>
    %cst_31 = arith.constant dense<0xFF800000> : vector<8xf32>
    %107 = vector.multi_reduction <maximumf>, %106, %cst_31 [0] : vector<8x8xf32> to vector<8xf32>
    %108 = vector.shape_cast %107 : vector<8xf32> to vector<1x8xf32>
    %109 = vector.broadcast %108 : vector<1x8xf32> to vector<8x8xf32>
    %110 = arith.subf %106, %109 : vector<8x8xf32>
    %111 = math.exp %110 : vector<8x8xf32>
    %cst_32 = arith.constant dense<0.000000e+00> : vector<8xf32>
    %112 = vector.multi_reduction <add>, %111, %cst_32 [0] : vector<8x8xf32> to vector<8xf32>
    %113 = vector.shape_cast %112 : vector<8xf32> to vector<1x8xf32>
    %c4 = arith.constant 4 : index
    %c0_33 = arith.constant 0 : index
    %c0_34 = arith.constant 0 : index
    %114 = vector.load %arg2[%c4, %c0_33, %c0_34] : memref<8x4x8xbf16, #tpu.memory_space<vmem>>, vector<1x4x8xbf16>
    %115 = vector.shape_cast %114 : vector<1x4x8xbf16> to vector<4x8xbf16>
    %116 = arith.truncf %111 : vector<8x8xf32> to vector<8x8xbf16>
    %cst_35 = arith.constant dense<0.000000e+00> : vector<4x8xf32>
    %117 = tpu.matmul %115, %116, %cst_35 {dimension_numbers = #tpu.dot_dimension_numbers<[1], [0], [0], [1], [0, 0, 1, 1], [], []>} : vector<4x8xbf16>, vector<8x8xbf16>, vector<4x8xf32> -> vector<4x8xf32>
    %118 = tpu.reciprocal %113 {approx = true} : vector<1x8xf32> -> vector<1x8xf32>
    %119 = vector.broadcast %118 : vector<1x8xf32> to vector<4x8xf32>
    %120 = arith.mulf %117, %119 : vector<4x8xf32>
    %121 = vector.extract_strided_slice %5 {offsets = [0, 5], sizes = [8, 1], strides = [1, 1]} : vector<8x8xf32> to vector<8x1xf32>
    %122 = vector.extract_strided_slice %4 {offsets = [5, 0], sizes = [1, 8], strides = [1, 1]} : vector<8x8xf32> to vector<1x8xf32>
    %123 = vector.broadcast %121 : vector<8x1xf32> to vector<8x8xf32>
    %124 = vector.broadcast %122 : vector<1x8xf32> to vector<8x8xf32>
    %125 = arith.addf %123, %124 : vector<8x8xf32>
    %cst_36 = arith.constant 2.000000e-01 : f32
    %126 = vector.broadcast %cst_36 : f32 to vector<8x8xf32>
    %127 = arith.mulf %126, %125 : vector<8x8xf32>
    %128 = arith.maximumf %125, %127 : vector<8x8xf32>
    %129 = arith.addf %128, %3 : vector<8x8xf32>
    %cst_37 = arith.constant dense<0xFF800000> : vector<8xf32>
    %130 = vector.multi_reduction <maximumf>, %129, %cst_37 [0] : vector<8x8xf32> to vector<8xf32>
    %131 = vector.shape_cast %130 : vector<8xf32> to vector<1x8xf32>
    %132 = vector.broadcast %131 : vector<1x8xf32> to vector<8x8xf32>
    %133 = arith.subf %129, %132 : vector<8x8xf32>
    %134 = math.exp %133 : vector<8x8xf32>
    %cst_38 = arith.constant dense<0.000000e+00> : vector<8xf32>
    %135 = vector.multi_reduction <add>, %134, %cst_38 [0] : vector<8x8xf32> to vector<8xf32>
    %136 = vector.shape_cast %135 : vector<8xf32> to vector<1x8xf32>
    %c5 = arith.constant 5 : index
    %c0_39 = arith.constant 0 : index
    %c0_40 = arith.constant 0 : index
    %137 = vector.load %arg2[%c5, %c0_39, %c0_40] : memref<8x4x8xbf16, #tpu.memory_space<vmem>>, vector<1x4x8xbf16>
    %138 = vector.shape_cast %137 : vector<1x4x8xbf16> to vector<4x8xbf16>
    %139 = arith.truncf %134 : vector<8x8xf32> to vector<8x8xbf16>
    %cst_41 = arith.constant dense<0.000000e+00> : vector<4x8xf32>
    %140 = tpu.matmul %138, %139, %cst_41 {dimension_numbers = #tpu.dot_dimension_numbers<[1], [0], [0], [1], [0, 0, 1, 1], [], []>} : vector<4x8xbf16>, vector<8x8xbf16>, vector<4x8xf32> -> vector<4x8xf32>
    %141 = tpu.reciprocal %136 {approx = true} : vector<1x8xf32> -> vector<1x8xf32>
    %142 = vector.broadcast %141 : vector<1x8xf32> to vector<4x8xf32>
    %143 = arith.mulf %140, %142 : vector<4x8xf32>
    %144 = vector.extract_strided_slice %5 {offsets = [0, 6], sizes = [8, 1], strides = [1, 1]} : vector<8x8xf32> to vector<8x1xf32>
    %145 = vector.extract_strided_slice %4 {offsets = [6, 0], sizes = [1, 8], strides = [1, 1]} : vector<8x8xf32> to vector<1x8xf32>
    %146 = vector.broadcast %144 : vector<8x1xf32> to vector<8x8xf32>
    %147 = vector.broadcast %145 : vector<1x8xf32> to vector<8x8xf32>
    %148 = arith.addf %146, %147 : vector<8x8xf32>
    %cst_42 = arith.constant 2.000000e-01 : f32
    %149 = vector.broadcast %cst_42 : f32 to vector<8x8xf32>
    %150 = arith.mulf %149, %148 : vector<8x8xf32>
    %151 = arith.maximumf %148, %150 : vector<8x8xf32>
    %152 = arith.addf %151, %3 : vector<8x8xf32>
    %cst_43 = arith.constant dense<0xFF800000> : vector<8xf32>
    %153 = vector.multi_reduction <maximumf>, %152, %cst_43 [0] : vector<8x8xf32> to vector<8xf32>
    %154 = vector.shape_cast %153 : vector<8xf32> to vector<1x8xf32>
    %155 = vector.broadcast %154 : vector<1x8xf32> to vector<8x8xf32>
    %156 = arith.subf %152, %155 : vector<8x8xf32>
    %157 = math.exp %156 : vector<8x8xf32>
    %cst_44 = arith.constant dense<0.000000e+00> : vector<8xf32>
    %158 = vector.multi_reduction <add>, %157, %cst_44 [0] : vector<8x8xf32> to vector<8xf32>
    %159 = vector.shape_cast %158 : vector<8xf32> to vector<1x8xf32>
    %c6 = arith.constant 6 : index
    %c0_45 = arith.constant 0 : index
    %c0_46 = arith.constant 0 : index
    %160 = vector.load %arg2[%c6, %c0_45, %c0_46] : memref<8x4x8xbf16, #tpu.memory_space<vmem>>, vector<1x4x8xbf16>
    %161 = vector.shape_cast %160 : vector<1x4x8xbf16> to vector<4x8xbf16>
    %162 = arith.truncf %157 : vector<8x8xf32> to vector<8x8xbf16>
    %cst_47 = arith.constant dense<0.000000e+00> : vector<4x8xf32>
    %163 = tpu.matmul %161, %162, %cst_47 {dimension_numbers = #tpu.dot_dimension_numbers<[1], [0], [0], [1], [0, 0, 1, 1], [], []>} : vector<4x8xbf16>, vector<8x8xbf16>, vector<4x8xf32> -> vector<4x8xf32>
    %164 = tpu.reciprocal %159 {approx = true} : vector<1x8xf32> -> vector<1x8xf32>
    %165 = vector.broadcast %164 : vector<1x8xf32> to vector<4x8xf32>
    %166 = arith.mulf %163, %165 : vector<4x8xf32>
    %167 = vector.extract_strided_slice %5 {offsets = [0, 7], sizes = [8, 1], strides = [1, 1]} : vector<8x8xf32> to vector<8x1xf32>
    %168 = vector.extract_strided_slice %4 {offsets = [7, 0], sizes = [1, 8], strides = [1, 1]} : vector<8x8xf32> to vector<1x8xf32>
    %169 = vector.broadcast %167 : vector<8x1xf32> to vector<8x8xf32>
    %170 = vector.broadcast %168 : vector<1x8xf32> to vector<8x8xf32>
    %171 = arith.addf %169, %170 : vector<8x8xf32>
    %cst_48 = arith.constant 2.000000e-01 : f32
    %172 = vector.broadcast %cst_48 : f32 to vector<8x8xf32>
    %173 = arith.mulf %172, %171 : vector<8x8xf32>
    %174 = arith.maximumf %171, %173 : vector<8x8xf32>
    %175 = arith.addf %174, %3 : vector<8x8xf32>
    %cst_49 = arith.constant dense<0xFF800000> : vector<8xf32>
    %176 = vector.multi_reduction <maximumf>, %175, %cst_49 [0] : vector<8x8xf32> to vector<8xf32>
    %177 = vector.shape_cast %176 : vector<8xf32> to vector<1x8xf32>
    %178 = vector.broadcast %177 : vector<1x8xf32> to vector<8x8xf32>
    %179 = arith.subf %175, %178 : vector<8x8xf32>
    %180 = math.exp %179 : vector<8x8xf32>
    %cst_50 = arith.constant dense<0.000000e+00> : vector<8xf32>
    %181 = vector.multi_reduction <add>, %180, %cst_50 [0] : vector<8x8xf32> to vector<8xf32>
    %182 = vector.shape_cast %181 : vector<8xf32> to vector<1x8xf32>
    %c7 = arith.constant 7 : index
    %c0_51 = arith.constant 0 : index
    %c0_52 = arith.constant 0 : index
    %183 = vector.load %arg2[%c7, %c0_51, %c0_52] : memref<8x4x8xbf16, #tpu.memory_space<vmem>>, vector<1x4x8xbf16>
    %184 = vector.shape_cast %183 : vector<1x4x8xbf16> to vector<4x8xbf16>
    %185 = arith.truncf %180 : vector<8x8xf32> to vector<8x8xbf16>
    %cst_53 = arith.constant dense<0.000000e+00> : vector<4x8xf32>
    %186 = tpu.matmul %184, %185, %cst_53 {dimension_numbers = #tpu.dot_dimension_numbers<[1], [0], [0], [1], [0, 0, 1, 1], [], []>} : vector<4x8xbf16>, vector<8x8xbf16>, vector<4x8xf32> -> vector<4x8xf32>
    %187 = tpu.reciprocal %182 {approx = true} : vector<1x8xf32> -> vector<1x8xf32>
    %188 = vector.broadcast %187 : vector<1x8xf32> to vector<4x8xf32>
    %189 = arith.mulf %186, %188 : vector<4x8xf32>
    %190 = tpu.concatenate %28, %51, %74, %97, %120, %143, %166, %189 in 0 : vector<4x8xf32>, vector<4x8xf32>, vector<4x8xf32>, vector<4x8xf32>, vector<4x8xf32>, vector<4x8xf32>, vector<4x8xf32>, vector<4x8xf32> -> vector<32x8xf32>
    %191 = tpu.transpose %190, [1, 0] : vector<32x8xf32> -> vector<8x32xf32>
    %c0_54 = arith.constant 0 : index
    %c0_55 = arith.constant 0 : index
    %192 = vector.load %arg5[%c0_54, %c0_55] : memref<1x32xf32, #tpu.memory_space<vmem>>, vector<1x32xf32>
    %193 = vector.broadcast %192 : vector<1x32xf32> to vector<8x32xf32>
    %194 = arith.addf %191, %193 : vector<8x32xf32>
    %c0_56 = arith.constant 0 : index
    %c0_57 = arith.constant 0 : index
    %195 = vector.load %arg6[%c0_56, %c0_57] : memref<8x32xbf16, #tpu.memory_space<vmem>>, vector<8x32xbf16>
    %196 = arith.extf %195 : vector<8x32xbf16> to vector<8x32xf32>
    %197 = arith.addf %194, %196 : vector<8x32xf32>
    %cst_58 = arith.constant dense<0.000000e+00> : vector<8xf32>
    %198 = vector.multi_reduction <add>, %197, %cst_58 [1] : vector<8x32xf32> to vector<8xf32>
    %199 = vector.shape_cast %198 : vector<8xf32> to vector<8x1xf32>
    %cst_59 = arith.constant 3.200000e+01 : f32
    %200 = vector.broadcast %cst_59 : f32 to vector<8x1xf32>
    %201 = arith.divf %199, %200 : vector<8x1xf32>
    %202 = vector.broadcast %201 : vector<8x1xf32> to vector<8x32xf32>
    %203 = arith.subf %197, %202 : vector<8x32xf32>
    %204 = arith.mulf %203, %203 : vector<8x32xf32>
    %cst_60 = arith.constant dense<0.000000e+00> : vector<8xf32>
    %205 = vector.multi_reduction <add>, %204, %cst_60 [1] : vector<8x32xf32> to vector<8xf32>
    %206 = vector.shape_cast %205 : vector<8xf32> to vector<8x1xf32>
    %cst_61 = arith.constant 3.200000e+01 : f32
    %207 = vector.broadcast %cst_61 : f32 to vector<8x1xf32>
    %208 = arith.divf %206, %207 : vector<8x1xf32>
    %209 = vector.broadcast %201 : vector<8x1xf32> to vector<8x32xf32>
    %210 = arith.subf %197, %209 : vector<8x32xf32>
    %cst_62 = arith.constant 9.99999974E-6 : f32
    %211 = vector.broadcast %cst_62 : f32 to vector<8x1xf32>
    %212 = arith.addf %208, %211 : vector<8x1xf32>
    %213 = math.rsqrt %212 : vector<8x1xf32>
    %214 = vector.broadcast %213 : vector<8x1xf32> to vector<8x32xf32>
    %215 = arith.mulf %210, %214 : vector<8x32xf32>
    %c0_63 = arith.constant 0 : index
    %c0_64 = arith.constant 0 : index
    %216 = vector.load %arg7[%c0_63, %c0_64] : memref<1x32xf32, #tpu.memory_space<vmem>>, vector<1x32xf32>
    %217 = vector.broadcast %216 : vector<1x32xf32> to vector<8x32xf32>
    %218 = arith.mulf %215, %217 : vector<8x32xf32>
    %c0_65 = arith.constant 0 : index
    %c0_66 = arith.constant 0 : index
    %219 = vector.load %arg8[%c0_65, %c0_66] : memref<1x32xf32, #tpu.memory_space<vmem>>, vector<1x32xf32>
    %220 = vector.broadcast %219 : vector<1x32xf32> to vector<8x32xf32>
    %221 = arith.addf %218, %220 : vector<8x32xf32>
    %cst_67 = arith.constant 0.000000e+00 : f32
    %222 = vector.broadcast %cst_67 : f32 to vector<8x32xf32>
    %223 = arith.cmpf ogt, %221, %222 : vector<8x32xf32>
    %cst_68 = arith.constant 0.000000e+00 : f32
    %224 = vector.broadcast %cst_68 : f32 to vector<8x32xf32>
    %225 = arith.minimumf %221, %224 : vector<8x32xf32>
    %226 = math.exp %225 : vector<8x32xf32>
    %cst_69 = arith.constant 1.000000e+00 : f32
    %227 = vector.broadcast %cst_69 : f32 to vector<8x32xf32>
    %228 = arith.subf %226, %227 : vector<8x32xf32>
    %229 = arith.select %223, %221, %228 : vector<8x32xi1>, vector<8x32xf32>
    %230 = arith.truncf %229 : vector<8x32xf32> to vector<8x32xbf16>
    %c0_70 = arith.constant 0 : index
    %c0_71 = arith.constant 0 : index
    %231 = vector.load %arg9[%c0_70, %c0_71] : memref<8x32xbf16, #tpu.memory_space<vmem>>, vector<8x32xbf16>
    tpu.vector_store %arg9[%c0_70, %c0_71], %230 {strides = array<i32>} : memref<8x32xbf16, #tpu.memory_space<vmem>>, vector<8x32xbf16>,
    return
  }
  func.func @transform_0(%arg0: i32) -> (i32, i32) {
    %c0_i32 = arith.constant 0 : i32
    %c0_i32_0 = arith.constant 0 : i32
    return %c0_i32, %arg0 : i32, i32
  }
  func.func @transform_1(%arg0: i32) -> (i32, i32, i32) {
    %c0_i32 = arith.constant 0 : i32
    %c0_i32_0 = arith.constant 0 : i32
    %c0_i32_1 = arith.constant 0 : i32
    %c0_i32_2 = arith.constant 0 : i32
    return %c0_i32, %c0_i32_0, %c0_i32_1 : i32, i32, i32
  }
  func.func @transform_2(%arg0: i32) -> (i32, i32) {
    %c0_i32 = arith.constant 0 : i32
    %c0_i32_0 = arith.constant 0 : i32
    return %c0_i32, %arg0 : i32, i32
  }
  func.func @transform_3(%arg0: i32) -> (i32, i32) {
    %c0_i32 = arith.constant 0 : i32
    %c0_i32_0 = arith.constant 0 : i32
    %c0_i32_1 = arith.constant 0 : i32
    return %c0_i32, %c0_i32_0 : i32, i32
  }
  func.func @transform_4(%arg0: i32) -> (i32, i32) {
    %c0_i32 = arith.constant 0 : i32
    %c0_i32_0 = arith.constant 0 : i32
    %c0_i32_1 = arith.constant 0 : i32
    return %c0_i32, %c0_i32_0 : i32, i32
  }
  func.func @transform_5(%arg0: i32) -> (i32, i32) {
    %c0_i32 = arith.constant 0 : i32
    %c0_i32_0 = arith.constant 0 : i32
    return %arg0, %c0_i32 : i32, i32
  }
  func.func @transform_6(%arg0: i32) -> (i32, i32) {
    %c0_i32 = arith.constant 0 : i32
    %c0_i32_0 = arith.constant 0 : i32
    %c0_i32_1 = arith.constant 0 : i32
    return %c0_i32, %c0_i32_0 : i32, i32
  }
  func.func @transform_7(%arg0: i32) -> (i32, i32) {
    %c0_i32 = arith.constant 0 : i32
    %c0_i32_0 = arith.constant 0 : i32
    %c0_i32_1 = arith.constant 0 : i32
    return %c0_i32, %c0_i32_0 : i32, i32
  }
  func.func @transform_8(%arg0: i32) -> (i32, i32) {
    %c0_i32 = arith.constant 0 : i32
    %c0_i32_0 = arith.constant 0 : i32
    return %arg0, %c0_i32 : i32, i32
  }
}

module attributes {stable_mosaic.version = 11 : i64} {
  func.func @_project_kernel(%arg0: i32, %arg1: memref<8x32xbf16, #tpu.memory_space<vmem>>, %arg2: memref<32x10xf32, #tpu.memory_space<vmem>>, %arg3: memref<8x8xbf16, #tpu.memory_space<vmem>>, %arg4: memref<8x1xf32, #tpu.memory_space<vmem>>, %arg5: memref<8x1xf32, #tpu.memory_space<vmem>>) attributes {dimension_semantics = [#tpu.dimension_semantics<parallel>], iteration_bounds = array<i64: 1>, scalar_prefetch = 0 : i64, scratch_operands = 0 : i64, tpu.core_type = #tpu.core_type<tc>, window_params = [{transform_indices = @transform_0, window_bounds = array<i64: 8, 32>}, {pipeline_mode = #tpu.pipeline_mode<synchronous>, transform_indices = @transform_1, window_bounds = array<i64: 32, 10>}, {transform_indices = @transform_2, window_bounds = array<i64: 8, 8>}, {transform_indices = @transform_3, window_bounds = array<i64: 8, 1>}, {transform_indices = @transform_4, window_bounds = array<i64: 8, 1>}]} {
    %c0 = arith.constant 0 : index
    %c0_0 = arith.constant 0 : index
    %0 = vector.load %arg1[%c0, %c0_0] : memref<8x32xbf16, #tpu.memory_space<vmem>>, vector<8x32xbf16>
    %c0_1 = arith.constant 0 : index
    %c0_2 = arith.constant 0 : index
    %1 = vector.load %arg2[%c0_1, %c0_2] : memref<32x10xf32, #tpu.memory_space<vmem>>, vector<32x10xf32>
    %2 = arith.truncf %1 : vector<32x10xf32> to vector<32x10xbf16>
    %cst = arith.constant dense<0.000000e+00> : vector<8x10xf32>
    %3 = tpu.matmul %0, %2, %cst {dimension_numbers = #tpu.dot_dimension_numbers<[1], [0], [0], [1], [0, 0, 1, 1], [], []>} : vector<8x32xbf16>, vector<32x10xbf16>, vector<8x10xf32> -> vector<8x10xf32>
    %4 = vector.extract_strided_slice %3 {offsets = [0, 0], sizes = [8, 8], strides = [1, 1]} : vector<8x10xf32> to vector<8x8xf32>
    %5 = arith.truncf %4 : vector<8x8xf32> to vector<8x8xbf16>
    %c0_3 = arith.constant 0 : index
    %c0_4 = arith.constant 0 : index
    %6 = vector.load %arg3[%c0_3, %c0_4] : memref<8x8xbf16, #tpu.memory_space<vmem>>, vector<8x8xbf16>
    tpu.vector_store %arg3[%c0_3, %c0_4], %5 {strides = array<i32>} : memref<8x8xbf16, #tpu.memory_space<vmem>>, vector<8x8xbf16>,
    %7 = vector.extract_strided_slice %3 {offsets = [0, 8], sizes = [8, 1], strides = [1, 1]} : vector<8x10xf32> to vector<8x1xf32>
    %c0_5 = arith.constant 0 : index
    %c0_6 = arith.constant 0 : index
    %8 = vector.load %arg4[%c0_5, %c0_6] : memref<8x1xf32, #tpu.memory_space<vmem>>, vector<8x1xf32>
    tpu.vector_store %arg4[%c0_5, %c0_6], %7 {strides = array<i32>} : memref<8x1xf32, #tpu.memory_space<vmem>>, vector<8x1xf32>,
    %9 = vector.extract_strided_slice %3 {offsets = [0, 9], sizes = [8, 1], strides = [1, 1]} : vector<8x10xf32> to vector<8x1xf32>
    %c0_7 = arith.constant 0 : index
    %c0_8 = arith.constant 0 : index
    %10 = vector.load %arg5[%c0_7, %c0_8] : memref<8x1xf32, #tpu.memory_space<vmem>>, vector<8x1xf32>
    tpu.vector_store %arg5[%c0_7, %c0_8], %9 {strides = array<i32>} : memref<8x1xf32, #tpu.memory_space<vmem>>, vector<8x1xf32>,
    return
  }
  func.func @transform_0(%arg0: i32) -> (i32, i32) {
    %c0_i32 = arith.constant 0 : i32
    %c0_i32_0 = arith.constant 0 : i32
    return %arg0, %c0_i32 : i32, i32
  }
  func.func @transform_1(%arg0: i32) -> (i32, i32) {
    %c0_i32 = arith.constant 0 : i32
    %c0_i32_0 = arith.constant 0 : i32
    %c0_i32_1 = arith.constant 0 : i32
    return %c0_i32, %c0_i32_0 : i32, i32
  }
  func.func @transform_2(%arg0: i32) -> (i32, i32) {
    %c0_i32 = arith.constant 0 : i32
    %c0_i32_0 = arith.constant 0 : i32
    return %arg0, %c0_i32 : i32, i32
  }
  func.func @transform_3(%arg0: i32) -> (i32, i32) {
    %c0_i32 = arith.constant 0 : i32
    %c0_i32_0 = arith.constant 0 : i32
    return %arg0, %c0_i32 : i32, i32
  }
  func.func @transform_4(%arg0: i32) -> (i32, i32) {
    %c0_i32 = arith.constant 0 : i32
    %c0_i32_0 = arith.constant 0 : i32
    return %arg0, %c0_i32 : i32, i32
  }
}

module attributes {stable_mosaic.version = 11 : i64} {
  func.func @_attention_kernel(%arg0: i32, %arg1: memref<8x8xi8, #tpu.memory_space<vmem>>, %arg2: memref<1x8x8xbf16, #tpu.memory_space<vmem>>, %arg3: memref<1x8xf32, #tpu.memory_space<vmem>>, %arg4: memref<8x1xf32, #tpu.memory_space<vmem>>, %arg5: memref<1x8xf32, #tpu.memory_space<vmem>>, %arg6: memref<8x8xf32, #tpu.memory_space<vmem>>) attributes {dimension_semantics = [#tpu.dimension_semantics<parallel>], iteration_bounds = array<i64: 1>, scalar_prefetch = 0 : i64, scratch_operands = 0 : i64, tpu.core_type = #tpu.core_type<tc>, window_params = [{transform_indices = @transform_0, window_bounds = array<i64: 8, 8>}, {pipeline_mode = #tpu.pipeline_mode<synchronous>, transform_indices = @transform_1, window_bounds = array<i64: 1, 8, 8>}, {transform_indices = @transform_2, window_bounds = array<i64: 1, 8>}, {pipeline_mode = #tpu.pipeline_mode<synchronous>, transform_indices = @transform_3, window_bounds = array<i64: 8, 1>}, {pipeline_mode = #tpu.pipeline_mode<synchronous>, transform_indices = @transform_4, window_bounds = array<i64: 1, 8>}, {transform_indices = @transform_5, window_bounds = array<i64: 8, 8>}]} {
    %c0 = arith.constant 0 : index
    %c0_0 = arith.constant 0 : index
    %0 = vector.load %arg1[%c0, %c0_0] : memref<8x8xi8, #tpu.memory_space<vmem>>, vector<8x8xi8>
    %1 = arith.sitofp %0 : vector<8x8xi8> to vector<8x8xf32>
    %cst = arith.constant -1.000000e+09 : f32
    %2 = vector.broadcast %cst : f32 to vector<8x8xf32>
    %3 = arith.mulf %1, %2 : vector<8x8xf32>
    %c0_1 = arith.constant 0 : index
    %c0_2 = arith.constant 0 : index
    %4 = vector.load %arg3[%c0_1, %c0_2] : memref<1x8xf32, #tpu.memory_space<vmem>>, vector<1x8xf32>
    %c0_3 = arith.constant 0 : index
    %c0_4 = arith.constant 0 : index
    %5 = vector.load %arg4[%c0_3, %c0_4] : memref<8x1xf32, #tpu.memory_space<vmem>>, vector<8x1xf32>
    %6 = vector.broadcast %5 : vector<8x1xf32> to vector<8x8xf32>
    %7 = vector.broadcast %4 : vector<1x8xf32> to vector<8x8xf32>
    %8 = arith.addf %6, %7 : vector<8x8xf32>
    %cst_5 = arith.constant 2.000000e-01 : f32
    %9 = vector.broadcast %cst_5 : f32 to vector<8x8xf32>
    %10 = arith.mulf %9, %8 : vector<8x8xf32>
    %11 = arith.maximumf %8, %10 : vector<8x8xf32>
    %12 = arith.addf %11, %3 : vector<8x8xf32>
    %cst_6 = arith.constant dense<0xFF800000> : vector<8xf32>
    %13 = vector.multi_reduction <maximumf>, %12, %cst_6 [0] : vector<8x8xf32> to vector<8xf32>
    %14 = vector.shape_cast %13 : vector<8xf32> to vector<1x8xf32>
    %15 = vector.broadcast %14 : vector<1x8xf32> to vector<8x8xf32>
    %16 = arith.subf %12, %15 : vector<8x8xf32>
    %17 = math.exp %16 : vector<8x8xf32>
    %cst_7 = arith.constant dense<0.000000e+00> : vector<8xf32>
    %18 = vector.multi_reduction <add>, %17, %cst_7 [0] : vector<8x8xf32> to vector<8xf32>
    %19 = vector.shape_cast %18 : vector<8xf32> to vector<1x8xf32>
    %c0_8 = arith.constant 0 : index
    %c0_9 = arith.constant 0 : index
    %c0_10 = arith.constant 0 : index
    %20 = vector.load %arg2[%c0_8, %c0_9, %c0_10] : memref<1x8x8xbf16, #tpu.memory_space<vmem>>, vector<1x8x8xbf16>
    %21 = vector.shape_cast %20 : vector<1x8x8xbf16> to vector<8x8xbf16>
    %22 = arith.truncf %17 : vector<8x8xf32> to vector<8x8xbf16>
    %cst_11 = arith.constant dense<0.000000e+00> : vector<8x8xf32>
    %23 = tpu.matmul %21, %22, %cst_11 {dimension_numbers = #tpu.dot_dimension_numbers<[1], [0], [0], [1], [0, 0, 1, 1], [], []>} : vector<8x8xbf16>, vector<8x8xbf16>, vector<8x8xf32> -> vector<8x8xf32>
    %24 = tpu.reciprocal %19 {approx = true} : vector<1x8xf32> -> vector<1x8xf32>
    %25 = vector.broadcast %24 : vector<1x8xf32> to vector<8x8xf32>
    %26 = arith.mulf %23, %25 : vector<8x8xf32>
    %27 = tpu.transpose %26, [1, 0] : vector<8x8xf32> -> vector<8x8xf32>
    %c0_12 = arith.constant 0 : index
    %c0_13 = arith.constant 0 : index
    %28 = vector.load %arg5[%c0_12, %c0_13] : memref<1x8xf32, #tpu.memory_space<vmem>>, vector<1x8xf32>
    %29 = vector.broadcast %28 : vector<1x8xf32> to vector<8x8xf32>
    %30 = arith.addf %27, %29 : vector<8x8xf32>
    %c0_14 = arith.constant 0 : index
    %c0_15 = arith.constant 0 : index
    %31 = vector.load %arg6[%c0_14, %c0_15] : memref<8x8xf32, #tpu.memory_space<vmem>>, vector<8x8xf32>
    tpu.vector_store %arg6[%c0_14, %c0_15], %30 {strides = array<i32>} : memref<8x8xf32, #tpu.memory_space<vmem>>, vector<8x8xf32>,
    return
  }
  func.func @transform_0(%arg0: i32) -> (i32, i32) {
    %c0_i32 = arith.constant 0 : i32
    %c0_i32_0 = arith.constant 0 : i32
    return %c0_i32, %arg0 : i32, i32
  }
  func.func @transform_1(%arg0: i32) -> (i32, i32, i32) {
    %c0_i32 = arith.constant 0 : i32
    %c0_i32_0 = arith.constant 0 : i32
    %c0_i32_1 = arith.constant 0 : i32
    %c0_i32_2 = arith.constant 0 : i32
    return %c0_i32, %c0_i32_0, %c0_i32_1 : i32, i32, i32
  }
  func.func @transform_2(%arg0: i32) -> (i32, i32) {
    %c0_i32 = arith.constant 0 : i32
    %c0_i32_0 = arith.constant 0 : i32
    return %c0_i32, %arg0 : i32, i32
  }
  func.func @transform_3(%arg0: i32) -> (i32, i32) {
    %c0_i32 = arith.constant 0 : i32
    %c0_i32_0 = arith.constant 0 : i32
    %c0_i32_1 = arith.constant 0 : i32
    return %c0_i32, %c0_i32_0 : i32, i32
  }
  func.func @transform_4(%arg0: i32) -> (i32, i32) {
    %c0_i32 = arith.constant 0 : i32
    %c0_i32_0 = arith.constant 0 : i32
    %c0_i32_1 = arith.constant 0 : i32
    return %c0_i32, %c0_i32_0 : i32, i32
  }
  func.func @transform_5(%arg0: i32) -> (i32, i32) {
    %c0_i32 = arith.constant 0 : i32
    %c0_i32_0 = arith.constant 0 : i32
    return %arg0, %c0_i32 : i32, i32
  }
}

</mosaic_0001>

<llo_original>
// kernel: resgat_forward.6
$region0: #{resgat_forward.6}
  #allocation0 [shape = 'u32[]', space=smem, size = 0x4, offset = 0x4, fixed_abs, tag = 'smem constant byte address 0x4 - core index']
  #allocation1 [shape = 'u32[144,128]{1,0:T(1,128)}', space=vmem, size = 0x12000, scoped, tag = 'internal scratch']
  %s0 = inlined_call_operand.vmem [shape: f32[8,16], index: 0, kind: input, shape index: {}]
  %s1 = inlined_call_operand.vmem [shape: f32[16,48], index: 1, kind: input, shape index: {}]
  %s2 = inlined_call_operand.vmem [shape: bf16[8,32], index: 2, kind: output, shape index: {0}]
  %s3 = inlined_call_operand.vmem [shape: f32[8,8], index: 3, kind: output, shape index: {1}]
  %s4 = inlined_call_operand.vmem [shape: f32[8,8], index: 4, kind: output, shape index: {2}]
  %5 = xla_tuple %s2, %s3, %s4
  %s6 = sld [smem:[#allocation0]]
  $region34: #{resgat_forward.6} parent=0
    _
  %s8 = ssub.s32 1, %s6
  %s9 = scalar_select 0, %s8, %s6
  // Predicated region
  $region2: #{resgat_forward.6} parent=0 // pred_check
    _
  $region3: #{resgat_forward.6} parent=0 // pred_check_branch
    %11 = sbr.rel (0) target = $region5
  $region4: #{resgat_forward.6} parent=0 // pred_region
    _
  $region5: #{resgat_forward.6} parent=0 // pred_fallthru
    _
  // Predicated region
  $region6: #{resgat_forward.6} parent=0 // pred_check
    _
  $region7: #{resgat_forward.6} parent=0 // pred_check_branch
    %13 = sbr.rel (0) target = $region9
  $region8: #{resgat_forward.6} parent=0 // pred_region
    _
  $region9: #{resgat_forward.6} parent=0 // pred_fallthru
    _
  %v15 = vld [vmem:[%s0] sm:$0xff]
  %v16 = vpack.c.bf16 %v15, %v15
  %v17 = vld [vmem:[%s1] sm:$0xff]
  %v18 = vld [vmem:[%s1 + $0x8] sm:$0xff]
  %v19 = vpack.c.bf16 %v18, %v17
  %vm20 = vcmask 130048
  %v22 = vsel %vm20, %v16, 0
  %24 = vmatprep.subr.bf16.mxu0 0
  %25 = vmatpush1.bf16.msra.mxu0 0
  %26 = vmatprep.subr.bf16.mxu0 0
  %27 = vmatpush1.bf16.msra.mxu0 0
  %28 = vmatprep.subr.bf16.mxu0 0
  %29 = vmatpush1.bf16.msra.mxu0 0
  %30 = vmatprep.subr.bf16.mxu0 0
  %31 = vmatpush1.bf16.msra.mxu0 0
  %32 = vmatprep.subr.bf16.mxu0 0
  %33 = vmatpush1.bf16.msra.mxu0 0
  %34 = vmatprep.subr.bf16.mxu0 0
  %35 = vmatpush1.bf16.msra.mxu0 0
  %36 = vmatprep.subr.bf16.mxu0 0
  %37 = vmatpush1.bf16.msra.mxu0 0
  %38 = vmatprep.subr.bf16.mxu0 0
  %39 = vmatpush1.bf16.msra.mxu0 %v19
  %40 = vmatprep.subr.bf16.mxu0 0
  %41 = vmatpush2.bf16.msra.mxu0 0
  %42 = vmatprep.subr.bf16.mxu0 0
  %43 = vmatpush2.bf16.msra.mxu0 0
  %44 = vmatprep.subr.bf16.mxu0 0
  %45 = vmatpush2.bf16.msra.mxu0 0
  %46 = vmatprep.subr.bf16.mxu0 0
  %47 = vmatpush2.bf16.msra.mxu0 0
  %48 = vmatprep.subr.bf16.mxu0 0
  %49 = vmatpush2.bf16.msra.mxu0 0
  %50 = vmatprep.subr.bf16.mxu0 0
  %51 = vmatpush2.bf16.msra.mxu0 0
  %52 = vmatprep.subr.bf16.mxu0 0
  %53 = vmatpush2.bf16.msra.mxu0 0
  %54 = vmatprep.subr.bf16.mxu0 0
  %55 = vmatpush2.bf16.msra.mxu0 0
  %56 = vmatprep.mubr.bf16.mxu0 0
  %57 = vmatmul.mubr.bf16.gmra.mxu0 %v22
  %v58 = vpop.f32.mrf.mxu0
  %v59 = vadd.f32 0.0, %v58
  %v60 = vpop.f32.mrf.mxu0
  %v61 = vpop.f32.mrf.mxu0
  %v62 = vpop.f32.mrf.mxu0
  %63 = vdwg.mxu0
  %v64 = vpack.c.bf16 %v59, %v59
  %vm65 = vcmask 257024
  %66 = vst.msk [vmem:[%s2] sm:$0xf] %vm65, %v64
  %68 = vrot.lane.b32.xlu0 %v59, 96
  %v69 = vpop.permute.xlu0 %68
  %vm71 = vcmask 64512
  %72 = vst.msk [vmem:[%s3] sm:$0xff] %vm71, %v69
  %73 = vrot.lane.b32.xlu0 %v59, 88
  %v74 = vpop.permute.xlu0 %73
  %76 = vst.msk [vmem:[%s4] sm:$0xff] %vm71, %v74
  // Predicated region
  $region10: #{resgat_forward.6} parent=0 // pred_check
    _
  $region11: #{resgat_forward.6} parent=0 // pred_check_branch
    %78 = sbr.rel (0) target = $region13
  $region12: #{resgat_forward.6} parent=0 // pred_region
    _
  $region13: #{resgat_forward.6} parent=0 // pred_fallthru
    _
  // Predicated region
  $region14: #{resgat_forward.6} parent=0 // pred_check
    _
  $region15: #{resgat_forward.6} parent=0 // pred_check_branch
    %80 = sbr.rel (0) target = $region17
  $region16: #{resgat_forward.6} parent=0 // pred_region
    _
  $region17: #{resgat_forward.6} parent=0 // pred_fallthru
    _
  // Predicated region
  $region18: #{resgat_forward.6} parent=0 // pred_check
    _
  $region19: #{resgat_forward.6} parent=0 // pred_check_branch
    %82 = sbr.rel (0) target = $region21
  $region20: #{resgat_forward.6} parent=0 // pred_region
    _
  $region21: #{resgat_forward.6} parent=0 // pred_fallthru
    _
  // Predicated region
  $region22: #{resgat_forward.6} parent=0 // pred_check
    _
  $region23: #{resgat_forward.6} parent=0 // pred_check_branch
    %84 = sbr.rel (0) target = $region25
  $region24: #{resgat_forward.6} parent=0 // pred_region
    _
  $region25: #{resgat_forward.6} parent=0 // pred_fallthru
    _
  // Predicated region
  $region26: #{resgat_forward.6} parent=0 // pred_check
    _
  $region27: #{resgat_forward.6} parent=0 // pred_check_branch
    %86 = sbr.rel (0) target = $region29
  $region28: #{resgat_forward.6} parent=0 // pred_region
    _
  $region29: #{resgat_forward.6} parent=0 // pred_fallthru
    _
  // Predicated region
  $region30: #{resgat_forward.6} parent=0 // pred_check
    _
  $region31: #{resgat_forward.6} parent=0 // pred_check_branch
    %88 = sbr.rel (0) target = $region33
  $region32: #{resgat_forward.6} parent=0 // pred_region
    _
  $region33: #{resgat_forward.6} parent=0 // pred_fallthru
    _

// kernel: resgat_forward.8
$region0: #{resgat_forward.8}
  #allocation0 [shape = 'u32[]', space=smem, size = 0x4, offset = 0x4, fixed_abs, tag = 'smem constant byte address 0x4 - core index']
  #allocation1 [shape = 'u32[144,128]{1,0:T(1,128)}', space=vmem, size = 0x12000, scoped, tag = 'internal scratch']
  %s0 = inlined_call_operand.vmem [shape: bf16[8,32], index: 0, kind: input, shape index: {}]
  %s1 = inlined_call_operand.vmem [shape: f32[32,48], index: 1, kind: input, shape index: {}]
  %s2 = inlined_call_operand.vmem [shape: bf16[8,32], index: 2, kind: output, shape index: {0}]
  %s3 = inlined_call_operand.vmem [shape: f32[8,8], index: 3, kind: output, shape index: {1}]
  %s4 = inlined_call_operand.vmem [shape: f32[8,8], index: 4, kind: output, shape index: {2}]
  %5 = xla_tuple %s2, %s3, %s4
  %s6 = sld [smem:[#allocation0]]
  $region34: #{resgat_forward.8} parent=0
    _
  %s8 = ssub.s32 1, %s6
  %s9 = scalar_select 0, %s8, %s6
  // Predicated region
  $region2: #{resgat_forward.8} parent=0 // pred_check
    _
  $region3: #{resgat_forward.8} parent=0 // pred_check_branch
    %11 = sbr.rel (0) target = $region5
  $region4: #{resgat_forward.8} parent=0 // pred_region
    _
  $region5: #{resgat_forward.8} parent=0 // pred_fallthru
    _
  // Predicated region
  $region6: #{resgat_forward.8} parent=0 // pred_check
    _
  $region7: #{resgat_forward.8} parent=0 // pred_check_branch
    %13 = sbr.rel (0) target = $region9
  $region8: #{resgat_forward.8} parent=0 // pred_region
    _
  $region9: #{resgat_forward.8} parent=0 // pred_fallthru
    _
  %v15 = vld [vmem:[%s0] sm:$0xf]
  %v16 = vld [vmem:[%s1] sm:$0xff]
  %v17 = vld [vmem:[%s1 + $0x8] sm:$0xff]
  %v18 = vld [vmem:[%s1 + $0x10] sm:$0xff]
  %v19 = vld [vmem:[%s1 + $0x18] sm:$0xff]
  %v20 = vpack.c.bf16 %v17, %v16
  %v21 = vpack.c.bf16 %v19, %v18
  %vm22 = vcmask 261120
  %v24 = vsel %vm22, %v15, 0
  %26 = vmatprep.subr.bf16.mxu0 0
  %27 = vmatpush1.bf16.msra.mxu0 0
  %28 = vmatprep.subr.bf16.mxu0 0
  %29 = vmatpush1.bf16.msra.mxu0 0
  %30 = vmatprep.subr.bf16.mxu0 0
  %31 = vmatpush1.bf16.msra.mxu0 0
  %32 = vmatprep.subr.bf16.mxu0 0
  %33 = vmatpush1.bf16.msra.mxu0 0
  %34 = vmatprep.subr.bf16.mxu0 0
  %35 = vmatpush1.bf16.msra.mxu0 0
  %36 = vmatprep.subr.bf16.mxu0 0
  %37 = vmatpush1.bf16.msra.mxu0 0
  %38 = vmatprep.subr.bf16.mxu0 0
  %39 = vmatpush1.bf16.msra.mxu0 %v21
  %40 = vmatprep.subr.bf16.mxu0 0
  %41 = vmatpush1.bf16.msra.mxu0 %v20
  %42 = vmatprep.subr.bf16.mxu0 0
  %43 = vmatpush2.bf16.msra.mxu0 0
  %44 = vmatprep.subr.bf16.mxu0 0
  %45 = vmatpush2.bf16.msra.mxu0 0
  %46 = vmatprep.subr.bf16.mxu0 0
  %47 = vmatpush2.bf16.msra.mxu0 0
  %48 = vmatprep.subr.bf16.mxu0 0
  %49 = vmatpush2.bf16.msra.mxu0 0
  %50 = vmatprep.subr.bf16.mxu0 0
  %51 = vmatpush2.bf16.msra.mxu0 0
  %52 = vmatprep.subr.bf16.mxu0 0
  %53 = vmatpush2.bf16.msra.mxu0 0
  %54 = vmatprep.subr.bf16.mxu0 0
  %55 = vmatpush2.bf16.msra.mxu0 0
  %56 = vmatprep.subr.bf16.mxu0 0
  %57 = vmatpush2.bf16.msra.mxu0 0
  %58 = vmatprep.mubr.bf16.mxu0 0
  %59 = vmatmul.mubr.bf16.gmra.mxu0 %v24
  %v60 = vpop.f32.mrf.mxu0
  %v61 = vadd.f32 0.0, %v60
  %v62 = vpop.f32.mrf.mxu0
  %v63 = vpop.f32.mrf.mxu0
  %v64 = vpop.f32.mrf.mxu0
  %65 = vdwg.mxu0
  %v66 = vpack.c.bf16 %v61, %v61
  %vm67 = vcmask 257024
  %68 = vst.msk [vmem:[%s2] sm:$0xf] %vm67, %v66
  %70 = vrot.lane.b32.xlu0 %v61, 96
  %v71 = vpop.permute.xlu0 %70
  %vm73 = vcmask 64512
  %74 = vst.msk [vmem:[%s3] sm:$0xff] %vm73, %v71
  %75 = vrot.lane.b32.xlu0 %v61, 88
  %v76 = vpop.permute.xlu0 %75
  %78 = vst.msk [vmem:[%s4] sm:$0xff] %vm73, %v76
  // Predicated region
  $region10: #{resgat_forward.8} parent=0 // pred_check
    _
  $region11: #{resgat_forward.8} parent=0 // pred_check_branch
    %80 = sbr.rel (0) target = $region13
  $region12: #{resgat_forward.8} parent=0 // pred_region
    _
  $region13: #{resgat_forward.8} parent=0 // pred_fallthru
    _
  // Predicated region
  $region14: #{resgat_forward.8} parent=0 // pred_check
    _
  $region15: #{resgat_forward.8} parent=0 // pred_check_branch
    %82 = sbr.rel (0) target = $region17
  $region16: #{resgat_forward.8} parent=0 // pred_region
    _
  $region17: #{resgat_forward.8} parent=0 // pred_fallthru
    _
  // Predicated region
  $region18: #{resgat_forward.8} parent=0 // pred_check
    _
  $region19: #{resgat_forward.8} parent=0 // pred_check_branch
    %84 = sbr.rel (0) target = $region21
  $region20: #{resgat_forward.8} parent=0 // pred_region
    _
  $region21: #{resgat_forward.8} parent=0 // pred_fallthru
    _
  // Predicated region
  $region22: #{resgat_forward.8} parent=0 // pred_check
    _
  $region23: #{resgat_forward.8} parent=0 // pred_check_branch
    %86 = sbr.rel (0) target = $region25
  $region24: #{resgat_forward.8} parent=0 // pred_region
    _
  $region25: #{resgat_forward.8} parent=0 // pred_fallthru
    _
  // Predicated region
  $region26: #{resgat_forward.8} parent=0 // pred_check
    _
  $region27: #{resgat_forward.8} parent=0 // pred_check_branch
    %88 = sbr.rel (0) target = $region29
  $region28: #{resgat_forward.8} parent=0 // pred_region
    _
  $region29: #{resgat_forward.8} parent=0 // pred_fallthru
    _
  // Predicated region
  $region30: #{resgat_forward.8} parent=0 // pred_check
    _
  $region31: #{resgat_forward.8} parent=0 // pred_check_branch
    %90 = sbr.rel (0) target = $region33
  $region32: #{resgat_forward.8} parent=0 // pred_region
    _
  $region33: #{resgat_forward.8} parent=0 // pred_fallthru
    _

// kernel: resgat_forward.7
$region0: #{resgat_forward.7}
  #allocation0 [shape = 'u32[]', space=smem, size = 0x4, offset = 0x4, fixed_abs, tag = 'smem constant byte address 0x4 - core index']
  #allocation1 [shape = 'u32[144,128]{1,0:T(1,128)}', space=vmem, size = 0x12000, scoped, tag = 'internal scratch']
  %s0 = inlined_call_operand.vmem [shape: s8[8,8], index: 0, kind: input, shape index: {}]
  %s1 = inlined_call_operand.vmem [shape: bf16[8,4,8], index: 1, kind: input, shape index: {}]
  %s2 = inlined_call_operand.vmem [shape: f32[8,8], index: 2, kind: input, shape index: {}]
  %s3 = inlined_call_operand.vmem [shape: f32[8,8], index: 3, kind: input, shape index: {}]
  %s4 = inlined_call_operand.vmem [shape: f32[1,32], index: 4, kind: input, shape index: {}]
  %s5 = inlined_call_operand.vmem [shape: f32[8,16], index: 5, kind: input, shape index: {}]
  %s6 = inlined_call_operand.vmem [shape: f32[16,32], index: 6, kind: input, shape index: {}]
  %s7 = inlined_call_operand.vmem [shape: f32[1,32], index: 7, kind: input, shape index: {}]
  %s8 = inlined_call_operand.vmem [shape: f32[1,32], index: 8, kind: input, shape index: {}]
  %s9 = inlined_call_operand.vmem [shape: f32[1,32], index: 9, kind: input, shape index: {}]
  %s10 = inlined_call_operand.vmem [shape: bf16[8,32], index: 10, kind: output, shape index: {}]
  %s11 = sld [smem:[#allocation0]]
  $region50: #{resgat_forward.7} parent=0
    _
  %s13 = ssub.s32 1, %s11
  %s14 = scalar_select 0, %s13, %s11
  // Predicated region
  $region2: #{resgat_forward.7} parent=0 // pred_check
    _
  $region3: #{resgat_forward.7} parent=0 // pred_check_branch
    %16 = sbr.rel (0) target = $region5
  $region4: #{resgat_forward.7} parent=0 // pred_region
    _
  $region5: #{resgat_forward.7} parent=0 // pred_fallthru
    _
  // Predicated region
  $region6: #{resgat_forward.7} parent=0 // pred_check
    _
  $region7: #{resgat_forward.7} parent=0 // pred_check_branch
    %18 = sbr.rel (0) target = $region9
  $region8: #{resgat_forward.7} parent=0 // pred_region
    _
  $region9: #{resgat_forward.7} parent=0 // pred_fallthru
    _
  // Predicated region
  $region10: #{resgat_forward.7} parent=0 // pred_check
    _
  $region11: #{resgat_forward.7} parent=0 // pred_check_branch
    %20 = sbr.rel (0) target = $region13
  $region12: #{resgat_forward.7} parent=0 // pred_region
    _
  $region13: #{resgat_forward.7} parent=0 // pred_fallthru
    _
  // Predicated region
  $region14: #{resgat_forward.7} parent=0 // pred_check
    _
  $region15: #{resgat_forward.7} parent=0 // pred_check_branch
    %22 = sbr.rel (0) target = $region17
  $region16: #{resgat_forward.7} parent=0 // pred_region
    _
  $region17: #{resgat_forward.7} parent=0 // pred_fallthru
    _
  // Predicated region
  $region18: #{resgat_forward.7} parent=0 // pred_check
    _
  $region19: #{resgat_forward.7} parent=0 // pred_check_branch
    %24 = sbr.rel (0) target = $region21
  $region20: #{resgat_forward.7} parent=0 // pred_region
    _
  $region21: #{resgat_forward.7} parent=0 // pred_fallthru
    _
  // Predicated region
  $region22: #{resgat_forward.7} parent=0 // pred_check
    _
  $region23: #{resgat_forward.7} parent=0 // pred_check_branch
    %26 = sbr.rel (0) target = $region25
  $region24: #{resgat_forward.7} parent=0 // pred_region
    _
  $region25: #{resgat_forward.7} parent=0 // pred_fallthru
    _
  // Predicated region
  $region26: #{resgat_forward.7} parent=0 // pred_check
    _
  $region27: #{resgat_forward.7} parent=0 // pred_check_branch
    %28 = sbr.rel (0) target = $region29
  $region28: #{resgat_forward.7} parent=0 // pred_region
    _
  $region29: #{resgat_forward.7} parent=0 // pred_fallthru
    _
  // Predicated region
  $region30: #{resgat_forward.7} parent=0 // pred_check
    _
  $region31: #{resgat_forward.7} parent=0 // pred_check_branch
    %30 = sbr.rel (0) target = $region33
  $region32: #{resgat_forward.7} parent=0 // pred_region
    _
  $region33: #{resgat_forward.7} parent=0 // pred_fallthru
    _
  // Predicated region
  $region34: #{resgat_forward.7} parent=0 // pred_check
    _
  $region35: #{resgat_forward.7} parent=0 // pred_check_branch
    %32 = sbr.rel (0) target = $region37
  $region36: #{resgat_forward.7} parent=0 // pred_region
    _
  $region37: #{resgat_forward.7} parent=0 // pred_fallthru
    _
  // Predicated region
  $region38: #{resgat_forward.7} parent=0 // pred_check
    _
  $region39: #{resgat_forward.7} parent=0 // pred_check_branch
    %34 = sbr.rel (0) target = $region41
  $region40: #{resgat_forward.7} parent=0 // pred_region
    _
  $region41: #{resgat_forward.7} parent=0 // pred_fallthru
    _
  %v36 = vld [vmem:[%s0] sm:$0x3]
  %v37 = vunpack.c.0.s8 %v36
  %v38 = vcvt.s32.f32 %v37
  %v39 = vmul.f32 %v38, -1e+09
  %v40 = vld [vmem:[%s2] sm:$0xff]
  %v41 = vld [vmem:[%s3] sm:$0xff]
  %43 = vset.pattern.permute.xlu0 0
  %44 = vperm.xlu0 %43, %v41
  %v45 = vpop.permute.xlu0 %44
  %v47 = vlaneseq
  %v48 = vshrl.u32 %v47, 7
  %v49 = vsub.s32 0, %v48
  %v50 = vrot.slane %v40, %v49
  %v51 = vadd.f32 %v45, %v50
  %v52 = vmul.f32 %v51, 0.2
  %v53 = vmax.f32 %v51, %v52
  %v54 = vadd.f32 %v53, %v39
  %vm55 = vcmask 64512
  %v56 = vsel %vm55, %v54, -inf
  %v57 = vrot.slane %v56, 4
  %v58 = vmax.f32 %v56, %v57
  %v59 = vrot.slane %v58, 2
  %v60 = vmax.f32 %v58, %v59
  %v61 = vrot.slane %v60, 1
  %v62 = vmax.f32 %v60, %v61
  %v63 = vsub.f32 %v54, %v62
  %v64 = vmul.f32 %v63, 1.442695
  %v65 = vpow.pop %v64
  %v66 = vsel %vm55, %v65, 0.0
  %v67 = vrot.slane %v66, 4
  %v68 = vadd.f32 %v66, %v67
  %v69 = vrot.slane %v68, 2
  %v70 = vadd.f32 %v68, %v69
  %v71 = vrot.slane %v70, 1
  %v72 = vadd.f32 %v70, %v71
  %v73 = vld [vmem:[%s1] sm:$0x3]
  %v74 = vpack.c.bf16 %v65, %v65
  %v76 = vsel %vm55, %v73, 0
  %vm78 = vcmask 1043456
  %v80 = vsel %vm78, %v74, 0
  %82 = vmatprep.subr.bf16.mxu0 0
  %83 = vmatpush1.bf16.msra.mxu0 0
  %84 = vmatprep.subr.bf16.mxu0 0
  %85 = vmatpush1.bf16.msra.mxu0 0
  %86 = vmatprep.subr.bf16.mxu0 0
  %87 = vmatpush1.bf16.msra.mxu0 0
  %88 = vmatprep.subr.bf16.mxu0 0
  %89 = vmatpush1.bf16.msra.mxu0 0
  %90 = vmatprep.subr.bf16.mxu0 0
  %91 = vmatpush1.bf16.msra.mxu0 0
  %92 = vmatprep.subr.bf16.mxu0 0
  %93 = vmatpush1.bf16.msra.mxu0 0
  %94 = vmatprep.subr.bf16.mxu0 0
  %95 = vmatpush1.bf16.msra.mxu0 0
  %96 = vmatprep.subr.bf16.mxu0 0
  %97 = vmatpush1.bf16.msra.mxu0 %v80
  %98 = vmatprep.subr.bf16.mxu0 0
  %99 = vmatpush2.bf16.msra.mxu0 0
  %100 = vmatprep.subr.bf16.mxu0 0
  %101 = vmatpush2.bf16.msra.mxu0 0
  %102 = vmatprep.subr.bf16.mxu0 0
  %103 = vmatpush2.bf16.msra.mxu0 0
  %104 = vmatprep.subr.bf16.mxu0 0
  %105 = vmatpush2.bf16.msra.mxu0 0
  %106 = vmatprep.subr.bf16.mxu0 0
  %107 = vmatpush2.bf16.msra.mxu0 0
  %108 = vmatprep.subr.bf16.mxu0 0
  %109 = vmatpush2.bf16.msra.mxu0 0
  %110 = vmatprep.subr.bf16.mxu0 0
  %111 = vmatpush2.bf16.msra.mxu0 0
  %112 = vmatprep.subr.bf16.mxu0 0
  %113 = vmatpush2.bf16.msra.mxu0 0
  %114 = vmatprep.mubr.bf16.mxu0 0
  %115 = vmatmul.mubr.bf16.gmra.mxu0 %v76
  %v116 = vpop.f32.mrf.mxu0
  %v117 = vadd.f32 0.0, %v116
  %v118 = vpop.f32.mrf.mxu0
  %v119 = vpop.f32.mrf.mxu0
  %v120 = vpop.f32.mrf.mxu0
  %121 = vdwg.mxu0
  %v122 = vrcp.pop %v72
  %v123 = vmul.f32 %v117, %v122
  %124 = vset.pattern.permute.xlu0 1
  %125 = vperm.xlu0 %124, %v41
  %v126 = vpop.permute.xlu0 %125
  %v128 = vlaneseq
  %v129 = vshrl.u32 %v128, 7
  %v130 = vsub.s32 1, %v129
  %v131 = vrot.slane %v40, %v130
  %v132 = vadd.f32 %v126, %v131
  %v133 = vmul.f32 %v132, 0.2
  %v134 = vmax.f32 %v132, %v133
  %v135 = vadd.f32 %v134, %v39
  %v136 = vsel %vm55, %v135, -inf
  %v137 = vrot.slane %v136, 4
  %v138 = vmax.f32 %v136, %v137
  %v139 = vrot.slane %v138, 2
  %v140 = vmax.f32 %v138, %v139
  %v141 = vrot.slane %v140, 1
  %v142 = vmax.f32 %v140, %v141
  %v143 = vsub.f32 %v135, %v142
  %v144 = vmul.f32 %v143, 1.442695
  %v145 = vpow.pop %v144
  %v146 = vsel %vm55, %v145, 0.0
  %v147 = vrot.slane %v146, 4
  %v148 = vadd.f32 %v146, %v147
  %v149 = vrot.slane %v148, 2
  %v150 = vadd.f32 %v148, %v149
  %v151 = vrot.slane %v150, 1
  %v152 = vadd.f32 %v150, %v151
  %s153 = scalar_lea.vmem %s1, 2
  %v154 = vld [vmem:[%s153] sm:$0x3]
  %v155 = vpack.c.bf16 %v145, %v145
  %v157 = vsel %vm55, %v154, 0
  %v160 = vsel %vm78, %v155, 0
  %162 = vmatprep.subr.bf16.mxu0 0
  %163 = vmatpush1.bf16.msra.mxu0 0
  %164 = vmatprep.subr.bf16.mxu0 0
  %165 = vmatpush1.bf16.msra.mxu0 0
  %166 = vmatprep.subr.bf16.mxu0 0
  %167 = vmatpush1.bf16.msra.mxu0 0
  %168 = vmatprep.subr.bf16.mxu0 0
  %169 = vmatpush1.bf16.msra.mxu0 0
  %170 = vmatprep.subr.bf16.mxu0 0
  %171 = vmatpush1.bf16.msra.mxu0 0
  %172 = vmatprep.subr.bf16.mxu0 0
  %173 = vmatpush1.bf16.msra.mxu0 0
  %174 = vmatprep.subr.bf16.mxu0 0
  %175 = vmatpush1.bf16.msra.mxu0 0
  %176 = vmatprep.subr.bf16.mxu0 0
  %177 = vmatpush1.bf16.msra.mxu0 %v160
  %178 = vmatprep.subr.bf16.mxu0 0
  %179 = vmatpush2.bf16.msra.mxu0 0
  %180 = vmatprep.subr.bf16.mxu0 0
  %181 = vmatpush2.bf16.msra.mxu0 0
  %182 = vmatprep.subr.bf16.mxu0 0
  %183 = vmatpush2.bf16.msra.mxu0 0
  %184 = vmatprep.subr.bf16.mxu0 0
  %185 = vmatpush2.bf16.msra.mxu0 0
  %186 = vmatprep.subr.bf16.mxu0 0
  %187 = vmatpush2.bf16.msra.mxu0 0
  %188 = vmatprep.subr.bf16.mxu0 0
  %189 = vmatpush2.bf16.msra.mxu0 0
  %190 = vmatprep.subr.bf16.mxu0 0
  %191 = vmatpush2.bf16.msra.mxu0 0
  %192 = vmatprep.subr.bf16.mxu0 0
  %193 = vmatpush2.bf16.msra.mxu0 0
  %194 = vmatprep.mubr.bf16.mxu0 0
  %195 = vmatmul.mubr.bf16.gmra.mxu0 %v157
  %v196 = vpop.f32.mrf.mxu0
  %v197 = vadd.f32 0.0, %v196
  %v198 = vpop.f32.mrf.mxu0
  %v199 = vpop.f32.mrf.mxu0
  %v200 = vpop.f32.mrf.mxu0
  %201 = vdwg.mxu0
  %v202 = vrcp.pop %v152
  %v203 = vmul.f32 %v197, %v202
  %204 = vset.pattern.permute.xlu0 2
  %205 = vperm.xlu0 %204, %v41
  %v206 = vpop.permute.xlu0 %205
  %v208 = vlaneseq
  %v209 = vshrl.u32 %v208, 7
  %v210 = vsub.s32 2, %v209
  %v211 = vrot.slane %v40, %v210
  %v212 = vadd.f32 %v206, %v211
  %v213 = vmul.f32 %v212, 0.2
  %v214 = vmax.f32 %v212, %v213
  %v215 = vadd.f32 %v214, %v39
  %v216 = vsel %vm55, %v215, -inf
  %v217 = vrot.slane %v216, 4
  %v218 = vmax.f32 %v216, %v217
  %v219 = vrot.slane %v218, 2
  %v220 = vmax.f32 %v218, %v219
  %v221 = vrot.slane %v220, 1
  %v222 = vmax.f32 %v220, %v221
  %v223 = vsub.f32 %v215, %v222
  %v224 = vmul.f32 %v223, 1.442695
  %v225 = vpow.pop %v224
  %v226 = vsel %vm55, %v225, 0.0
  %v227 = vrot.slane %v226, 4
  %v228 = vadd.f32 %v226, %v227
  %v229 = vrot.slane %v228, 2
  %v230 = vadd.f32 %v228, %v229
  %v231 = vrot.slane %v230, 1
  %v232 = vadd.f32 %v230, %v231
  %s233 = scalar_lea.vmem %s1, 4
  %v234 = vld [vmem:[%s233] sm:$0x3]
  %v235 = vpack.c.bf16 %v225, %v225
  %v237 = vsel %vm55, %v234, 0
  %v240 = vsel %vm78, %v235, 0
  %242 = vmatprep.subr.bf16.mxu0 0
  %243 = vmatpush1.bf16.msra.mxu0 0
  %244 = vmatprep.subr.bf16.mxu0 0
  %245 = vmatpush1.bf16.msra.mxu0 0
  %246 = vmatprep.subr.bf16.mxu0 0
  %247 = vmatpush1.bf16.msra.mxu0 0
  %248 = vmatprep.subr.bf16.mxu0 0
  %249 = vmatpush1.bf16.msra.mxu0 0
  %250 = vmatprep.subr.bf16.mxu0 0
  %251 = vmatpush1.bf16.msra.mxu0 0
  %252 = vmatprep.subr.bf16.mxu0 0
  %253 = vmatpush1.bf16.msra.mxu0 0
  %254 = vmatprep.subr.bf16.mxu0 0
  %255 = vmatpush1.bf16.msra.mxu0 0
  %256 = vmatprep.subr.bf16.mxu0 0
  %257 = vmatpush1.bf16.msra.mxu0 %v240
  %258 = vmatprep.subr.bf16.mxu0 0
  %259 = vmatpush2.bf16.msra.mxu0 0
  %260 = vmatprep.subr.bf16.mxu0 0
  %261 = vmatpush2.bf16.msra.mxu0 0
  %262 = vmatprep.subr.bf16.mxu0 0
  %263 = vmatpush2.bf16.msra.mxu0 0
  %264 = vmatprep.subr.bf16.mxu0 0
  %265 = vmatpush2.bf16.msra.mxu0 0
  %266 = vmatprep.subr.bf16.mxu0 0
  %267 = vmatpush2.bf16.msra.mxu0 0
  %268 = vmatprep.subr.bf16.mxu0 0
  %269 = vmatpush2.bf16.msra.mxu0 0
  %270 = vmatprep.subr.bf16.mxu0 0
  %271 = vmatpush2.bf16.msra.mxu0 0
  %272 = vmatprep.subr.bf16.mxu0 0
  %273 = vmatpush2.bf16.msra.mxu0 0
  %274 = vmatprep.mubr.bf16.mxu0 0
  %275 = vmatmul.mubr.bf16.gmra.mxu0 %v237
  %v276 = vpop.f32.mrf.mxu0
  %v277 = vadd.f32 0.0, %v276
  %v278 = vpop.f32.mrf.mxu0
  %v279 = vpop.f32.mrf.mxu0
  %v280 = vpop.f32.mrf.mxu0
  %281 = vdwg.mxu0
  %v282 = vrcp.pop %v232
  %v283 = vmul.f32 %v277, %v282
  %284 = vset.pattern.permute.xlu0 3
  %285 = vperm.xlu0 %284, %v41
  %v286 = vpop.permute.xlu0 %285
  %v288 = vlaneseq
  %v289 = vshrl.u32 %v288, 7
  %v290 = vsub.s32 3, %v289
  %v291 = vrot.slane %v40, %v290
  %v292 = vadd.f32 %v286, %v291
  %v293 = vmul.f32 %v292, 0.2
  %v294 = vmax.f32 %v292, %v293
  %v295 = vadd.f32 %v294, %v39
  %v296 = vsel %vm55, %v295, -inf
  %v297 = vrot.slane %v296, 4
  %v298 = vmax.f32 %v296, %v297
  %v299 = vrot.slane %v298, 2
  %v300 = vmax.f32 %v298, %v299
  %v301 = vrot.slane %v300, 1
  %v302 = vmax.f32 %v300, %v301
  %v303 = vsub.f32 %v295, %v302
  %v304 = vmul.f32 %v303, 1.442695
  %v305 = vpow.pop %v304
  %v306 = vsel %vm55, %v305, 0.0
  %v307 = vrot.slane %v306, 4
  %v308 = vadd.f32 %v306, %v307
  %v309 = vrot.slane %v308, 2
  %v310 = vadd.f32 %v308, %v309
  %v311 = vrot.slane %v310, 1
  %v312 = vadd.f32 %v310, %v311
  %s313 = scalar_lea.vmem %s1, 6
  %v314 = vld [vmem:[%s313] sm:$0x3]
  %v315 = vpack.c.bf16 %v305, %v305
  %v317 = vsel %vm55, %v314, 0
  %v320 = vsel %vm78, %v315, 0
  %322 = vmatprep.subr.bf16.mxu0 0
  %323 = vmatpush1.bf16.msra.mxu0 0
  %324 = vmatprep.subr.bf16.mxu0 0
  %325 = vmatpush1.bf16.msra.mxu0 0
  %326 = vmatprep.subr.bf16.mxu0 0
  %327 = vmatpush1.bf16.msra.mxu0 0
  %328 = vmatprep.subr.bf16.mxu0 0
  %329 = vmatpush1.bf16.msra.mxu0 0
  %330 = vmatprep.subr.bf16.mxu0 0
  %331 = vmatpush1.bf16.msra.mxu0 0
  %332 = vmatprep.subr.bf16.mxu0 0
  %333 = vmatpush1.bf16.msra.mxu0 0
  %334 = vmatprep.subr.bf16.mxu0 0
  %335 = vmatpush1.bf16.msra.mxu0 0
  %336 = vmatprep.subr.bf16.mxu0 0
  %337 = vmatpush1.bf16.msra.mxu0 %v320
  %338 = vmatprep.subr.bf16.mxu0 0
  %339 = vmatpush2.bf16.msra.mxu0 0
  %340 = vmatprep.subr.bf16.mxu0 0
  %341 = vmatpush2.bf16.msra.mxu0 0
  %342 = vmatprep.subr.bf16.mxu0 0
  %343 = vmatpush2.bf16.msra.mxu0 0
  %344 = vmatprep.subr.bf16.mxu0 0
  %345 = vmatpush2.bf16.msra.mxu0 0
  %346 = vmatprep.subr.bf16.mxu0 0
  %347 = vmatpush2.bf16.msra.mxu0 0
  %348 = vmatprep.subr.bf16.mxu0 0
  %349 = vmatpush2.bf16.msra.mxu0 0
  %350 = vmatprep.subr.bf16.mxu0 0
  %351 = vmatpush2.bf16.msra.mxu0 0
  %352 = vmatprep.subr.bf16.mxu0 0
  %353 = vmatpush2.bf16.msra.mxu0 0
  %354 = vmatprep.mubr.bf16.mxu0 0
  %355 = vmatmul.mubr.bf16.gmra.mxu0 %v317
  %v356 = vpop.f32.mrf.mxu0
  %v357 = vadd.f32 0.0, %v356
  %v358 = vpop.f32.mrf.mxu0
  %v359 = vpop.f32.mrf.mxu0
  %v360 = vpop.f32.mrf.mxu0
  %361 = vdwg.mxu0
  %v362 = vrcp.pop %v312
  %v363 = vmul.f32 %v357, %v362
  %364 = vset.pattern.permute.xlu0 4
  %365 = vperm.xlu0 %364, %v41
  %v366 = vpop.permute.xlu0 %365
  %v368 = vlaneseq
  %v369 = vshrl.u32 %v368, 7
  %v370 = vsub.s32 4, %v369
  %v371 = vrot.slane %v40, %v370
  %v372 = vadd.f32 %v366, %v371
  %v373 = vmul.f32 %v372, 0.2
  %v374 = vmax.f32 %v372, %v373
  %v375 = vadd.f32 %v374, %v39
  %v376 = vsel %vm55, %v375, -inf
  %v377 = vrot.slane %v376, 4
  %v378 = vmax.f32 %v376, %v377
  %v379 = vrot.slane %v378, 2
  %v380 = vmax.f32 %v378, %v379
  %v381 = vrot.slane %v380, 1
  %v382 = vmax.f32 %v380, %v381
  %v383 = vsub.f32 %v375, %v382
  %v384 = vmul.f32 %v383, 1.442695
  %v385 = vpow.pop %v384
  %v386 = vsel %vm55, %v385, 0.0
  %v387 = vrot.slane %v386, 4
  %v388 = vadd.f32 %v386, %v387
  %v389 = vrot.slane %v388, 2
  %v390 = vadd.f32 %v388, %v389
  %v391 = vrot.slane %v390, 1
  %v392 = vadd.f32 %v390, %v391
  %s393 = scalar_lea.vmem %s1, 8
  %v394 = vld [vmem:[%s393] sm:$0x3]
  %v395 = vpack.c.bf16 %v385, %v385
  %v397 = vsel %vm55, %v394, 0
  %v400 = vsel %vm78, %v395, 0
  %402 = vmatprep.subr.bf16.mxu0 0
  %403 = vmatpush1.bf16.msra.mxu0 0
  %404 = vmatprep.subr.bf16.mxu0 0
  %405 = vmatpush1.bf16.msra.mxu0 0
  %406 = vmatprep.subr.bf16.mxu0 0
  %407 = vmatpush1.bf16.msra.mxu0 0
  %408 = vmatprep.subr.bf16.mxu0 0
  %409 = vmatpush1.bf16.msra.mxu0 0
  %410 = vmatprep.subr.bf16.mxu0 0
  %411 = vmatpush1.bf16.msra.mxu0 0
  %412 = vmatprep.subr.bf16.mxu0 0
  %413 = vmatpush1.bf16.msra.mxu0 0
  %414 = vmatprep.subr.bf16.mxu0 0
  %415 = vmatpush1.bf16.msra.mxu0 0
  %416 = vmatprep.subr.bf16.mxu0 0
  %417 = vmatpush1.bf16.msra.mxu0 %v400
  %418 = vmatprep.subr.bf16.mxu0 0
  %419 = vmatpush2.bf16.msra.mxu0 0
  %420 = vmatprep.subr.bf16.mxu0 0
  %421 = vmatpush2.bf16.msra.mxu0 0
  %422 = vmatprep.subr.bf16.mxu0 0
  %423 = vmatpush2.bf16.msra.mxu0 0
  %424 = vmatprep.subr.bf16.mxu0 0
  %425 = vmatpush2.bf16.msra.mxu0 0
  %426 = vmatprep.subr.bf16.mxu0 0
  %427 = vmatpush2.bf16.msra.mxu0 0
  %428 = vmatprep.subr.bf16.mxu0 0
  %429 = vmatpush2.bf16.msra.mxu0 0
  %430 = vmatprep.subr.bf16.mxu0 0
  %431 = vmatpush2.bf16.msra.mxu0 0
  %432 = vmatprep.subr.bf16.mxu0 0
  %433 = vmatpush2.bf16.msra.mxu0 0
  %434 = vmatprep.mubr.bf16.mxu0 0
  %435 = vmatmul.mubr.bf16.gmra.mxu0 %v397
  %v436 = vpop.f32.mrf.mxu0
  %v437 = vadd.f32 0.0, %v436
  %v438 = vpop.f32.mrf.mxu0
  %v439 = vpop.f32.mrf.mxu0
  %v440 = vpop.f32.mrf.mxu0
  %441 = vdwg.mxu0
  %v442 = vrcp.pop %v392
  %v443 = vmul.f32 %v437, %v442
  %444 = vset.pattern.permute.xlu0 5
  %445 = vperm.xlu0 %444, %v41
  %v446 = vpop.permute.xlu0 %445
  %v448 = vlaneseq
  %v449 = vshrl.u32 %v448, 7
  %v450 = vsub.s32 5, %v449
  %v451 = vrot.slane %v40, %v450
  %v452 = vadd.f32 %v446, %v451
  %v453 = vmul.f32 %v452, 0.2
  %v454 = vmax.f32 %v452, %v453
  %v455 = vadd.f32 %v454, %v39
  %v456 = vsel %vm55, %v455, -inf
  %v457 = vrot.slane %v456, 4
  %v458 = vmax.f32 %v456, %v457
  %v459 = vrot.slane %v458, 2
  %v460 = vmax.f32 %v458, %v459
  %v461 = vrot.slane %v460, 1
  %v462 = vmax.f32 %v460, %v461
  %v463 = vsub.f32 %v455, %v462
  %v464 = vmul.f32 %v463, 1.442695
  %v465 = vpow.pop %v464
  %v466 = vsel %vm55, %v465, 0.0
  %v467 = vrot.slane %v466, 4
  %v468 = vadd.f32 %v466, %v467
  %v469 = vrot.slane %v468, 2
  %v470 = vadd.f32 %v468, %v469
  %v471 = vrot.slane %v470, 1
  %v472 = vadd.f32 %v470, %v471
  %s473 = scalar_lea.vmem %s1, 10
  %v474 = vld [vmem:[%s473] sm:$0x3]
  %v475 = vpack.c.bf16 %v465, %v465
  %v477 = vsel %vm55, %v474, 0
  %v480 = vsel %vm78, %v475, 0
  %482 = vmatprep.subr.bf16.mxu0 0
  %483 = vmatpush1.bf16.msra.mxu0 0
  %484 = vmatprep.subr.bf16.mxu0 0
  %485 = vmatpush1.bf16.msra.mxu0 0
  %486 = vmatprep.subr.bf16.mxu0 0
  %487 = vmatpush1.bf16.msra.mxu0 0
  %488 = vmatprep.subr.bf16.mxu0 0
  %489 = vmatpush1.bf16.msra.mxu0 0
  %490 = vmatprep.subr.bf16.mxu0 0
  %491 = vmatpush1.bf16.msra.mxu0 0
  %492 = vmatprep.subr.bf16.mxu0 0
  %493 = vmatpush1.bf16.msra.mxu0 0
  %494 = vmatprep.subr.bf16.mxu0 0
  %495 = vmatpush1.bf16.msra.mxu0 0
  %496 = vmatprep.subr.bf16.mxu0 0
  %497 = vmatpush1.bf16.msra.mxu0 %v480
  %498 = vmatprep.subr.bf16.mxu0 0
  %499 = vmatpush2.bf16.msra.mxu0 0
  %500 = vmatprep.subr.bf16.mxu0 0
  %501 = vmatpush2.bf16.msra.mxu0 0
  %502 = vmatprep.subr.bf16.mxu0 0
  %503 = vmatpush2.bf16.msra.mxu0 0
  %504 = vmatprep.subr.bf16.mxu0 0
  %505 = vmatpush2.bf16.msra.mxu0 0
  %506 = vmatprep.subr.bf16.mxu0 0
  %507 = vmatpush2.bf16.msra.mxu0 0
  %508 = vmatprep.subr.bf16.mxu0 0
  %509 = vmatpush2.bf16.msra.mxu0 0
  %510 = vmatprep.subr.bf16.mxu0 0
  %511 = vmatpush2.bf16.msra.mxu0 0
  %512 = vmatprep.subr.bf16.mxu0 0
  %513 = vmatpush2.bf16.msra.mxu0 0
  %514 = vmatprep.mubr.bf16.mxu0 0
  %515 = vmatmul.mubr.bf16.gmra.mxu0 %v477
  %v516 = vpop.f32.mrf.mxu0
  %v517 = vadd.f32 0.0, %v516
  %v518 = vpop.f32.mrf.mxu0
  %v519 = vpop.f32.mrf.mxu0
  %v520 = vpop.f32.mrf.mxu0
  %521 = vdwg.mxu0
  %v522 = vrcp.pop %v472
  %v523 = vmul.f32 %v517, %v522
  %524 = vset.pattern.permute.xlu0 6
  %525 = vperm.xlu0 %524, %v41
  %v526 = vpop.permute.xlu0 %525
  %v528 = vlaneseq
  %v529 = vshrl.u32 %v528, 7
  %v530 = vsub.s32 6, %v529
  %v531 = vrot.slane %v40, %v530
  %v532 = vadd.f32 %v526, %v531
  %v533 = vmul.f32 %v532, 0.2
  %v534 = vmax.f32 %v532, %v533
  %v535 = vadd.f32 %v534, %v39
  %v536 = vsel %vm55, %v535, -inf
  %v537 = vrot.slane %v536, 4
  %v538 = vmax.f32 %v536, %v537
  %v539 = vrot.slane %v538, 2
  %v540 = vmax.f32 %v538, %v539
  %v541 = vrot.slane %v540, 1
  %v542 = vmax.f32 %v540, %v541
  %v543 = vsub.f32 %v535, %v542
  %v544 = vmul.f32 %v543, 1.442695
  %v545 = vpow.pop %v544
  %v546 = vsel %vm55, %v545, 0.0
  %v547 = vrot.slane %v546, 4
  %v548 = vadd.f32 %v546, %v547
  %v549 = vrot.slane %v548, 2
  %v550 = vadd.f32 %v548, %v549
  %v551 = vrot.slane %v550, 1
  %v552 = vadd.f32 %v550, %v551
  %s553 = scalar_lea.vmem %s1, 12
  %v554 = vld [vmem:[%s553] sm:$0x3]
  %v555 = vpack.c.bf16 %v545, %v545
  %v557 = vsel %vm55, %v554, 0
  %v560 = vsel %vm78, %v555, 0
  %562 = vmatprep.subr.bf16.mxu0 0
  %563 = vmatpush1.bf16.msra.mxu0 0
  %564 = vmatprep.subr.bf16.mxu0 0
  %565 = vmatpush1.bf16.msra.mxu0 0
  %566 = vmatprep.subr.bf16.mxu0 0
  %567 = vmatpush1.bf16.msra.mxu0 0
  %568 = vmatprep.subr.bf16.mxu0 0
  %569 = vmatpush1.bf16.msra.mxu0 0
  %570 = vmatprep.subr.bf16.mxu0 0
  %571 = vmatpush1.bf16.msra.mxu0 0
  %572 = vmatprep.subr.bf16.mxu0 0
  %573 = vmatpush1.bf16.msra.mxu0 0
  %574 = vmatprep.subr.bf16.mxu0 0
  %575 = vmatpush1.bf16.msra.mxu0 0
  %576 = vmatprep.subr.bf16.mxu0 0
  %577 = vmatpush1.bf16.msra.mxu0 %v560
  %578 = vmatprep.subr.bf16.mxu0 0
  %579 = vmatpush2.bf16.msra.mxu0 0
  %580 = vmatprep.subr.bf16.mxu0 0
  %581 = vmatpush2.bf16.msra.mxu0 0
  %582 = vmatprep.subr.bf16.mxu0 0
  %583 = vmatpush2.bf16.msra.mxu0 0
  %584 = vmatprep.subr.bf16.mxu0 0
  %585 = vmatpush2.bf16.msra.mxu0 0
  %586 = vmatprep.subr.bf16.mxu0 0
  %587 = vmatpush2.bf16.msra.mxu0 0
  %588 = vmatprep.subr.bf16.mxu0 0
  %589 = vmatpush2.bf16.msra.mxu0 0
  %590 = vmatprep.subr.bf16.mxu0 0
  %591 = vmatpush2.bf16.msra.mxu0 0
  %592 = vmatprep.subr.bf16.mxu0 0
  %593 = vmatpush2.bf16.msra.mxu0 0
  %594 = vmatprep.mubr.bf16.mxu0 0
  %595 = vmatmul.mubr.bf16.gmra.mxu0 %v557
  %v596 = vpop.f32.mrf.mxu0
  %v597 = vadd.f32 0.0, %v596
  %v598 = vpop.f32.mrf.mxu0
  %v599 = vpop.f32.mrf.mxu0
  %v600 = vpop.f32.mrf.mxu0
  %601 = vdwg.mxu0
  %v602 = vrcp.pop %v552
  %v603 = vmul.f32 %v597, %v602
  %604 = vset.pattern.permute.xlu0 7
  %605 = vperm.xlu0 %604, %v41
  %v606 = vpop.permute.xlu0 %605
  %v608 = vlaneseq
  %v609 = vshrl.u32 %v608, 7
  %v610 = vsub.s32 7, %v609
  %v611 = vrot.slane %v40, %v610
  %v612 = vadd.f32 %v606, %v611
  %v613 = vmul.f32 %v612, 0.2
  %v614 = vmax.f32 %v612, %v613
  %v615 = vadd.f32 %v614, %v39
  %v616 = vsel %vm55, %v615, -inf
  %v617 = vrot.slane %v616, 4
  %v618 = vmax.f32 %v616, %v617
  %v619 = vrot.slane %v618, 2
  %v620 = vmax.f32 %v618, %v619
  %v621 = vrot.slane %v620, 1
  %v622 = vmax.f32 %v620, %v621
  %v623 = vsub.f32 %v615, %v622
  %v624 = vmul.f32 %v623, 1.442695
  %v625 = vpow.pop %v624
  %v626 = vsel %vm55, %v625, 0.0
  %v627 = vrot.slane %v626, 4
  %v628 = vadd.f32 %v626, %v627
  %v629 = vrot.slane %v628, 2
  %v630 = vadd.f32 %v628, %v629
  %v631 = vrot.slane %v630, 1
  %v632 = vadd.f32 %v630, %v631
  %s633 = scalar_lea.vmem %s1, 14
  %v634 = vld [vmem:[%s633] sm:$0x3]
  %v635 = vpack.c.bf16 %v625, %v625
  %v637 = vsel %vm55, %v634, 0
  %v640 = vsel %vm78, %v635, 0
  %642 = vmatprep.subr.bf16.mxu0 0
  %643 = vmatpush1.bf16.msra.mxu0 0
  %644 = vmatprep.subr.bf16.mxu0 0
  %645 = vmatpush1.bf16.msra.mxu0 0
  %646 = vmatprep.subr.bf16.mxu0 0
  %647 = vmatpush1.bf16.msra.mxu0 0
  %648 = vmatprep.subr.bf16.mxu0 0
  %649 = vmatpush1.bf16.msra.mxu0 0
  %650 = vmatprep.subr.bf16.mxu0 0
  %651 = vmatpush1.bf16.msra.mxu0 0
  %652 = vmatprep.subr.bf16.mxu0 0
  %653 = vmatpush1.bf16.msra.mxu0 0
  %654 = vmatprep.subr.bf16.mxu0 0
  %655 = vmatpush1.bf16.msra.mxu0 0
  %656 = vmatprep.subr.bf16.mxu0 0
  %657 = vmatpush1.bf16.msra.mxu0 %v640
  %658 = vmatprep.subr.bf16.mxu0 0
  %659 = vmatpush2.bf16.msra.mxu0 0
  %660 = vmatprep.subr.bf16.mxu0 0
  %661 = vmatpush2.bf16.msra.mxu0 0
  %662 = vmatprep.subr.bf16.mxu0 0
  %663 = vmatpush2.bf16.msra.mxu0 0
  %664 = vmatprep.subr.bf16.mxu0 0
  %665 = vmatpush2.bf16.msra.mxu0 0
  %666 = vmatprep.subr.bf16.mxu0 0
  %667 = vmatpush2.bf16.msra.mxu0 0
  %668 = vmatprep.subr.bf16.mxu0 0
  %669 = vmatpush2.bf16.msra.mxu0 0
  %670 = vmatprep.subr.bf16.mxu0 0
  %671 = vmatpush2.bf16.msra.mxu0 0
  %672 = vmatprep.subr.bf16.mxu0 0
  %673 = vmatpush2.bf16.msra.mxu0 0
  %674 = vmatprep.mubr.bf16.mxu0 0
  %675 = vmatmul.mubr.bf16.gmra.mxu0 %v637
  %v676 = vpop.f32.mrf.mxu0
  %v677 = vadd.f32 0.0, %v676
  %v678 = vpop.f32.mrf.mxu0
  %v679 = vpop.f32.mrf.mxu0
  %v680 = vpop.f32.mrf.mxu0
  %681 = vdwg.mxu0
  %v682 = vrcp.pop %v632
  %v683 = vmul.f32 %v677, %v682
  %v685 = vrot.slane %v203, 4
  %v688 = vrot.slane %v363, 4
  %v691 = vrot.slane %v523, 4
  %v694 = vrot.slane %v683, 4
  %v696 = vsel %vm78, %v123, %v685
  %v697 = vsel %vm78, %v283, %v688
  %v698 = vsel %vm78, %v443, %v691
  %v699 = vsel %vm78, %v603, %v694
  %700 = vxpose.xlu0.b32.start [1/16] %v696, 128
  %701 = vxpose.xlu0.b32.cont [2/16] %v697, 128
  %702 = vxpose.xlu0.b32.cont [3/16] %v698, 128
  %703 = vxpose.xlu0.b32.cont [4/16] %v699, 128
  %704 = vxpose.xlu0.b32.cont [5/16] 0.0, 128
  %705 = vxpose.xlu0.b32.cont [6/16] 0.0, 128
  %706 = vxpose.xlu0.b32.cont [7/16] 0.0, 128
  %707 = vxpose.xlu0.b32.cont [8/16] 0.0, 128
  %708 = vxpose.xlu0.b32.cont [9/16] 0.0, 128
  %709 = vxpose.xlu0.b32.cont [10/16] 0.0, 128
  %710 = vxpose.xlu0.b32.cont [11/16] 0.0, 128
  %711 = vxpose.xlu0.b32.cont [12/16] 0.0, 128
  %712 = vxpose.xlu0.b32.cont [13/16] 0.0, 128
  %713 = vxpose.xlu0.b32.cont [14/16] 0.0, 128
  %714 = vxpose.xlu0.b32.cont [15/16] 0.0, 128
  %715 = vxpose.xlu0.b32.end [16/16] 0.0, 128
  %v716 = vpop.trf.xlu0
  %v717 = vpop.trf.xlu0
  %v718 = vpop.trf.xlu0
  %v719 = vpop.trf.xlu0
  %v720 = vpop.trf.xlu0
  %v721 = vpop.trf.xlu0
  %v722 = vpop.trf.xlu0
  %v723 = vpop.trf.xlu0
  %v724 = vpop.trf.xlu0
  %v725 = vpop.trf.xlu0
  %v726 = vpop.trf.xlu0
  %v727 = vpop.trf.xlu0
  %v728 = vpop.trf.xlu0
  %v729 = vpop.trf.xlu0
  %v730 = vpop.trf.xlu0
  %v731 = vpop.trf.xlu0
  %v732 = vld [vmem:[%s4] sm:$0x1]
  %v734 = vlaneseq
  %v735 = vshrl.u32 %v734, 7
  %v736 = vsub.s32 0, %v735
  %v737 = vrot.slane %v732, %v736
  %v739 = vadd.f32 %v716, %v737
  %v740 = vld [vmem:[%s5] sm:$0xff]
  %v741 = vpack.c.bf16 %v740, %v740
  %v742 = vld [vmem:[%s6] sm:$0xff]
  %v743 = vld [vmem:[%s6 + $0x8] sm:$0xff]
  %v744 = vpack.c.bf16 %v743, %v742
  %v745 = vld [vmem:[%s7] sm:$0x1]
  %v747 = vlaneseq
  %v748 = vshrl.u32 %v747, 7
  %v749 = vsub.s32 0, %v748
  %v750 = vrot.slane %v745, %v749
  %vm752 = vcmask 130048
  %v754 = vsel %vm752, %v741, 0
  %756 = vmatprep.subr.bf16.mxu0 0
  %757 = vmatpush1.bf16.msra.mxu0 0
  %758 = vmatprep.subr.bf16.mxu0 0
  %759 = vmatpush1.bf16.msra.mxu0 0
  %760 = vmatprep.subr.bf16.mxu0 0
  %761 = vmatpush1.bf16.msra.mxu0 0
  %762 = vmatprep.subr.bf16.mxu0 0
  %763 = vmatpush1.bf16.msra.mxu0 0
  %764 = vmatprep.subr.bf16.mxu0 0
  %765 = vmatpush1.bf16.msra.mxu0 0
  %766 = vmatprep.subr.bf16.mxu0 0
  %767 = vmatpush1.bf16.msra.mxu0 0
  %768 = vmatprep.subr.bf16.mxu0 0
  %769 = vmatpush1.bf16.msra.mxu0 0
  %770 = vmatprep.subr.bf16.mxu0 0
  %771 = vmatpush1.bf16.msra.mxu0 %v744
  %772 = vmatprep.subr.bf16.mxu0 0
  %773 = vmatpush2.bf16.msra.mxu0 0
  %774 = vmatprep.subr.bf16.mxu0 0
  %775 = vmatpush2.bf16.msra.mxu0 0
  %776 = vmatprep.subr.bf16.mxu0 0
  %777 = vmatpush2.bf16.msra.mxu0 0
  %778 = vmatprep.subr.bf16.mxu0 0
  %779 = vmatpush2.bf16.msra.mxu0 0
  %780 = vmatprep.subr.bf16.mxu0 0
  %781 = vmatpush2.bf16.msra.mxu0 0
  %782 = vmatprep.subr.bf16.mxu0 0
  %783 = vmatpush2.bf16.msra.mxu0 0
  %784 = vmatprep.subr.bf16.mxu0 0
  %785 = vmatpush2.bf16.msra.mxu0 0
  %786 = vmatprep.subr.bf16.mxu0 0
  %787 = vmatpush2.bf16.msra.mxu0 0
  %788 = vmatprep.mubr.bf16.mxu0 0
  %789 = vmatmul.mubr.bf16.gmra.mxu0 %v754
  %v790 = vpop.f32.mrf.mxu0
  %v791 = vadd.f32 %v750, %v790
  %v792 = vpop.f32.mrf.mxu0
  %v793 = vpop.f32.mrf.mxu0
  %v794 = vpop.f32.mrf.mxu0
  %795 = vdwg.mxu0
  %v796 = vadd.f32 %v739, %v791
  %vm797 = vcmask 261120
  %v798 = vsel %vm797, %v796, 0.0
  %799 = vadd.xlane.f32.xlu0 %v798
  %v800 = vpop.xlane.xlu0 %799
  %v801 = vrcp.pop 32.0
  %v802 = vmul.f32 %v800, %v801
  %v803 = vsub.f32 %v796, %v802
  %v804 = vmul.f32 %v803, %v803
  %v805 = vsel %vm797, %v804, 0.0
  %806 = vadd.xlane.f32.xlu0 %v805
  %v807 = vpop.xlane.xlu0 %806
  %v808 = vmul.f32 %v807, %v801
  %v809 = vadd.f32 %v808, 1e-05
  %v810 = vrsqrt.pop %v809
  %v811 = vmul.f32 %v803, %v810
  %v812 = vld [vmem:[%s8] sm:$0x1]
  %v814 = vlaneseq
  %v815 = vshrl.u32 %v814, 7
  %v816 = vsub.s32 0, %v815
  %v817 = vrot.slane %v812, %v816
  %v819 = vmul.f32 %v811, %v817
  %v820 = vld [vmem:[%s9] sm:$0x1]
  %v822 = vlaneseq
  %v823 = vshrl.u32 %v822, 7
  %v824 = vsub.s32 0, %v823
  %v825 = vrot.slane %v820, %v824
  %v827 = vadd.f32 %v819, %v825
  %vm828 = vcmp.gt.f32.partialorder %v827, 0.0
  %v829 = vmin.f32 %v827, 0.0
  %v830 = vmul.f32 %v829, 1.442695
  %v831 = vpow.pop %v830
  %v832 = vsub.f32 %v831, 1.0
  %v833 = vsel %vm828, %v827, %v832
  %v834 = vpack.c.bf16 %v833, %v833
  %vm835 = vcmask 257024
  %836 = vst.msk [vmem:[%s10] sm:$0xf] %vm835, %v834
  // Predicated region
  $region42: #{resgat_forward.7} parent=0 // pred_check
    _
  $region43: #{resgat_forward.7} parent=0 // pred_check_branch
    %838 = sbr.rel (0) target = $region45
  $region44: #{resgat_forward.7} parent=0 // pred_region
    _
  $region45: #{resgat_forward.7} parent=0 // pred_fallthru
    _
  // Predicated region
  $region46: #{resgat_forward.7} parent=0 // pred_check
    _
  $region47: #{resgat_forward.7} parent=0 // pred_check_branch
    %840 = sbr.rel (0) target = $region49
  $region48: #{resgat_forward.7} parent=0 // pred_region
    _
  $region49: #{resgat_forward.7} parent=0 // pred_fallthru
    _

// kernel: resgat_forward.9
$region0: #{resgat_forward.9}
  #allocation0 [shape = 'u32[]', space=smem, size = 0x4, offset = 0x4, fixed_abs, tag = 'smem constant byte address 0x4 - core index']
  #allocation1 [shape = 'u32[144,128]{1,0:T(1,128)}', space=vmem, size = 0x12000, scoped, tag = 'internal scratch']
  %s0 = inlined_call_operand.vmem [shape: s8[8,8], index: 0, kind: input, shape index: {}]
  %s1 = inlined_call_operand.vmem [shape: bf16[8,4,8], index: 1, kind: input, shape index: {}]
  %s2 = inlined_call_operand.vmem [shape: f32[8,8], index: 2, kind: input, shape index: {}]
  %s3 = inlined_call_operand.vmem [shape: f32[8,8], index: 3, kind: input, shape index: {}]
  %s4 = inlined_call_operand.vmem [shape: f32[1,32], index: 4, kind: input, shape index: {}]
  %s5 = inlined_call_operand.vmem [shape: bf16[8,32], index: 5, kind: input, shape index: {}]
  %s6 = inlined_call_operand.vmem [shape: f32[1,32], index: 6, kind: input, shape index: {}]
  %s7 = inlined_call_operand.vmem [shape: f32[1,32], index: 7, kind: input, shape index: {}]
  %s8 = inlined_call_operand.vmem [shape: bf16[8,32], index: 8, kind: output, shape index: {}]
  %s9 = sld [smem:[#allocation0]]
  $region42: #{resgat_forward.9} parent=0
    _
  %s11 = ssub.s32 1, %s9
  %s12 = scalar_select 0, %s11, %s9
  // Predicated region
  $region2: #{resgat_forward.9} parent=0 // pred_check
    _
  $region3: #{resgat_forward.9} parent=0 // pred_check_branch
    %14 = sbr.rel (0) target = $region5
  $region4: #{resgat_forward.9} parent=0 // pred_region
    _
  $region5: #{resgat_forward.9} parent=0 // pred_fallthru
    _
  // Predicated region
  $region6: #{resgat_forward.9} parent=0 // pred_check
    _
  $region7: #{resgat_forward.9} parent=0 // pred_check_branch
    %16 = sbr.rel (0) target = $region9
  $region8: #{resgat_forward.9} parent=0 // pred_region
    _
  $region9: #{resgat_forward.9} parent=0 // pred_fallthru
    _
  // Predicated region
  $region10: #{resgat_forward.9} parent=0 // pred_check
    _
  $region11: #{resgat_forward.9} parent=0 // pred_check_branch
    %18 = sbr.rel (0) target = $region13
  $region12: #{resgat_forward.9} parent=0 // pred_region
    _
  $region13: #{resgat_forward.9} parent=0 // pred_fallthru
    _
  // Predicated region
  $region14: #{resgat_forward.9} parent=0 // pred_check
    _
  $region15: #{resgat_forward.9} parent=0 // pred_check_branch
    %20 = sbr.rel (0) target = $region17
  $region16: #{resgat_forward.9} parent=0 // pred_region
    _
  $region17: #{resgat_forward.9} parent=0 // pred_fallthru
    _
  // Predicated region
  $region18: #{resgat_forward.9} parent=0 // pred_check
    _
  $region19: #{resgat_forward.9} parent=0 // pred_check_branch
    %22 = sbr.rel (0) target = $region21
  $region20: #{resgat_forward.9} parent=0 // pred_region
    _
  $region21: #{resgat_forward.9} parent=0 // pred_fallthru
    _
  // Predicated region
  $region22: #{resgat_forward.9} parent=0 // pred_check
    _
  $region23: #{resgat_forward.9} parent=0 // pred_check_branch
    %24 = sbr.rel (0) target = $region25
  $region24: #{resgat_forward.9} parent=0 // pred_region
    _
  $region25: #{resgat_forward.9} parent=0 // pred_fallthru
    _
  // Predicated region
  $region26: #{resgat_forward.9} parent=0 // pred_check
    _
  $region27: #{resgat_forward.9} parent=0 // pred_check_branch
    %26 = sbr.rel (0) target = $region29
  $region28: #{resgat_forward.9} parent=0 // pred_region
    _
  $region29: #{resgat_forward.9} parent=0 // pred_fallthru
    _
  // Predicated region
  $region30: #{resgat_forward.9} parent=0 // pred_check
    _
  $region31: #{resgat_forward.9} parent=0 // pred_check_branch
    %28 = sbr.rel (0) target = $region33
  $region32: #{resgat_forward.9} parent=0 // pred_region
    _
  $region33: #{resgat_forward.9} parent=0 // pred_fallthru
    _
  %v30 = vld [vmem:[%s0] sm:$0x3]
  %v31 = vunpack.c.0.s8 %v30
  %v32 = vcvt.s32.f32 %v31
  %v33 = vmul.f32 %v32, -1e+09
  %v34 = vld [vmem:[%s2] sm:$0xff]
  %v35 = vld [vmem:[%s3] sm:$0xff]
  %37 = vset.pattern.permute.xlu0 0
  %38 = vperm.xlu0 %37, %v35
  %v39 = vpop.permute.xlu0 %38
  %v41 = vlaneseq
  %v42 = vshrl.u32 %v41, 7
  %v43 = vsub.s32 0, %v42
  %v44 = vrot.slane %v34, %v43
  %v45 = vadd.f32 %v39, %v44
  %v46 = vmul.f32 %v45, 0.2
  %v47 = vmax.f32 %v45, %v46
  %v48 = vadd.f32 %v47, %v33
  %vm49 = vcmask 64512
  %v50 = vsel %vm49, %v48, -inf
  %v51 = vrot.slane %v50, 4
  %v52 = vmax.f32 %v50, %v51
  %v53 = vrot.slane %v52, 2
  %v54 = vmax.f32 %v52, %v53
  %v55 = vrot.slane %v54, 1
  %v56 = vmax.f32 %v54, %v55
  %v57 = vsub.f32 %v48, %v56
  %v58 = vmul.f32 %v57, 1.442695
  %v59 = vpow.pop %v58
  %v60 = vsel %vm49, %v59, 0.0
  %v61 = vrot.slane %v60, 4
  %v62 = vadd.f32 %v60, %v61
  %v63 = vrot.slane %v62, 2
  %v64 = vadd.f32 %v62, %v63
  %v65 = vrot.slane %v64, 1
  %v66 = vadd.f32 %v64, %v65
  %v67 = vld [vmem:[%s1] sm:$0x3]
  %v68 = vpack.c.bf16 %v59, %v59
  %v70 = vsel %vm49, %v67, 0
  %vm72 = vcmask 1043456
  %v74 = vsel %vm72, %v68, 0
  %76 = vmatprep.subr.bf16.mxu0 0
  %77 = vmatpush1.bf16.msra.mxu0 0
  %78 = vmatprep.subr.bf16.mxu0 0
  %79 = vmatpush1.bf16.msra.mxu0 0
  %80 = vmatprep.subr.bf16.mxu0 0
  %81 = vmatpush1.bf16.msra.mxu0 0
  %82 = vmatprep.subr.bf16.mxu0 0
  %83 = vmatpush1.bf16.msra.mxu0 0
  %84 = vmatprep.subr.bf16.mxu0 0
  %85 = vmatpush1.bf16.msra.mxu0 0
  %86 = vmatprep.subr.bf16.mxu0 0
  %87 = vmatpush1.bf16.msra.mxu0 0
  %88 = vmatprep.subr.bf16.mxu0 0
  %89 = vmatpush1.bf16.msra.mxu0 0
  %90 = vmatprep.subr.bf16.mxu0 0
  %91 = vmatpush1.bf16.msra.mxu0 %v74
  %92 = vmatprep.subr.bf16.mxu0 0
  %93 = vmatpush2.bf16.msra.mxu0 0
  %94 = vmatprep.subr.bf16.mxu0 0
  %95 = vmatpush2.bf16.msra.mxu0 0
  %96 = vmatprep.subr.bf16.mxu0 0
  %97 = vmatpush2.bf16.msra.mxu0 0
  %98 = vmatprep.subr.bf16.mxu0 0
  %99 = vmatpush2.bf16.msra.mxu0 0
  %100 = vmatprep.subr.bf16.mxu0 0
  %101 = vmatpush2.bf16.msra.mxu0 0
  %102 = vmatprep.subr.bf16.mxu0 0
  %103 = vmatpush2.bf16.msra.mxu0 0
  %104 = vmatprep.subr.bf16.mxu0 0
  %105 = vmatpush2.bf16.msra.mxu0 0
  %106 = vmatprep.subr.bf16.mxu0 0
  %107 = vmatpush2.bf16.msra.mxu0 0
  %108 = vmatprep.mubr.bf16.mxu0 0
  %109 = vmatmul.mubr.bf16.gmra.mxu0 %v70
  %v110 = vpop.f32.mrf.mxu0
  %v111 = vadd.f32 0.0, %v110
  %v112 = vpop.f32.mrf.mxu0
  %v113 = vpop.f32.mrf.mxu0
  %v114 = vpop.f32.mrf.mxu0
  %115 = vdwg.mxu0
  %v116 = vrcp.pop %v66
  %v117 = vmul.f32 %v111, %v116
  %118 = vset.pattern.permute.xlu0 1
  %119 = vperm.xlu0 %118, %v35
  %v120 = vpop.permute.xlu0 %119
  %v122 = vlaneseq
  %v123 = vshrl.u32 %v122, 7
  %v124 = vsub.s32 1, %v123
  %v125 = vrot.slane %v34, %v124
  %v126 = vadd.f32 %v120, %v125
  %v127 = vmul.f32 %v126, 0.2
  %v128 = vmax.f32 %v126, %v127
  %v129 = vadd.f32 %v128, %v33
  %v130 = vsel %vm49, %v129, -inf
  %v131 = vrot.slane %v130, 4
  %v132 = vmax.f32 %v130, %v131
  %v133 = vrot.slane %v132, 2
  %v134 = vmax.f32 %v132, %v133
  %v135 = vrot.slane %v134, 1
  %v136 = vmax.f32 %v134, %v135
  %v137 = vsub.f32 %v129, %v136
  %v138 = vmul.f32 %v137, 1.442695
  %v139 = vpow.pop %v138
  %v140 = vsel %vm49, %v139, 0.0
  %v141 = vrot.slane %v140, 4
  %v142 = vadd.f32 %v140, %v141
  %v143 = vrot.slane %v142, 2
  %v144 = vadd.f32 %v142, %v143
  %v145 = vrot.slane %v144, 1
  %v146 = vadd.f32 %v144, %v145
  %s147 = scalar_lea.vmem %s1, 2
  %v148 = vld [vmem:[%s147] sm:$0x3]
  %v149 = vpack.c.bf16 %v139, %v139
  %v151 = vsel %vm49, %v148, 0
  %v154 = vsel %vm72, %v149, 0
  %156 = vmatprep.subr.bf16.mxu0 0
  %157 = vmatpush1.bf16.msra.mxu0 0
  %158 = vmatprep.subr.bf16.mxu0 0
  %159 = vmatpush1.bf16.msra.mxu0 0
  %160 = vmatprep.subr.bf16.mxu0 0
  %161 = vmatpush1.bf16.msra.mxu0 0
  %162 = vmatprep.subr.bf16.mxu0 0
  %163 = vmatpush1.bf16.msra.mxu0 0
  %164 = vmatprep.subr.bf16.mxu0 0
  %165 = vmatpush1.bf16.msra.mxu0 0
  %166 = vmatprep.subr.bf16.mxu0 0
  %167 = vmatpush1.bf16.msra.mxu0 0
  %168 = vmatprep.subr.bf16.mxu0 0
  %169 = vmatpush1.bf16.msra.mxu0 0
  %170 = vmatprep.subr.bf16.mxu0 0
  %171 = vmatpush1.bf16.msra.mxu0 %v154
  %172 = vmatprep.subr.bf16.mxu0 0
  %173 = vmatpush2.bf16.msra.mxu0 0
  %174 = vmatprep.subr.bf16.mxu0 0
  %175 = vmatpush2.bf16.msra.mxu0 0
  %176 = vmatprep.subr.bf16.mxu0 0
  %177 = vmatpush2.bf16.msra.mxu0 0
  %178 = vmatprep.subr.bf16.mxu0 0
  %179 = vmatpush2.bf16.msra.mxu0 0
  %180 = vmatprep.subr.bf16.mxu0 0
  %181 = vmatpush2.bf16.msra.mxu0 0
  %182 = vmatprep.subr.bf16.mxu0 0
  %183 = vmatpush2.bf16.msra.mxu0 0
  %184 = vmatprep.subr.bf16.mxu0 0
  %185 = vmatpush2.bf16.msra.mxu0 0
  %186 = vmatprep.subr.bf16.mxu0 0
  %187 = vmatpush2.bf16.msra.mxu0 0
  %188 = vmatprep.mubr.bf16.mxu0 0
  %189 = vmatmul.mubr.bf16.gmra.mxu0 %v151
  %v190 = vpop.f32.mrf.mxu0
  %v191 = vadd.f32 0.0, %v190
  %v192 = vpop.f32.mrf.mxu0
  %v193 = vpop.f32.mrf.mxu0
  %v194 = vpop.f32.mrf.mxu0
  %195 = vdwg.mxu0
  %v196 = vrcp.pop %v146
  %v197 = vmul.f32 %v191, %v196
  %198 = vset.pattern.permute.xlu0 2
  %199 = vperm.xlu0 %198, %v35
  %v200 = vpop.permute.xlu0 %199
  %v202 = vlaneseq
  %v203 = vshrl.u32 %v202, 7
  %v204 = vsub.s32 2, %v203
  %v205 = vrot.slane %v34, %v204
  %v206 = vadd.f32 %v200, %v205
  %v207 = vmul.f32 %v206, 0.2
  %v208 = vmax.f32 %v206, %v207
  %v209 = vadd.f32 %v208, %v33
  %v210 = vsel %vm49, %v209, -inf
  %v211 = vrot.slane %v210, 4
  %v212 = vmax.f32 %v210, %v211
  %v213 = vrot.slane %v212, 2
  %v214 = vmax.f32 %v212, %v213
  %v215 = vrot.slane %v214, 1
  %v216 = vmax.f32 %v214, %v215
  %v217 = vsub.f32 %v209, %v216
  %v218 = vmul.f32 %v217, 1.442695
  %v219 = vpow.pop %v218
  %v220 = vsel %vm49, %v219, 0.0
  %v221 = vrot.slane %v220, 4
  %v222 = vadd.f32 %v220, %v221
  %v223 = vrot.slane %v222, 2
  %v224 = vadd.f32 %v222, %v223
  %v225 = vrot.slane %v224, 1
  %v226 = vadd.f32 %v224, %v225
  %s227 = scalar_lea.vmem %s1, 4
  %v228 = vld [vmem:[%s227] sm:$0x3]
  %v229 = vpack.c.bf16 %v219, %v219
  %v231 = vsel %vm49, %v228, 0
  %v234 = vsel %vm72, %v229, 0
  %236 = vmatprep.subr.bf16.mxu0 0
  %237 = vmatpush1.bf16.msra.mxu0 0
  %238 = vmatprep.subr.bf16.mxu0 0
  %239 = vmatpush1.bf16.msra.mxu0 0
  %240 = vmatprep.subr.bf16.mxu0 0
  %241 = vmatpush1.bf16.msra.mxu0 0
  %242 = vmatprep.subr.bf16.mxu0 0
  %243 = vmatpush1.bf16.msra.mxu0 0
  %244 = vmatprep.subr.bf16.mxu0 0
  %245 = vmatpush1.bf16.msra.mxu0 0
  %246 = vmatprep.subr.bf16.mxu0 0
  %247 = vmatpush1.bf16.msra.mxu0 0
  %248 = vmatprep.subr.bf16.mxu0 0
  %249 = vmatpush1.bf16.msra.mxu0 0
  %250 = vmatprep.subr.bf16.mxu0 0
  %251 = vmatpush1.bf16.msra.mxu0 %v234
  %252 = vmatprep.subr.bf16.mxu0 0
  %253 = vmatpush2.bf16.msra.mxu0 0
  %254 = vmatprep.subr.bf16.mxu0 0
  %255 = vmatpush2.bf16.msra.mxu0 0
  %256 = vmatprep.subr.bf16.mxu0 0
  %257 = vmatpush2.bf16.msra.mxu0 0
  %258 = vmatprep.subr.bf16.mxu0 0
  %259 = vmatpush2.bf16.msra.mxu0 0
  %260 = vmatprep.subr.bf16.mxu0 0
  %261 = vmatpush2.bf16.msra.mxu0 0
  %262 = vmatprep.subr.bf16.mxu0 0
  %263 = vmatpush2.bf16.msra.mxu0 0
  %264 = vmatprep.subr.bf16.mxu0 0
  %265 = vmatpush2.bf16.msra.mxu0 0
  %266 = vmatprep.subr.bf16.mxu0 0
  %267 = vmatpush2.bf16.msra.mxu0 0
  %268 = vmatprep.mubr.bf16.mxu0 0
  %269 = vmatmul.mubr.bf16.gmra.mxu0 %v231
  %v270 = vpop.f32.mrf.mxu0
  %v271 = vadd.f32 0.0, %v270
  %v272 = vpop.f32.mrf.mxu0
  %v273 = vpop.f32.mrf.mxu0
  %v274 = vpop.f32.mrf.mxu0
  %275 = vdwg.mxu0
  %v276 = vrcp.pop %v226
  %v277 = vmul.f32 %v271, %v276
  %278 = vset.pattern.permute.xlu0 3
  %279 = vperm.xlu0 %278, %v35
  %v280 = vpop.permute.xlu0 %279
  %v282 = vlaneseq
  %v283 = vshrl.u32 %v282, 7
  %v284 = vsub.s32 3, %v283
  %v285 = vrot.slane %v34, %v284
  %v286 = vadd.f32 %v280, %v285
  %v287 = vmul.f32 %v286, 0.2
  %v288 = vmax.f32 %v286, %v287
  %v289 = vadd.f32 %v288, %v33
  %v290 = vsel %vm49, %v289, -inf
  %v291 = vrot.slane %v290, 4
  %v292 = vmax.f32 %v290, %v291
  %v293 = vrot.slane %v292, 2
  %v294 = vmax.f32 %v292, %v293
  %v295 = vrot.slane %v294, 1
  %v296 = vmax.f32 %v294, %v295
  %v297 = vsub.f32 %v289, %v296
  %v298 = vmul.f32 %v297, 1.442695
  %v299 = vpow.pop %v298
  %v300 = vsel %vm49, %v299, 0.0
  %v301 = vrot.slane %v300, 4
  %v302 = vadd.f32 %v300, %v301
  %v303 = vrot.slane %v302, 2
  %v304 = vadd.f32 %v302, %v303
  %v305 = vrot.slane %v304, 1
  %v306 = vadd.f32 %v304, %v305
  %s307 = scalar_lea.vmem %s1, 6
  %v308 = vld [vmem:[%s307] sm:$0x3]
  %v309 = vpack.c.bf16 %v299, %v299
  %v311 = vsel %vm49, %v308, 0
  %v314 = vsel %vm72, %v309, 0
  %316 = vmatprep.subr.bf16.mxu0 0
  %317 = vmatpush1.bf16.msra.mxu0 0
  %318 = vmatprep.subr.bf16.mxu0 0
  %319 = vmatpush1.bf16.msra.mxu0 0
  %320 = vmatprep.subr.bf16.mxu0 0
  %321 = vmatpush1.bf16.msra.mxu0 0
  %322 = vmatprep.subr.bf16.mxu0 0
  %323 = vmatpush1.bf16.msra.mxu0 0
  %324 = vmatprep.subr.bf16.mxu0 0
  %325 = vmatpush1.bf16.msra.mxu0 0
  %326 = vmatprep.subr.bf16.mxu0 0
  %327 = vmatpush1.bf16.msra.mxu0 0
  %328 = vmatprep.subr.bf16.mxu0 0
  %329 = vmatpush1.bf16.msra.mxu0 0
  %330 = vmatprep.subr.bf16.mxu0 0
  %331 = vmatpush1.bf16.msra.mxu0 %v314
  %332 = vmatprep.subr.bf16.mxu0 0
  %333 = vmatpush2.bf16.msra.mxu0 0
  %334 = vmatprep.subr.bf16.mxu0 0
  %335 = vmatpush2.bf16.msra.mxu0 0
  %336 = vmatprep.subr.bf16.mxu0 0
  %337 = vmatpush2.bf16.msra.mxu0 0
  %338 = vmatprep.subr.bf16.mxu0 0
  %339 = vmatpush2.bf16.msra.mxu0 0
  %340 = vmatprep.subr.bf16.mxu0 0
  %341 = vmatpush2.bf16.msra.mxu0 0
  %342 = vmatprep.subr.bf16.mxu0 0
  %343 = vmatpush2.bf16.msra.mxu0 0
  %344 = vmatprep.subr.bf16.mxu0 0
  %345 = vmatpush2.bf16.msra.mxu0 0
  %346 = vmatprep.subr.bf16.mxu0 0
  %347 = vmatpush2.bf16.msra.mxu0 0
  %348 = vmatprep.mubr.bf16.mxu0 0
  %349 = vmatmul.mubr.bf16.gmra.mxu0 %v311
  %v350 = vpop.f32.mrf.mxu0
  %v351 = vadd.f32 0.0, %v350
  %v352 = vpop.f32.mrf.mxu0
  %v353 = vpop.f32.mrf.mxu0
  %v354 = vpop.f32.mrf.mxu0
  %355 = vdwg.mxu0
  %v356 = vrcp.pop %v306
  %v357 = vmul.f32 %v351, %v356
  %358 = vset.pattern.permute.xlu0 4
  %359 = vperm.xlu0 %358, %v35
  %v360 = vpop.permute.xlu0 %359
  %v362 = vlaneseq
  %v363 = vshrl.u32 %v362, 7
  %v364 = vsub.s32 4, %v363
  %v365 = vrot.slane %v34, %v364
  %v366 = vadd.f32 %v360, %v365
  %v367 = vmul.f32 %v366, 0.2
  %v368 = vmax.f32 %v366, %v367
  %v369 = vadd.f32 %v368, %v33
  %v370 = vsel %vm49, %v369, -inf
  %v371 = vrot.slane %v370, 4
  %v372 = vmax.f32 %v370, %v371
  %v373 = vrot.slane %v372, 2
  %v374 = vmax.f32 %v372, %v373
  %v375 = vrot.slane %v374, 1
  %v376 = vmax.f32 %v374, %v375
  %v377 = vsub.f32 %v369, %v376
  %v378 = vmul.f32 %v377, 1.442695
  %v379 = vpow.pop %v378
  %v380 = vsel %vm49, %v379, 0.0
  %v381 = vrot.slane %v380, 4
  %v382 = vadd.f32 %v380, %v381
  %v383 = vrot.slane %v382, 2
  %v384 = vadd.f32 %v382, %v383
  %v385 = vrot.slane %v384, 1
  %v386 = vadd.f32 %v384, %v385
  %s387 = scalar_lea.vmem %s1, 8
  %v388 = vld [vmem:[%s387] sm:$0x3]
  %v389 = vpack.c.bf16 %v379, %v379
  %v391 = vsel %vm49, %v388, 0
  %v394 = vsel %vm72, %v389, 0
  %396 = vmatprep.subr.bf16.mxu0 0
  %397 = vmatpush1.bf16.msra.mxu0 0
  %398 = vmatprep.subr.bf16.mxu0 0
  %399 = vmatpush1.bf16.msra.mxu0 0
  %400 = vmatprep.subr.bf16.mxu0 0
  %401 = vmatpush1.bf16.msra.mxu0 0
  %402 = vmatprep.subr.bf16.mxu0 0
  %403 = vmatpush1.bf16.msra.mxu0 0
  %404 = vmatprep.subr.bf16.mxu0 0
  %405 = vmatpush1.bf16.msra.mxu0 0
  %406 = vmatprep.subr.bf16.mxu0 0
  %407 = vmatpush1.bf16.msra.mxu0 0
  %408 = vmatprep.subr.bf16.mxu0 0
  %409 = vmatpush1.bf16.msra.mxu0 0
  %410 = vmatprep.subr.bf16.mxu0 0
  %411 = vmatpush1.bf16.msra.mxu0 %v394
  %412 = vmatprep.subr.bf16.mxu0 0
  %413 = vmatpush2.bf16.msra.mxu0 0
  %414 = vmatprep.subr.bf16.mxu0 0
  %415 = vmatpush2.bf16.msra.mxu0 0
  %416 = vmatprep.subr.bf16.mxu0 0
  %417 = vmatpush2.bf16.msra.mxu0 0
  %418 = vmatprep.subr.bf16.mxu0 0
  %419 = vmatpush2.bf16.msra.mxu0 0
  %420 = vmatprep.subr.bf16.mxu0 0
  %421 = vmatpush2.bf16.msra.mxu0 0
  %422 = vmatprep.subr.bf16.mxu0 0
  %423 = vmatpush2.bf16.msra.mxu0 0
  %424 = vmatprep.subr.bf16.mxu0 0
  %425 = vmatpush2.bf16.msra.mxu0 0
  %426 = vmatprep.subr.bf16.mxu0 0
  %427 = vmatpush2.bf16.msra.mxu0 0
  %428 = vmatprep.mubr.bf16.mxu0 0
  %429 = vmatmul.mubr.bf16.gmra.mxu0 %v391
  %v430 = vpop.f32.mrf.mxu0
  %v431 = vadd.f32 0.0, %v430
  %v432 = vpop.f32.mrf.mxu0
  %v433 = vpop.f32.mrf.mxu0
  %v434 = vpop.f32.mrf.mxu0
  %435 = vdwg.mxu0
  %v436 = vrcp.pop %v386
  %v437 = vmul.f32 %v431, %v436
  %438 = vset.pattern.permute.xlu0 5
  %439 = vperm.xlu0 %438, %v35
  %v440 = vpop.permute.xlu0 %439
  %v442 = vlaneseq
  %v443 = vshrl.u32 %v442, 7
  %v444 = vsub.s32 5, %v443
  %v445 = vrot.slane %v34, %v444
  %v446 = vadd.f32 %v440, %v445
  %v447 = vmul.f32 %v446, 0.2
  %v448 = vmax.f32 %v446, %v447
  %v449 = vadd.f32 %v448, %v33
  %v450 = vsel %vm49, %v449, -inf
  %v451 = vrot.slane %v450, 4
  %v452 = vmax.f32 %v450, %v451
  %v453 = vrot.slane %v452, 2
  %v454 = vmax.f32 %v452, %v453
  %v455 = vrot.slane %v454, 1
  %v456 = vmax.f32 %v454, %v455
  %v457 = vsub.f32 %v449, %v456
  %v458 = vmul.f32 %v457, 1.442695
  %v459 = vpow.pop %v458
  %v460 = vsel %vm49, %v459, 0.0
  %v461 = vrot.slane %v460, 4
  %v462 = vadd.f32 %v460, %v461
  %v463 = vrot.slane %v462, 2
  %v464 = vadd.f32 %v462, %v463
  %v465 = vrot.slane %v464, 1
  %v466 = vadd.f32 %v464, %v465
  %s467 = scalar_lea.vmem %s1, 10
  %v468 = vld [vmem:[%s467] sm:$0x3]
  %v469 = vpack.c.bf16 %v459, %v459
  %v471 = vsel %vm49, %v468, 0
  %v474 = vsel %vm72, %v469, 0
  %476 = vmatprep.subr.bf16.mxu0 0
  %477 = vmatpush1.bf16.msra.mxu0 0
  %478 = vmatprep.subr.bf16.mxu0 0
  %479 = vmatpush1.bf16.msra.mxu0 0
  %480 = vmatprep.subr.bf16.mxu0 0
  %481 = vmatpush1.bf16.msra.mxu0 0
  %482 = vmatprep.subr.bf16.mxu0 0
  %483 = vmatpush1.bf16.msra.mxu0 0
  %484 = vmatprep.subr.bf16.mxu0 0
  %485 = vmatpush1.bf16.msra.mxu0 0
  %486 = vmatprep.subr.bf16.mxu0 0
  %487 = vmatpush1.bf16.msra.mxu0 0
  %488 = vmatprep.subr.bf16.mxu0 0
  %489 = vmatpush1.bf16.msra.mxu0 0
  %490 = vmatprep.subr.bf16.mxu0 0
  %491 = vmatpush1.bf16.msra.mxu0 %v474
  %492 = vmatprep.subr.bf16.mxu0 0
  %493 = vmatpush2.bf16.msra.mxu0 0
  %494 = vmatprep.subr.bf16.mxu0 0
  %495 = vmatpush2.bf16.msra.mxu0 0
  %496 = vmatprep.subr.bf16.mxu0 0
  %497 = vmatpush2.bf16.msra.mxu0 0
  %498 = vmatprep.subr.bf16.mxu0 0
  %499 = vmatpush2.bf16.msra.mxu0 0
  %500 = vmatprep.subr.bf16.mxu0 0
  %501 = vmatpush2.bf16.msra.mxu0 0
  %502 = vmatprep.subr.bf16.mxu0 0
  %503 = vmatpush2.bf16.msra.mxu0 0
  %504 = vmatprep.subr.bf16.mxu0 0
  %505 = vmatpush2.bf16.msra.mxu0 0
  %506 = vmatprep.subr.bf16.mxu0 0
  %507 = vmatpush2.bf16.msra.mxu0 0
  %508 = vmatprep.mubr.bf16.mxu0 0
  %509 = vmatmul.mubr.bf16.gmra.mxu0 %v471
  %v510 = vpop.f32.mrf.mxu0
  %v511 = vadd.f32 0.0, %v510
  %v512 = vpop.f32.mrf.mxu0
  %v513 = vpop.f32.mrf.mxu0
  %v514 = vpop.f32.mrf.mxu0
  %515 = vdwg.mxu0
  %v516 = vrcp.pop %v466
  %v517 = vmul.f32 %v511, %v516
  %518 = vset.pattern.permute.xlu0 6
  %519 = vperm.xlu0 %518, %v35
  %v520 = vpop.permute.xlu0 %519
  %v522 = vlaneseq
  %v523 = vshrl.u32 %v522, 7
  %v524 = vsub.s32 6, %v523
  %v525 = vrot.slane %v34, %v524
  %v526 = vadd.f32 %v520, %v525
  %v527 = vmul.f32 %v526, 0.2
  %v528 = vmax.f32 %v526, %v527
  %v529 = vadd.f32 %v528, %v33
  %v530 = vsel %vm49, %v529, -inf
  %v531 = vrot.slane %v530, 4
  %v532 = vmax.f32 %v530, %v531
  %v533 = vrot.slane %v532, 2
  %v534 = vmax.f32 %v532, %v533
  %v535 = vrot.slane %v534, 1
  %v536 = vmax.f32 %v534, %v535
  %v537 = vsub.f32 %v529, %v536
  %v538 = vmul.f32 %v537, 1.442695
  %v539 = vpow.pop %v538
  %v540 = vsel %vm49, %v539, 0.0
  %v541 = vrot.slane %v540, 4
  %v542 = vadd.f32 %v540, %v541
  %v543 = vrot.slane %v542, 2
  %v544 = vadd.f32 %v542, %v543
  %v545 = vrot.slane %v544, 1
  %v546 = vadd.f32 %v544, %v545
  %s547 = scalar_lea.vmem %s1, 12
  %v548 = vld [vmem:[%s547] sm:$0x3]
  %v549 = vpack.c.bf16 %v539, %v539
  %v551 = vsel %vm49, %v548, 0
  %v554 = vsel %vm72, %v549, 0
  %556 = vmatprep.subr.bf16.mxu0 0
  %557 = vmatpush1.bf16.msra.mxu0 0
  %558 = vmatprep.subr.bf16.mxu0 0
  %559 = vmatpush1.bf16.msra.mxu0 0
  %560 = vmatprep.subr.bf16.mxu0 0
  %561 = vmatpush1.bf16.msra.mxu0 0
  %562 = vmatprep.subr.bf16.mxu0 0
  %563 = vmatpush1.bf16.msra.mxu0 0
  %564 = vmatprep.subr.bf16.mxu0 0
  %565 = vmatpush1.bf16.msra.mxu0 0
  %566 = vmatprep.subr.bf16.mxu0 0
  %567 = vmatpush1.bf16.msra.mxu0 0
  %568 = vmatprep.subr.bf16.mxu0 0
  %569 = vmatpush1.bf16.msra.mxu0 0
  %570 = vmatprep.subr.bf16.mxu0 0
  %571 = vmatpush1.bf16.msra.mxu0 %v554
  %572 = vmatprep.subr.bf16.mxu0 0
  %573 = vmatpush2.bf16.msra.mxu0 0
  %574 = vmatprep.subr.bf16.mxu0 0
  %575 = vmatpush2.bf16.msra.mxu0 0
  %576 = vmatprep.subr.bf16.mxu0 0
  %577 = vmatpush2.bf16.msra.mxu0 0
  %578 = vmatprep.subr.bf16.mxu0 0
  %579 = vmatpush2.bf16.msra.mxu0 0
  %580 = vmatprep.subr.bf16.mxu0 0
  %581 = vmatpush2.bf16.msra.mxu0 0
  %582 = vmatprep.subr.bf16.mxu0 0
  %583 = vmatpush2.bf16.msra.mxu0 0
  %584 = vmatprep.subr.bf16.mxu0 0
  %585 = vmatpush2.bf16.msra.mxu0 0
  %586 = vmatprep.subr.bf16.mxu0 0
  %587 = vmatpush2.bf16.msra.mxu0 0
  %588 = vmatprep.mubr.bf16.mxu0 0
  %589 = vmatmul.mubr.bf16.gmra.mxu0 %v551
  %v590 = vpop.f32.mrf.mxu0
  %v591 = vadd.f32 0.0, %v590
  %v592 = vpop.f32.mrf.mxu0
  %v593 = vpop.f32.mrf.mxu0
  %v594 = vpop.f32.mrf.mxu0
  %595 = vdwg.mxu0
  %v596 = vrcp.pop %v546
  %v597 = vmul.f32 %v591, %v596
  %598 = vset.pattern.permute.xlu0 7
  %599 = vperm.xlu0 %598, %v35
  %v600 = vpop.permute.xlu0 %599
  %v602 = vlaneseq
  %v603 = vshrl.u32 %v602, 7
  %v604 = vsub.s32 7, %v603
  %v605 = vrot.slane %v34, %v604
  %v606 = vadd.f32 %v600, %v605
  %v607 = vmul.f32 %v606, 0.2
  %v608 = vmax.f32 %v606, %v607
  %v609 = vadd.f32 %v608, %v33
  %v610 = vsel %vm49, %v609, -inf
  %v611 = vrot.slane %v610, 4
  %v612 = vmax.f32 %v610, %v611
  %v613 = vrot.slane %v612, 2
  %v614 = vmax.f32 %v612, %v613
  %v615 = vrot.slane %v614, 1
  %v616 = vmax.f32 %v614, %v615
  %v617 = vsub.f32 %v609, %v616
  %v618 = vmul.f32 %v617, 1.442695
  %v619 = vpow.pop %v618
  %v620 = vsel %vm49, %v619, 0.0
  %v621 = vrot.slane %v620, 4
  %v622 = vadd.f32 %v620, %v621
  %v623 = vrot.slane %v622, 2
  %v624 = vadd.f32 %v622, %v623
  %v625 = vrot.slane %v624, 1
  %v626 = vadd.f32 %v624, %v625
  %s627 = scalar_lea.vmem %s1, 14
  %v628 = vld [vmem:[%s627] sm:$0x3]
  %v629 = vpack.c.bf16 %v619, %v619
  %v631 = vsel %vm49, %v628, 0
  %v634 = vsel %vm72, %v629, 0
  %636 = vmatprep.subr.bf16.mxu0 0
  %637 = vmatpush1.bf16.msra.mxu0 0
  %638 = vmatprep.subr.bf16.mxu0 0
  %639 = vmatpush1.bf16.msra.mxu0 0
  %640 = vmatprep.subr.bf16.mxu0 0
  %641 = vmatpush1.bf16.msra.mxu0 0
  %642 = vmatprep.subr.bf16.mxu0 0
  %643 = vmatpush1.bf16.msra.mxu0 0
  %644 = vmatprep.subr.bf16.mxu0 0
  %645 = vmatpush1.bf16.msra.mxu0 0
  %646 = vmatprep.subr.bf16.mxu0 0
  %647 = vmatpush1.bf16.msra.mxu0 0
  %648 = vmatprep.subr.bf16.mxu0 0
  %649 = vmatpush1.bf16.msra.mxu0 0
  %650 = vmatprep.subr.bf16.mxu0 0
  %651 = vmatpush1.bf16.msra.mxu0 %v634
  %652 = vmatprep.subr.bf16.mxu0 0
  %653 = vmatpush2.bf16.msra.mxu0 0
  %654 = vmatprep.subr.bf16.mxu0 0
  %655 = vmatpush2.bf16.msra.mxu0 0
  %656 = vmatprep.subr.bf16.mxu0 0
  %657 = vmatpush2.bf16.msra.mxu0 0
  %658 = vmatprep.subr.bf16.mxu0 0
  %659 = vmatpush2.bf16.msra.mxu0 0
  %660 = vmatprep.subr.bf16.mxu0 0
  %661 = vmatpush2.bf16.msra.mxu0 0
  %662 = vmatprep.subr.bf16.mxu0 0
  %663 = vmatpush2.bf16.msra.mxu0 0
  %664 = vmatprep.subr.bf16.mxu0 0
  %665 = vmatpush2.bf16.msra.mxu0 0
  %666 = vmatprep.subr.bf16.mxu0 0
  %667 = vmatpush2.bf16.msra.mxu0 0
  %668 = vmatprep.mubr.bf16.mxu0 0
  %669 = vmatmul.mubr.bf16.gmra.mxu0 %v631
  %v670 = vpop.f32.mrf.mxu0
  %v671 = vadd.f32 0.0, %v670
  %v672 = vpop.f32.mrf.mxu0
  %v673 = vpop.f32.mrf.mxu0
  %v674 = vpop.f32.mrf.mxu0
  %675 = vdwg.mxu0
  %v676 = vrcp.pop %v626
  %v677 = vmul.f32 %v671, %v676
  %v679 = vrot.slane %v197, 4
  %v682 = vrot.slane %v357, 4
  %v685 = vrot.slane %v517, 4
  %v688 = vrot.slane %v677, 4
  %v690 = vsel %vm72, %v117, %v679
  %v691 = vsel %vm72, %v277, %v682
  %v692 = vsel %vm72, %v437, %v685
  %v693 = vsel %vm72, %v597, %v688
  %694 = vxpose.xlu0.b32.start [1/16] %v690, 128
  %695 = vxpose.xlu0.b32.cont [2/16] %v691, 128
  %696 = vxpose.xlu0.b32.cont [3/16] %v692, 128
  %697 = vxpose.xlu0.b32.cont [4/16] %v693, 128
  %698 = vxpose.xlu0.b32.cont [5/16] 0.0, 128
  %699 = vxpose.xlu0.b32.cont [6/16] 0.0, 128
  %700 = vxpose.xlu0.b32.cont [7/16] 0.0, 128
  %701 = vxpose.xlu0.b32.cont [8/16] 0.0, 128
  %702 = vxpose.xlu0.b32.cont [9/16] 0.0, 128
  %703 = vxpose.xlu0.b32.cont [10/16] 0.0, 128
  %704 = vxpose.xlu0.b32.cont [11/16] 0.0, 128
  %705 = vxpose.xlu0.b32.cont [12/16] 0.0, 128
  %706 = vxpose.xlu0.b32.cont [13/16] 0.0, 128
  %707 = vxpose.xlu0.b32.cont [14/16] 0.0, 128
  %708 = vxpose.xlu0.b32.cont [15/16] 0.0, 128
  %709 = vxpose.xlu0.b32.end [16/16] 0.0, 128
  %v710 = vpop.trf.xlu0
  %v711 = vpop.trf.xlu0
  %v712 = vpop.trf.xlu0
  %v713 = vpop.trf.xlu0
  %v714 = vpop.trf.xlu0
  %v715 = vpop.trf.xlu0
  %v716 = vpop.trf.xlu0
  %v717 = vpop.trf.xlu0
  %v718 = vpop.trf.xlu0
  %v719 = vpop.trf.xlu0
  %v720 = vpop.trf.xlu0
  %v721 = vpop.trf.xlu0
  %v722 = vpop.trf.xlu0
  %v723 = vpop.trf.xlu0
  %v724 = vpop.trf.xlu0
  %v725 = vpop.trf.xlu0
  %v726 = vld [vmem:[%s4] sm:$0x1]
  %v728 = vlaneseq
  %v729 = vshrl.u32 %v728, 7
  %v730 = vsub.s32 0, %v729
  %v731 = vrot.slane %v726, %v730
  %v733 = vadd.f32 %v710, %v731
  %v734 = vld [vmem:[%s5] sm:$0xf]
  %v735 = vunpack.c.l.bf16 %v734
  %v736 = vadd.f32 %v733, %v735
  %vm737 = vcmask 261120
  %v738 = vsel %vm737, %v736, 0.0
  %739 = vadd.xlane.f32.xlu0 %v738
  %v740 = vpop.xlane.xlu0 %739
  %v741 = vrcp.pop 32.0
  %v742 = vmul.f32 %v740, %v741
  %v743 = vsub.f32 %v736, %v742
  %v744 = vmul.f32 %v743, %v743
  %v745 = vsel %vm737, %v744, 0.0
  %746 = vadd.xlane.f32.xlu0 %v745
  %v747 = vpop.xlane.xlu0 %746
  %v748 = vmul.f32 %v747, %v741
  %v749 = vadd.f32 %v748, 1e-05
  %v750 = vrsqrt.pop %v749
  %v751 = vmul.f32 %v743, %v750
  %v752 = vld [vmem:[%s6] sm:$0x1]
  %v754 = vlaneseq
  %v755 = vshrl.u32 %v754, 7
  %v756 = vsub.s32 0, %v755
  %v757 = vrot.slane %v752, %v756
  %v759 = vmul.f32 %v751, %v757
  %v760 = vld [vmem:[%s7] sm:$0x1]
  %v762 = vlaneseq
  %v763 = vshrl.u32 %v762, 7
  %v764 = vsub.s32 0, %v763
  %v765 = vrot.slane %v760, %v764
  %v767 = vadd.f32 %v759, %v765
  %vm768 = vcmp.gt.f32.partialorder %v767, 0.0
  %v769 = vmin.f32 %v767, 0.0
  %v770 = vmul.f32 %v769, 1.442695
  %v771 = vpow.pop %v770
  %v772 = vsub.f32 %v771, 1.0
  %v773 = vsel %vm768, %v767, %v772
  %v774 = vpack.c.bf16 %v773, %v773
  %vm775 = vcmask 257024
  %776 = vst.msk [vmem:[%s8] sm:$0xf] %vm775, %v774
  // Predicated region
  $region34: #{resgat_forward.9} parent=0 // pred_check
    _
  $region35: #{resgat_forward.9} parent=0 // pred_check_branch
    %778 = sbr.rel (0) target = $region37
  $region36: #{resgat_forward.9} parent=0 // pred_region
    _
  $region37: #{resgat_forward.9} parent=0 // pred_fallthru
    _
  // Predicated region
  $region38: #{resgat_forward.9} parent=0 // pred_check
    _
  $region39: #{resgat_forward.9} parent=0 // pred_check_branch
    %780 = sbr.rel (0) target = $region41
  $region40: #{resgat_forward.9} parent=0 // pred_region
    _
  $region41: #{resgat_forward.9} parent=0 // pred_fallthru
    _

// kernel: resgat_forward.10
$region0: #{resgat_forward.10}
  #allocation0 [shape = 'u32[]', space=smem, size = 0x4, offset = 0x4, fixed_abs, tag = 'smem constant byte address 0x4 - core index']
  #allocation1 [shape = 'u32[144,128]{1,0:T(1,128)}', space=vmem, size = 0x12000, scoped, tag = 'internal scratch']
  %s0 = inlined_call_operand.vmem [shape: bf16[8,32], index: 0, kind: input, shape index: {}]
  %s1 = inlined_call_operand.vmem [shape: f32[32,10], index: 1, kind: input, shape index: {}]
  %s2 = inlined_call_operand.vmem [shape: bf16[8,8], index: 2, kind: output, shape index: {0}]
  %s3 = inlined_call_operand.vmem [shape: f32[8,1], index: 3, kind: output, shape index: {1}]
  %s4 = inlined_call_operand.vmem [shape: f32[8,1], index: 4, kind: output, shape index: {2}]
  %5 = xla_tuple %s2, %s3, %s4
  %s6 = sld [smem:[#allocation0]]
  $region34: #{resgat_forward.10} parent=0
    _
  %s8 = ssub.s32 1, %s6
  %s9 = scalar_select 0, %s8, %s6
  // Predicated region
  $region2: #{resgat_forward.10} parent=0 // pred_check
    _
  $region3: #{resgat_forward.10} parent=0 // pred_check_branch
    %11 = sbr.rel (0) target = $region5
  $region4: #{resgat_forward.10} parent=0 // pred_region
    _
  $region5: #{resgat_forward.10} parent=0 // pred_fallthru
    _
  // Predicated region
  $region6: #{resgat_forward.10} parent=0 // pred_check
    _
  $region7: #{resgat_forward.10} parent=0 // pred_check_branch
    %13 = sbr.rel (0) target = $region9
  $region8: #{resgat_forward.10} parent=0 // pred_region
    _
  $region9: #{resgat_forward.10} parent=0 // pred_fallthru
    _
  %v15 = vld [vmem:[%s0] sm:$0xf]
  %v16 = vld [vmem:[%s1] sm:$0xff]
  %v17 = vld [vmem:[%s1 + $0x8] sm:$0xff]
  %v18 = vld [vmem:[%s1 + $0x10] sm:$0xff]
  %v19 = vld [vmem:[%s1 + $0x18] sm:$0xff]
  %v20 = vpack.c.bf16 %v17, %v16
  %v21 = vpack.c.bf16 %v19, %v18
  %vm22 = vcmask 261120
  %v24 = vsel %vm22, %v15, 0
  %26 = vmatprep.subr.bf16.mxu0 0
  %27 = vmatpush1.bf16.msra.mxu0 0
  %28 = vmatprep.subr.bf16.mxu0 0
  %29 = vmatpush1.bf16.msra.mxu0 0
  %30 = vmatprep.subr.bf16.mxu0 0
  %31 = vmatpush1.bf16.msra.mxu0 0
  %32 = vmatprep.subr.bf16.mxu0 0
  %33 = vmatpush1.bf16.msra.mxu0 0
  %34 = vmatprep.subr.bf16.mxu0 0
  %35 = vmatpush1.bf16.msra.mxu0 0
  %36 = vmatprep.subr.bf16.mxu0 0
  %37 = vmatpush1.bf16.msra.mxu0 0
  %38 = vmatprep.subr.bf16.mxu0 0
  %39 = vmatpush1.bf16.msra.mxu0 %v21
  %40 = vmatprep.subr.bf16.mxu0 0
  %41 = vmatpush1.bf16.msra.mxu0 %v20
  %42 = vmatprep.subr.bf16.mxu0 0
  %43 = vmatpush2.bf16.msra.mxu0 0
  %44 = vmatprep.subr.bf16.mxu0 0
  %45 = vmatpush2.bf16.msra.mxu0 0
  %46 = vmatprep.subr.bf16.mxu0 0
  %47 = vmatpush2.bf16.msra.mxu0 0
  %48 = vmatprep.subr.bf16.mxu0 0
  %49 = vmatpush2.bf16.msra.mxu0 0
  %50 = vmatprep.subr.bf16.mxu0 0
  %51 = vmatpush2.bf16.msra.mxu0 0
  %52 = vmatprep.subr.bf16.mxu0 0
  %53 = vmatpush2.bf16.msra.mxu0 0
  %54 = vmatprep.subr.bf16.mxu0 0
  %55 = vmatpush2.bf16.msra.mxu0 0
  %56 = vmatprep.subr.bf16.mxu0 0
  %57 = vmatpush2.bf16.msra.mxu0 0
  %58 = vmatprep.mubr.bf16.mxu0 0
  %59 = vmatmul.mubr.bf16.gmra.mxu0 %v24
  %v60 = vpop.f32.mrf.mxu0
  %v61 = vadd.f32 0.0, %v60
  %v62 = vpop.f32.mrf.mxu0
  %v63 = vpop.f32.mrf.mxu0
  %v64 = vpop.f32.mrf.mxu0
  %65 = vdwg.mxu0
  %v66 = vpack.c.bf16 %v61, %v61
  %vm67 = vcmask 60416
  %68 = vst.msk [vmem:[%s2] sm:$0xf] %vm67, %v66
  %70 = vrot.lane.b32.xlu0 %v61, 120
  %v71 = vpop.permute.xlu0 %70
  %vm73 = vcmask 7168
  %74 = vst.msk [vmem:[%s3] sm:$0xff] %vm73, %v71
  %75 = vrot.lane.b32.xlu0 %v61, 119
  %v76 = vpop.permute.xlu0 %75
  %78 = vst.msk [vmem:[%s4] sm:$0xff] %vm73, %v76
  // Predicated region
  $region10: #{resgat_forward.10} parent=0 // pred_check
    _
  $region11: #{resgat_forward.10} parent=0 // pred_check_branch
    %80 = sbr.rel (0) target = $region13
  $region12: #{resgat_forward.10} parent=0 // pred_region
    _
  $region13: #{resgat_forward.10} parent=0 // pred_fallthru
    _
  // Predicated region
  $region14: #{resgat_forward.10} parent=0 // pred_check
    _
  $region15: #{resgat_forward.10} parent=0 // pred_check_branch
    %82 = sbr.rel (0) target = $region17
  $region16: #{resgat_forward.10} parent=0 // pred_region
    _
  $region17: #{resgat_forward.10} parent=0 // pred_fallthru
    _
  // Predicated region
  $region18: #{resgat_forward.10} parent=0 // pred_check
    _
  $region19: #{resgat_forward.10} parent=0 // pred_check_branch
    %84 = sbr.rel (0) target = $region21
  $region20: #{resgat_forward.10} parent=0 // pred_region
    _
  $region21: #{resgat_forward.10} parent=0 // pred_fallthru
    _
  // Predicated region
  $region22: #{resgat_forward.10} parent=0 // pred_check
    _
  $region23: #{resgat_forward.10} parent=0 // pred_check_branch
    %86 = sbr.rel (0) target = $region25
  $region24: #{resgat_forward.10} parent=0 // pred_region
    _
  $region25: #{resgat_forward.10} parent=0 // pred_fallthru
    _
  // Predicated region
  $region26: #{resgat_forward.10} parent=0 // pred_check
    _
  $region27: #{resgat_forward.10} parent=0 // pred_check_branch
    %88 = sbr.rel (0) target = $region29
  $region28: #{resgat_forward.10} parent=0 // pred_region
    _
  $region29: #{resgat_forward.10} parent=0 // pred_fallthru
    _
  // Predicated region
  $region30: #{resgat_forward.10} parent=0 // pred_check
    _
  $region31: #{resgat_forward.10} parent=0 // pred_check_branch
    %90 = sbr.rel (0) target = $region33
  $region32: #{resgat_forward.10} parent=0 // pred_region
    _
  $region33: #{resgat_forward.10} parent=0 // pred_fallthru
    _

// kernel: resgat_forward.11
$region0: #{resgat_forward.11}
  #allocation0 [shape = 'u32[]', space=smem, size = 0x4, offset = 0x4, fixed_abs, tag = 'smem constant byte address 0x4 - core index']
  #allocation1 [shape = 'u32[144,128]{1,0:T(1,128)}', space=vmem, size = 0x12000, scoped, tag = 'internal scratch']
  %s0 = inlined_call_operand.vmem [shape: s8[8,8], index: 0, kind: input, shape index: {}]
  %s1 = inlined_call_operand.vmem [shape: bf16[1,8,8], index: 1, kind: input, shape index: {}]
  %s2 = inlined_call_operand.vmem [shape: f32[1,8], index: 2, kind: input, shape index: {}]
  %s3 = inlined_call_operand.vmem [shape: f32[8,1], index: 3, kind: input, shape index: {}]
  %s4 = inlined_call_operand.vmem [shape: f32[1,8], index: 4, kind: input, shape index: {}]
  %s5 = inlined_call_operand.hbm [shape: f32[8,8], index: 5, kind: output, shape index: {}]
  %s6 = sld [smem:[#allocation0]]
  $region30: #{resgat_forward.11} parent=0
    _
  %s8 = ssub.s32 1, %s6
  %s9 = scalar_select 0, %s8, %s6
  $region1: #{resgat_forward.11} parent=0
    #allocation2 [shape = 'u8[4096]{0}', space=vmem, size = 0x1000, scoped, tag = 'output window, operand 0, single buffered']
    #allocation3 [shape = 's32[1]{0}', space=sflag, size = 0x4, scoped, tag = 'scoped memory for resgat_forward.11']
    %10 = vsyncpa [#allocation3], 0
    // Predicated region
    $region2: #{resgat_forward.11} parent=1 // pred_check
      _
    $region3: #{resgat_forward.11} parent=1 // pred_check_branch
      %12 = sbr.rel (0) target = $region5
    $region4: #{resgat_forward.11} parent=1 // pred_region
      _
    $region5: #{resgat_forward.11} parent=1 // pred_fallthru
      _
    // Predicated region
    $region6: #{resgat_forward.11} parent=1 // pred_check
      _
    $region7: #{resgat_forward.11} parent=1 // pred_check_branch
      %14 = sbr.rel (0) target = $region9
    $region8: #{resgat_forward.11} parent=1 // pred_region
      _
    $region9: #{resgat_forward.11} parent=1 // pred_fallthru
      _
    // Predicated region
    $region10: #{resgat_forward.11} parent=1 // pred_check
      _
    $region11: #{resgat_forward.11} parent=1 // pred_check_branch
      %16 = sbr.rel (0) target = $region13
    $region12: #{resgat_forward.11} parent=1 // pred_region
      _
    $region13: #{resgat_forward.11} parent=1 // pred_fallthru
      _
    // Predicated region
    $region14: #{resgat_forward.11} parent=1 // pred_check
      _
    $region15: #{resgat_forward.11} parent=1 // pred_check_branch
      %18 = sbr.rel (0) target = $region17
    $region16: #{resgat_forward.11} parent=1 // pred_region
      _
    $region17: #{resgat_forward.11} parent=1 // pred_fallthru
      _
    // Predicated region
    $region18: #{resgat_forward.11} parent=1 // pred_check
      _
    $region19: #{resgat_forward.11} parent=1 // pred_check_branch
      %20 = sbr.rel (0) target = $region21
    $region20: #{resgat_forward.11} parent=1 // pred_region
      _
    $region21: #{resgat_forward.11} parent=1 // pred_fallthru
      _
    %v22 = vld [vmem:[%s0] sm:$0x3]
    %v23 = vunpack.c.0.s8 %v22
    %v24 = vcvt.s32.f32 %v23
    %v25 = vmul.f32 %v24, -1e+09
    %v26 = vld [vmem:[%s2] sm:$0x1]
    %v27 = vld [vmem:[%s3] sm:$0xff]
    %29 = vset.pattern.permute.xlu0 0
    %30 = vperm.xlu0 %29, %v27
    %v31 = vpop.permute.xlu0 %30
    %v34 = vlaneseq
    %v35 = vshrl.u32 %v34, 7
    %v36 = vsub.s32 0, %v35
    %v37 = vrot.slane %v26, %v36
    %v39 = vadd.f32 %v31, %v37
    %v40 = vmul.f32 %v39, 0.2
    %v41 = vmax.f32 %v39, %v40
    %v42 = vadd.f32 %v41, %v25
    %vm43 = vcmask 64512
    %v44 = vsel %vm43, %v42, -inf
    %v45 = vrot.slane %v44, 4
    %v46 = vmax.f32 %v44, %v45
    %v47 = vrot.slane %v46, 2
    %v48 = vmax.f32 %v46, %v47
    %v49 = vrot.slane %v48, 1
    %v50 = vmax.f32 %v48, %v49
    %v51 = vsub.f32 %v42, %v50
    %v52 = vmul.f32 %v51, 1.442695
    %v53 = vpow.pop %v52
    %v54 = vsel %vm43, %v53, 0.0
    %v55 = vrot.slane %v54, 4
    %v56 = vadd.f32 %v54, %v55
    %v57 = vrot.slane %v56, 2
    %v58 = vadd.f32 %v56, %v57
    %v59 = vrot.slane %v58, 1
    %v60 = vadd.f32 %v58, %v59
    %v61 = vld [vmem:[%s1] sm:$0xf]
    %v62 = vpack.c.bf16 %v53, %v53
    %v64 = vsel %vm43, %v61, 0
    %vm66 = vcmask 1043456
    %v68 = vsel %vm66, %v62, 0
    %70 = vmatprep.subr.bf16.mxu0 0
    %71 = vmatpush1.bf16.msra.mxu0 0
    %72 = vmatprep.subr.bf16.mxu0 0
    %73 = vmatpush1.bf16.msra.mxu0 0
    %74 = vmatprep.subr.bf16.mxu0 0
    %75 = vmatpush1.bf16.msra.mxu0 0
    %76 = vmatprep.subr.bf16.mxu0 0
    %77 = vmatpush1.bf16.msra.mxu0 0
    %78 = vmatprep.subr.bf16.mxu0 0
    %79 = vmatpush1.bf16.msra.mxu0 0
    %80 = vmatprep.subr.bf16.mxu0 0
    %81 = vmatpush1.bf16.msra.mxu0 0
    %82 = vmatprep.subr.bf16.mxu0 0
    %83 = vmatpush1.bf16.msra.mxu0 0
    %84 = vmatprep.subr.bf16.mxu0 0
    %85 = vmatpush1.bf16.msra.mxu0 %v68
    %86 = vmatprep.subr.bf16.mxu0 0
    %87 = vmatpush2.bf16.msra.mxu0 0
    %88 = vmatprep.subr.bf16.mxu0 0
    %89 = vmatpush2.bf16.msra.mxu0 0
    %90 = vmatprep.subr.bf16.mxu0 0
    %91 = vmatpush2.bf16.msra.mxu0 0
    %92 = vmatprep.subr.bf16.mxu0 0
    %93 = vmatpush2.bf16.msra.mxu0 0
    %94 = vmatprep.subr.bf16.mxu0 0
    %95 = vmatpush2.bf16.msra.mxu0 0
    %96 = vmatprep.subr.bf16.mxu0 0
    %97 = vmatpush2.bf16.msra.mxu0 0
    %98 = vmatprep.subr.bf16.mxu0 0
    %99 = vmatpush2.bf16.msra.mxu0 0
    %100 = vmatprep.subr.bf16.mxu0 0
    %101 = vmatpush2.bf16.msra.mxu0 0
    %102 = vmatprep.mubr.bf16.mxu0 0
    %103 = vmatmul.mubr.bf16.gmra.mxu0 %v64
    %v104 = vpop.f32.mrf.mxu0
    %v105 = vadd.f32 0.0, %v104
    %v106 = vpop.f32.mrf.mxu0
    %v107 = vpop.f32.mrf.mxu0
    %v108 = vpop.f32.mrf.mxu0
    %109 = vdwg.mxu0
    %v110 = vrcp.pop %v60
    %v111 = vmul.f32 %v105, %v110
    %112 = vxpose.xlu0.b32.start [1/16] %v111, 128
    %113 = vxpose.xlu0.b32.cont [2/16] 0.0, 128
    %114 = vxpose.xlu0.b32.cont [3/16] 0.0, 128
    %115 = vxpose.xlu0.b32.cont [4/16] 0.0, 128
    %116 = vxpose.xlu0.b32.cont [5/16] 0.0, 128
    %117 = vxpose.xlu0.b32.cont [6/16] 0.0, 128
    %118 = vxpose.xlu0.b32.cont [7/16] 0.0, 128
    %119 = vxpose.xlu0.b32.cont [8/16] 0.0, 128
    %120 = vxpose.xlu0.b32.cont [9/16] 0.0, 128
    %121 = vxpose.xlu0.b32.cont [10/16] 0.0, 128
    %122 = vxpose.xlu0.b32.cont [11/16] 0.0, 128
    %123 = vxpose.xlu0.b32.cont [12/16] 0.0, 128
    %124 = vxpose.xlu0.b32.cont [13/16] 0.0, 128
    %125 = vxpose.xlu0.b32.cont [14/16] 0.0, 128
    %126 = vxpose.xlu0.b32.cont [15/16] 0.0, 128
    %127 = vxpose.xlu0.b32.end [16/16] 0.0, 128
    %v128 = vpop.trf.xlu0
    %v129 = vpop.trf.xlu0
    %v130 = vpop.trf.xlu0
    %v131 = vpop.trf.xlu0
    %v132 = vpop.trf.xlu0
    %v133 = vpop.trf.xlu0
    %v134 = vpop.trf.xlu0
    %v135 = vpop.trf.xlu0
    %v136 = vpop.trf.xlu0
    %v137 = vpop.trf.xlu0
    %v138 = vpop.trf.xlu0
    %v139 = vpop.trf.xlu0
    %v140 = vpop.trf.xlu0
    %v141 = vpop.trf.xlu0
    %v142 = vpop.trf.xlu0
    %v143 = vpop.trf.xlu0
    %v144 = vld [vmem:[%s4] sm:$0x1]
    %v146 = vlaneseq
    %v147 = vshrl.u32 %v146, 7
    %v148 = vsub.s32 0, %v147
    %v149 = vrot.slane %v144, %v148
    %v151 = vadd.f32 %v128, %v149
    %152 = vst.msk [vmem:[#allocation2] sm:$0xff] %vm43, %v151
    // Predicated region
    $region22: #{resgat_forward.11} parent=1 // pred_check
      _
    $region23: #{resgat_forward.11} parent=1 // pred_check_branch
      %154 = sbr.rel (0) target = $region25
    $region24: #{resgat_forward.11} parent=1 // pred_region
      %s156 = ssub.s32 128, 128
      %157 = vsyncadd [#allocation3], %s156
      %s159 = sshll.u32 [#allocation2], 4
      %s160 = int_to_ptr.vmem [resolvable:$true] %s159
      %162 = dma.vmem_to_hbm [thread:$0]  %s160, 128, %s5, [#allocation3]
    $region25: #{resgat_forward.11} parent=1 // pred_fallthru
      _
    // Predicated region
    $region26: #{resgat_forward.11} parent=1 // pred_check
      _
    $region27: #{resgat_forward.11} parent=1 // pred_check_branch
      %164 = sbr.rel (0) target = $region29
    $region28: #{resgat_forward.11} parent=1 // pred_region
      %165 = dma.done [#allocation3], 128
    $region29: #{resgat_forward.11} parent=1 // pred_fallthru
      _
    %166 = vsyncpa [#allocation3], 1

</llo_original>
